<compile_context>
chip_gen: v7x
topology: tpu7x:2x2x1
jax: 0.10.0
libtpu: 0.0.40
codegen_flags: <defaults>
</compile_context>

<pallas_src>
import jax
import jax.numpy as jnp
from jax import lax
from jax.experimental import pallas as pl
from jax.experimental.pallas import tpu as pltpu

EPS = 1e-8       # Fusion.eps
BN_EPS = 1e-5    # PyTorch BatchNorm2d default eps
KSIZE = 5
PAD = 2          # (stride - 1 + dilation * (kernel_size - 1)) // 2 = 2 for k=5


# ----------------------------------------------------------------------------
# Pallas kernel: H-upsample + fuse + pad + depthwise 5x5 + 1x1 (MXU) + ReLU6
# ----------------------------------------------------------------------------
def fusion_kernel(w_ref, xt_ref, xb_ref, xe_ref, rt_ref, rb_ref, re_ref,
                  dwk_ref, wpw_ref, bias_ref, out_ref, xs_ref, fz_ref):
    _, TH, W2, C = out_ref.shape
    HX = TH // 2                       # low-res (pre-H-upsample) rows per tile
    t = pl.program_id(1)
    last = pl.num_programs(1) - 1

    # ---- fuse weights: ReLU6 then normalize (scalar math from SMEM) --------
    w0 = jnp.clip(w_ref[0], 0.0, 6.0)
    w1 = jnp.clip(w_ref[1], 0.0, 6.0)
    inv = 1.0 / (w0 + w1 + EPS)
    fw_res = w0 * inv                  # weight on res
    fw_x = w1 * inv                    # weight on upsampled x

    # ---- stage low-res x rows (body + 2-row halos) into scratch ------------
    xs_ref[0:2] = xt_ref[0]
    xs_ref[2:2 + HX] = xb_ref[0]
    xs_ref[2 + HX:4 + HX] = xe_ref[0]

    @pl.when(t == 0)
    def _():
        # clamp: low-res row -1 -> row 0
        xs_ref[1] = xb_ref[0, 0]

    @pl.when(t == last)
    def _():
        # clamp: low-res row H -> row H-1
        xs_ref[2 + HX] = xb_ref[0, HX - 1]

    # ---- fused = fw_res*res + fw_x*upsample_H(x), into padded scratch ------
    # res contribution (already at output resolution, contiguous row blocks)
    fz_ref[0:2, PAD:PAD + W2, :] = fw_res * rt_ref[0]
    fz_ref[2:2 + TH, PAD:PAD + W2, :] = fw_res * rb_ref[0]
    fz_ref[2 + TH:4 + TH, PAD:PAD + W2, :] = fw_res * re_ref[0]

    # x contribution: 2x bilinear upsample along H (align_corners=False):
    #   out[2m]   = 0.25*in[m-1] + 0.75*in[m]
    #   out[2m+1] = 0.75*in[m]   + 0.25*in[m+1]
    # written pair-by-pair (static indices only).
    r0 = xs_ref[0]
    r1 = xs_ref[1]
    for m in range(HX + 2):
        r2 = xs_ref[m + 2]
        even = 0.25 * r0 + 0.75 * r1
        odd = 0.75 * r1 + 0.25 * r2
        fz_ref[2 * m, PAD:PAD + W2, :] += fw_x * even
        fz_ref[2 * m + 1, PAD:PAD + W2, :] += fw_x * odd
        r0, r1 = r1, r2

    # ---- conv zero padding (done in VMEM, never materialized in HBM) -------
    fz_ref[:, 0:PAD, :] = jnp.zeros((TH + 4, PAD, C), jnp.float32)
    fz_ref[:, PAD + W2:, :] = jnp.zeros((TH + 4, PAD, C), jnp.float32)

    @pl.when(t == 0)
    def _():
        fz_ref[0:2, :, :] = jnp.zeros((2, W2 + 2 * PAD, C), jnp.float32)

    @pl.when(t == last)
    def _():
        fz_ref[2 + TH:4 + TH, :, :] = jnp.zeros((2, W2 + 2 * PAD, C),
                                                jnp.float32)

    # ---- depthwise 5x5 conv (BN1 pre-folded into dwk) -----------------------
    acc = jnp.zeros((TH, W2, C), jnp.float32)
    for a in range(KSIZE):
        for b in range(KSIZE):
            acc = acc + dwk_ref[a * KSIZE + b, :] * fz_ref[a:a + TH, b:b + W2, :]

    # ---- pointwise 1x1 conv (MXU), BN2 folded into weights/bias, ReLU6 ------
    y = jnp.dot(acc.reshape(TH * W2, C), wpw_ref[...],
                preferred_element_type=jnp.float32)
    y = jnp.clip(y + bias_ref[0, :], 0.0, 6.0)
    out_ref[0] = y.reshape(TH, W2, C).astype(out_ref.dtype)


# ----------------------------------------------------------------------------
# Glue: PyTorch-exact bilinear x2 upsample along one axis (align_corners=False)
# ----------------------------------------------------------------------------
def _upsample2x_axis(x, axis):
    n = x.shape[axis]
    sl = lambda arr, s, e: lax.slice_in_dim(arr, s, e, axis=axis)
    xm1 = jnp.concatenate([sl(x, 0, 1), sl(x, 0, n - 1)], axis=axis)
    xp1 = jnp.concatenate([sl(x, 1, n), sl(x, n - 1, n)], axis=axis)
    even = 0.25 * xm1 + 0.75 * x
    even = jnp.concatenate([sl(x, 0, 1), sl(even, 1, n)], axis=axis)
    odd = 0.75 * x + 0.25 * xp1
    out = jnp.stack([even, odd], axis=axis + 1)
    new_shape = list(x.shape)
    new_shape[axis] = 2 * n
    return out.reshape(new_shape)


def upsample2x_bilinear_nchw(x):
    return _upsample2x_axis(_upsample2x_axis(x, axis=2), axis=3)


def fold_bn(gamma, beta, mean, var):
    scale = gamma / jnp.sqrt(var + BN_EPS)
    bias = beta - mean * scale
    return scale, bias


# ----------------------------------------------------------------------------
# Tile-size selection from a VMEM budget
# ----------------------------------------------------------------------------
def _estimate_vmem_bytes(th, w2, c):
    f = 4
    xs = (th // 2 + 4) * w2 * c * f                       # low-res x scratch
    fz = (th + 4) * (w2 + 2 * PAD) * c * f                # padded fused scratch
    io = 2 * ((th + 4) * w2 * c                           # res body + halos
              + (th // 2 + 4) * w2 * c                    # x body + halos
              + th * w2 * c) * f                          # output (dbl-buffered)
    wts = 2 * (KSIZE * KSIZE * c + c * c + c) * f
    tmp = 2 * th * w2 * c * f                             # dw acc + matmul out
    return xs + fz + io + wts + tmp


def _pick_tile_h(h2, w2, c, budget_bytes=32 * 1024 * 1024, max_th=64):
    best = 4
    for th in range(4, min(h2, max_th) + 1, 4):
        if h2 % th:
            continue
        if _estimate_vmem_bytes(th, w2, c) <= budget_bytes:
            best = th
    return best


# ----------------------------------------------------------------------------
# Wrappers
# ----------------------------------------------------------------------------
def fusion_forward_nhwc(params, x_nhwc, res_nhwc, tile_h=None):
    N, H, W, C = x_nhwc.shape
    H2, W2 = 2 * H, 2 * W
    assert res_nhwc.shape == (N, H2, W2, C), res_nhwc.shape
    assert H % 2 == 0, "H must be even"

    # W-direction x2 upsample done in XLA on the low-H tensor (cheap); the
    # H-direction upsample happens inside the kernel, so x never touches HBM
    # at full resolution.
    xw = _upsample2x_axis(x_nhwc, axis=2)                 # (N, H, W2, C)

    # Fold BN1 into the depthwise weights, BN2 into the pointwise weights+bias.
    s1, b1 = fold_bn(params["bn1_gamma"], params["bn1_beta"],
                     params["bn1_mean"], params["bn1_var"])
    s2, b2 = fold_bn(params["bn2_gamma"], params["bn2_beta"],
                     params["bn2_mean"], params["bn2_var"])
    dwk = jnp.transpose(params["dw_weight"][:, 0], (1, 2, 0)).reshape(
        KSIZE * KSIZE, C)
    dwk_eff = dwk * s1[None, :]
    wpw = jnp.transpose(params["pw_weight"][:, :, 0, 0], (1, 0))   # (Cin, Cout)
    wpw_eff = wpw * s2[None, :]
    bias_eff = (b2 + b1 @ wpw_eff).reshape(1, C)

    TH = tile_h if tile_h is not None else _pick_tile_h(H2, W2, C)
    assert TH % 4 == 0 and H2 % TH == 0, (TH, H2)
    nH = H2 // TH
    HX = TH // 2

    # Clamped-index halo maps (2-row halos fetched as separate small blocks;
    # boundary tiles re-fetch valid rows which the kernel then zeros/clamps).
    xt_map = lambda n, t: (n, jnp.maximum(t * (TH // 4) - 1, 0), 0, 0)
    xb_map = lambda n, t: (n, t, 0, 0)
    xe_map = lambda n, t: (n, jnp.minimum((t + 1) * (TH // 4), H // 2 - 1), 0, 0)
    rt_map = lambda n, t: (n, jnp.maximum(t * (TH // 2) - 1, 0), 0, 0)
    rb_map = lambda n, t: (n, t, 0, 0)
    re_map = lambda n, t: (n, jnp.minimum((t + 1) * (TH // 2), H2 // 2 - 1), 0, 0)

    out = pl.pallas_call(
        fusion_kernel,
        out_shape=jax.ShapeDtypeStruct((N, H2, W2, C), jnp.float32),
        grid=(N, nH),
        in_specs=[
            pl.BlockSpec(memory_space=pltpu.MemorySpace.SMEM),   # fuse weights (2,)
            pl.BlockSpec((1, 2, W2, C), xt_map),                 # x top halo
            pl.BlockSpec((1, HX, W2, C), xb_map),                # x body
            pl.BlockSpec((1, 2, W2, C), xe_map),                 # x bottom halo
            pl.BlockSpec((1, 2, W2, C), rt_map),                 # res top halo
            pl.BlockSpec((1, TH, W2, C), rb_map),                # res body
            pl.BlockSpec((1, 2, W2, C), re_map),                 # res bottom halo
            pl.BlockSpec((KSIZE * KSIZE, C), lambda n, t: (0, 0)),  # dw weights
            pl.BlockSpec((C, C), lambda n, t: (0, 0)),           # 1x1 weights
            pl.BlockSpec((1, C), lambda n, t: (0, 0)),           # bias
        ],
        out_specs=pl.BlockSpec((1, TH, W2, C), lambda n, t: (n, t, 0, 0)),
        scratch_shapes=[
            pltpu.VMEM((HX + 4, W2, C), jnp.float32),            # low-res x rows
            pltpu.VMEM((TH + 4, W2 + 2 * PAD, C), jnp.float32),  # padded fused
        ],
        compiler_params=pltpu.CompilerParams(
            dimension_semantics=("parallel", "parallel"),
            vmem_limit_bytes=64 * 1024 * 1024),
    )(params["fuse_w"], xw, xw, xw, res_nhwc, res_nhwc, res_nhwc,
      dwk_eff, wpw_eff, bias_eff)
    return out


def fusion_forward(params, x, res, tile_h=None):
    # NCHW API for PyTorch compatibility; the NHWC entry point above avoids
    # these relayouts when the surrounding model is kept NHWC.
    out_nhwc = fusion_forward_nhwc(params,
                                   jnp.transpose(x, (0, 2, 3, 1)),
                                   jnp.transpose(res, (0, 2, 3, 1)),
                                   tile_h=tile_h)
    return jnp.transpose(out_nhwc, (0, 3, 1, 2))


# ----------------------------------------------------------------------------
# Pure-JAX reference (same math via lax.conv) for a correctness check
# ----------------------------------------------------------------------------
def reference_forward(params, x, res):
    N, C, H, W = x.shape
    xup = upsample2x_bilinear_nchw(x)
    w = jnp.clip(params["fuse_w"], 0.0, 6.0)
    fw = w / (jnp.sum(w) + EPS)
    f = fw[0] * res + fw[1] * xup

    y = lax.conv_general_dilated(
        f, params["dw_weight"], window_strides=(1, 1),
        padding=[(PAD, PAD), (PAD, PAD)], feature_group_count=C,
        dimension_numbers=("NCHW", "OIHW", "NCHW"),
        precision=lax.Precision.HIGHEST)
    s1, b1 = fold_bn(params["bn1_gamma"], params["bn1_beta"],
                     params["bn1_mean"], params["bn1_var"])
    y = y * s1[None, :, None, None] + b1[None, :, None, None]

    y = lax.conv_general_dilated(
        y, params["pw_weight"], window_strides=(1, 1), padding=[(0, 0), (0, 0)],
        dimension_numbers=("NCHW", "OIHW", "NCHW"),
        precision=lax.Precision.HIGHEST)
    s2, b2 = fold_bn(params["bn2_gamma"], params["bn2_beta"],
                     params["bn2_mean"], params["bn2_var"])
    y = y * s2[None, :, None, None] + b2[None, :, None, None]
    return jnp.clip(y, 0.0, 6.0)


# ----------------------------------------------------------------------------
# Deterministic parameter construction (shapes from Fusion.__init__)
# ----------------------------------------------------------------------------
def init_params(key, dim):
    ks = jax.random.split(key, 10)
    return {
        "fuse_w": jnp.ones((2,), jnp.float32),
        "dw_weight": 0.1 * jax.random.normal(ks[0], (dim, 1, KSIZE, KSIZE), jnp.float32),
        "bn1_gamma": 1.0 + 0.1 * jax.random.normal(ks[1], (dim,), jnp.float32),
        "bn1_beta": 0.1 * jax.random.normal(ks[2], (dim,), jnp.float32),
        "bn1_mean": 0.1 * jax.random.normal(ks[3], (dim,), jnp.float32),
        "bn1_var": 0.5 + jax.random.uniform(ks[4], (dim,), jnp.float32),
        "pw_weight": 0.1 * jax.random.normal(ks[5], (dim, dim, 1, 1), jnp.float32),
        "bn2_gamma": 1.0 + 0.1 * jax.random.normal(ks[6], (dim,), jnp.float32),
        "bn2_beta": 0.1 * jax.random.normal(ks[7], (dim,), jnp.float32),
        "bn2_mean": 0.1 * jax.random.normal(ks[8], (dim,), jnp.float32),
        "bn2_var": 0.5 + jax.random.uniform(ks[9], (dim,), jnp.float32),
    }


if __name__ == "__main__":
    # C=128 keeps the channel (lane) axis dense and the MXU contraction full;
    # the real decoder uses dim=256/512.  x is low-res, res is 2x spatial.
    N, C, H, W = 2, 128, 16, 16
    key = jax.random.PRNGKey(0)
    kx, kr, kp = jax.random.split(key, 3)
    x = jax.random.normal(kx, (N, C, H, W), jnp.float32)
    res = jax.random.normal(kr, (N, C, 2 * H, 2 * W), jnp.float32)
    params = init_params(kp, C)

    # multi-tile path (exercises first / interior / last row-tiles) ...
    fwd_tiled = jax.jit(lambda p, a, b: fusion_forward(p, a, b, tile_h=8))
    # ... and the auto-picked (whole-image) path.
    fwd_auto = jax.jit(lambda p, a, b: fusion_forward(p, a, b))
    ref_fn = jax.jit(reference_forward)

    out_t = jax.block_until_ready(fwd_tiled(params, x, res))
    out_a = jax.block_until_ready(fwd_auto(params, x, res))
    ref = jax.block_until_ready(ref_fn(params, x, res))

    for out in (out_t, out_a):
        assert out.shape == (N, C, 2 * H, 2 * W), out.shape
        max_err = float(jnp.max(jnp.abs(out - ref)))
        assert jnp.allclose(out, ref, rtol=5e-3, atol=5e-3), max_err
    print("KERNEL_OK")
</pallas_src>

<mosaic_0001>
module attributes {stable_mosaic.version = 11 : i64} {
  func.func @fusion_kernel(%arg0: i32, %arg1: i32, %arg2: memref<2xf32, #tpu.memory_space<smem>>, %arg3: memref<1x2x32x128xf32, #tpu.memory_space<vmem>>, %arg4: memref<1x4x32x128xf32, #tpu.memory_space<vmem>>, %arg5: memref<1x2x32x128xf32, #tpu.memory_space<vmem>>, %arg6: memref<1x2x32x128xf32, #tpu.memory_space<vmem>>, %arg7: memref<1x8x32x128xf32, #tpu.memory_space<vmem>>, %arg8: memref<1x2x32x128xf32, #tpu.memory_space<vmem>>, %arg9: memref<25x128xf32, #tpu.memory_space<vmem>>, %arg10: memref<128x128xf32, #tpu.memory_space<vmem>>, %arg11: memref<1x128xf32, #tpu.memory_space<vmem>>, %arg12: memref<1x8x32x128xf32, #tpu.memory_space<vmem>>, %arg13: memref<8x32x128xf32, #tpu.memory_space<vmem>>, %arg14: memref<12x36x128xf32, #tpu.memory_space<vmem>>) attributes {dimension_semantics = [#tpu.dimension_semantics<parallel>, #tpu.dimension_semantics<parallel>], iteration_bounds = array<i64: 2, 4>, scalar_prefetch = 0 : i64, scratch_operands = 2 : i64, tpu.core_type = #tpu.core_type<tc>, window_params = [{transform_indices = @transform_0, window_bounds = array<i64: 2>}, {transform_indices = @transform_1, window_bounds = array<i64: 1, 2, 32, 128>}, {transform_indices = @transform_2, window_bounds = array<i64: 1, 4, 32, 128>}, {transform_indices = @transform_3, window_bounds = array<i64: 1, 2, 32, 128>}, {transform_indices = @transform_4, window_bounds = array<i64: 1, 2, 32, 128>}, {transform_indices = @transform_5, window_bounds = array<i64: 1, 8, 32, 128>}, {transform_indices = @transform_6, window_bounds = array<i64: 1, 2, 32, 128>}, {pipeline_mode = #tpu.pipeline_mode<synchronous>, transform_indices = @transform_7, window_bounds = array<i64: 25, 128>}, {pipeline_mode = #tpu.pipeline_mode<synchronous>, transform_indices = @transform_8, window_bounds = array<i64: 128, 128>}, {pipeline_mode = #tpu.pipeline_mode<synchronous>, transform_indices = @transform_9, window_bounds = array<i64: 1, 128>}, {transform_indices = @transform_10, window_bounds = array<i64: 1, 8, 32, 128>}]} {
    %c0 = arith.constant 0 : index
    %0 = memref.load %arg2[%c0] : memref<2xf32, #tpu.memory_space<smem>>
    %cst = arith.constant 0.000000e+00 : f32
    %cst_0 = arith.constant 6.000000e+00 : f32
    %1 = arith.maximumf %cst, %0 : f32
    %2 = arith.minimumf %cst_0, %1 : f32
    %c1 = arith.constant 1 : index
    %3 = memref.load %arg2[%c1] : memref<2xf32, #tpu.memory_space<smem>>
    %cst_1 = arith.constant 0.000000e+00 : f32
    %cst_2 = arith.constant 6.000000e+00 : f32
    %4 = arith.maximumf %cst_1, %3 : f32
    %5 = arith.minimumf %cst_2, %4 : f32
    %6 = arith.addf %2, %5 : f32
    %cst_3 = arith.constant 9.99999993E-9 : f32
    %7 = arith.addf %6, %cst_3 : f32
    %cst_4 = arith.constant 1.000000e+00 : f32
    %8 = arith.divf %cst_4, %7 : f32
    %9 = arith.mulf %2, %8 : f32
    %10 = arith.mulf %5, %8 : f32
    %c0_5 = arith.constant 0 : index
    %c0_6 = arith.constant 0 : index
    %c0_7 = arith.constant 0 : index
    %c0_8 = arith.constant 0 : index
    %11 = vector.load %arg3[%c0_5, %c0_6, %c0_7, %c0_8] : memref<1x2x32x128xf32, #tpu.memory_space<vmem>>, vector<1x2x32x128xf32>
    %12 = vector.shape_cast %11 : vector<1x2x32x128xf32> to vector<2x32x128xf32>
    %c0_9 = arith.constant 0 : index
    %c0_10 = arith.constant 0 : index
    %c0_11 = arith.constant 0 : index
    %13 = vector.load %arg13[%c0_9, %c0_10, %c0_11] : memref<8x32x128xf32, #tpu.memory_space<vmem>>, vector<2x32x128xf32>
    tpu.vector_store %arg13[%c0_9, %c0_10, %c0_11], %12 {strides = array<i32>} : memref<8x32x128xf32, #tpu.memory_space<vmem>>, vector<2x32x128xf32>,
    %c0_12 = arith.constant 0 : index
    %c0_13 = arith.constant 0 : index
    %c0_14 = arith.constant 0 : index
    %c0_15 = arith.constant 0 : index
    %14 = vector.load %arg4[%c0_12, %c0_13, %c0_14, %c0_15] : memref<1x4x32x128xf32, #tpu.memory_space<vmem>>, vector<1x4x32x128xf32>
    %15 = vector.shape_cast %14 : vector<1x4x32x128xf32> to vector<4x32x128xf32>
    %c2 = arith.constant 2 : index
    %c0_16 = arith.constant 0 : index
    %c0_17 = arith.constant 0 : index
    %16 = vector.load %arg13[%c2, %c0_16, %c0_17] : memref<8x32x128xf32, #tpu.memory_space<vmem>>, vector<4x32x128xf32>
    tpu.vector_store %arg13[%c2, %c0_16, %c0_17], %15 {strides = array<i32>} : memref<8x32x128xf32, #tpu.memory_space<vmem>>, vector<4x32x128xf32>,
    %c0_18 = arith.constant 0 : index
    %c0_19 = arith.constant 0 : index
    %c0_20 = arith.constant 0 : index
    %c0_21 = arith.constant 0 : index
    %17 = vector.load %arg5[%c0_18, %c0_19, %c0_20, %c0_21] : memref<1x2x32x128xf32, #tpu.memory_space<vmem>>, vector<1x2x32x128xf32>
    %18 = vector.shape_cast %17 : vector<1x2x32x128xf32> to vector<2x32x128xf32>
    %c6 = arith.constant 6 : index
    %c0_22 = arith.constant 0 : index
    %c0_23 = arith.constant 0 : index
    %19 = vector.load %arg13[%c6, %c0_22, %c0_23] : memref<8x32x128xf32, #tpu.memory_space<vmem>>, vector<2x32x128xf32>
    tpu.vector_store %arg13[%c6, %c0_22, %c0_23], %18 {strides = array<i32>} : memref<8x32x128xf32, #tpu.memory_space<vmem>>, vector<2x32x128xf32>,
    %c0_i32 = arith.constant 0 : i32
    %20 = arith.cmpi eq, %arg1, %c0_i32 : i32
    %21 = arith.extui %20 : i1 to i32
    %c0_i32_24 = arith.constant 0 : i32
    %22 = arith.cmpi ne, %21, %c0_i32_24 : i32
    scf.if %22 {
      %c0_294 = arith.constant 0 : index
      %c0_295 = arith.constant 0 : index
      %c0_296 = arith.constant 0 : index
      %c0_297 = arith.constant 0 : index
      %415 = vector.load %arg4[%c0_294, %c0_295, %c0_296, %c0_297] : memref<1x4x32x128xf32, #tpu.memory_space<vmem>>, vector<1x1x32x128xf32>
      %416 = vector.shape_cast %415 : vector<1x1x32x128xf32> to vector<32x128xf32>
      %c1_298 = arith.constant 1 : index
      %c0_299 = arith.constant 0 : index
      %c0_300 = arith.constant 0 : index
      %417 = vector.load %arg13[%c1_298, %c0_299, %c0_300] : memref<8x32x128xf32, #tpu.memory_space<vmem>>, vector<1x32x128xf32>
      %418 = vector.shape_cast %417 : vector<1x32x128xf32> to vector<32x128xf32>
      %419 = vector.shape_cast %416 : vector<32x128xf32> to vector<1x32x128xf32>
      tpu.vector_store %arg13[%c1_298, %c0_299, %c0_300], %419 {strides = array<i32>} : memref<8x32x128xf32, #tpu.memory_space<vmem>>, vector<1x32x128xf32>,
    } else {
    }
    %c3_i32 = arith.constant 3 : i32
    %23 = arith.cmpi eq, %arg1, %c3_i32 : i32
    %24 = arith.extui %23 : i1 to i32
    %c0_i32_25 = arith.constant 0 : i32
    %25 = arith.cmpi ne, %24, %c0_i32_25 : i32
    scf.if %25 {
      %c0_294 = arith.constant 0 : index
      %c3_295 = arith.constant 3 : index
      %c0_296 = arith.constant 0 : index
      %c0_297 = arith.constant 0 : index
      %415 = vector.load %arg4[%c0_294, %c3_295, %c0_296, %c0_297] : memref<1x4x32x128xf32, #tpu.memory_space<vmem>>, vector<1x1x32x128xf32>
      %416 = vector.shape_cast %415 : vector<1x1x32x128xf32> to vector<32x128xf32>
      %c6_298 = arith.constant 6 : index
      %c0_299 = arith.constant 0 : index
      %c0_300 = arith.constant 0 : index
      %417 = vector.load %arg13[%c6_298, %c0_299, %c0_300] : memref<8x32x128xf32, #tpu.memory_space<vmem>>, vector<1x32x128xf32>
      %418 = vector.shape_cast %417 : vector<1x32x128xf32> to vector<32x128xf32>
      %419 = vector.shape_cast %416 : vector<32x128xf32> to vector<1x32x128xf32>
      tpu.vector_store %arg13[%c6_298, %c0_299, %c0_300], %419 {strides = array<i32>} : memref<8x32x128xf32, #tpu.memory_space<vmem>>, vector<1x32x128xf32>,
    } else {
    }
    %c0_26 = arith.constant 0 : index
    %c0_27 = arith.constant 0 : index
    %c0_28 = arith.constant 0 : index
    %c0_29 = arith.constant 0 : index
    %26 = vector.load %arg6[%c0_26, %c0_27, %c0_28, %c0_29] : memref<1x2x32x128xf32, #tpu.memory_space<vmem>>, vector<1x2x32x128xf32>
    %27 = vector.shape_cast %26 : vector<1x2x32x128xf32> to vector<2x32x128xf32>
    %28 = vector.broadcast %9 : f32 to vector<2x32x128xf32>
    %29 = arith.mulf %28, %27 : vector<2x32x128xf32>
    %c0_30 = arith.constant 0 : index
    %c2_31 = arith.constant 2 : index
    %c0_32 = arith.constant 0 : index
    %30 = vector.load %arg14[%c0_30, %c2_31, %c0_32] : memref<12x36x128xf32, #tpu.memory_space<vmem>>, vector<2x32x128xf32>
    tpu.vector_store %arg14[%c0_30, %c2_31, %c0_32], %29 {strides = array<i32>} : memref<12x36x128xf32, #tpu.memory_space<vmem>>, vector<2x32x128xf32>,
    %c0_33 = arith.constant 0 : index
    %c0_34 = arith.constant 0 : index
    %c0_35 = arith.constant 0 : index
    %c0_36 = arith.constant 0 : index
    %31 = vector.load %arg7[%c0_33, %c0_34, %c0_35, %c0_36] : memref<1x8x32x128xf32, #tpu.memory_space<vmem>>, vector<1x8x32x128xf32>
    %32 = vector.shape_cast %31 : vector<1x8x32x128xf32> to vector<8x32x128xf32>
    %33 = vector.broadcast %9 : f32 to vector<8x32x128xf32>
    %34 = arith.mulf %33, %32 : vector<8x32x128xf32>
    %c2_37 = arith.constant 2 : index
    %c2_38 = arith.constant 2 : index
    %c0_39 = arith.constant 0 : index
    %35 = vector.load %arg14[%c2_37, %c2_38, %c0_39] : memref<12x36x128xf32, #tpu.memory_space<vmem>>, vector<8x32x128xf32>
    tpu.vector_store %arg14[%c2_37, %c2_38, %c0_39], %34 {strides = array<i32>} : memref<12x36x128xf32, #tpu.memory_space<vmem>>, vector<8x32x128xf32>,
    %c0_40 = arith.constant 0 : index
    %c0_41 = arith.constant 0 : index
    %c0_42 = arith.constant 0 : index
    %c0_43 = arith.constant 0 : index
    %36 = vector.load %arg8[%c0_40, %c0_41, %c0_42, %c0_43] : memref<1x2x32x128xf32, #tpu.memory_space<vmem>>, vector<1x2x32x128xf32>
    %37 = vector.shape_cast %36 : vector<1x2x32x128xf32> to vector<2x32x128xf32>
    %38 = vector.broadcast %9 : f32 to vector<2x32x128xf32>
    %39 = arith.mulf %38, %37 : vector<2x32x128xf32>
    %c10 = arith.constant 10 : index
    %c2_44 = arith.constant 2 : index
    %c0_45 = arith.constant 0 : index
    %40 = vector.load %arg14[%c10, %c2_44, %c0_45] : memref<12x36x128xf32, #tpu.memory_space<vmem>>, vector<2x32x128xf32>
    tpu.vector_store %arg14[%c10, %c2_44, %c0_45], %39 {strides = array<i32>} : memref<12x36x128xf32, #tpu.memory_space<vmem>>, vector<2x32x128xf32>,
    %c0_46 = arith.constant 0 : index
    %c0_47 = arith.constant 0 : index
    %c0_48 = arith.constant 0 : index
    %41 = vector.load %arg13[%c0_46, %c0_47, %c0_48] : memref<8x32x128xf32, #tpu.memory_space<vmem>>, vector<1x32x128xf32>
    %42 = vector.shape_cast %41 : vector<1x32x128xf32> to vector<32x128xf32>
    %c1_49 = arith.constant 1 : index
    %c0_50 = arith.constant 0 : index
    %c0_51 = arith.constant 0 : index
    %43 = vector.load %arg13[%c1_49, %c0_50, %c0_51] : memref<8x32x128xf32, #tpu.memory_space<vmem>>, vector<1x32x128xf32>
    %44 = vector.shape_cast %43 : vector<1x32x128xf32> to vector<32x128xf32>
    %c2_52 = arith.constant 2 : index
    %c0_53 = arith.constant 0 : index
    %c0_54 = arith.constant 0 : index
    %45 = vector.load %arg13[%c2_52, %c0_53, %c0_54] : memref<8x32x128xf32, #tpu.memory_space<vmem>>, vector<1x32x128xf32>
    %46 = vector.shape_cast %45 : vector<1x32x128xf32> to vector<32x128xf32>
    %cst_55 = arith.constant 2.500000e-01 : f32
    %47 = vector.broadcast %cst_55 : f32 to vector<32x128xf32>
    %48 = arith.mulf %47, %42 : vector<32x128xf32>
    %cst_56 = arith.constant 7.500000e-01 : f32
    %49 = vector.broadcast %cst_56 : f32 to vector<32x128xf32>
    %50 = arith.mulf %49, %44 : vector<32x128xf32>
    %51 = arith.addf %48, %50 : vector<32x128xf32>
    %cst_57 = arith.constant 7.500000e-01 : f32
    %52 = vector.broadcast %cst_57 : f32 to vector<32x128xf32>
    %53 = arith.mulf %52, %44 : vector<32x128xf32>
    %cst_58 = arith.constant 2.500000e-01 : f32
    %54 = vector.broadcast %cst_58 : f32 to vector<32x128xf32>
    %55 = arith.mulf %54, %46 : vector<32x128xf32>
    %56 = arith.addf %53, %55 : vector<32x128xf32>
    %c0_59 = arith.constant 0 : index
    %c2_60 = arith.constant 2 : index
    %c0_61 = arith.constant 0 : index
    %57 = vector.load %arg14[%c0_59, %c2_60, %c0_61] : memref<12x36x128xf32, #tpu.memory_space<vmem>>, vector<1x32x128xf32>
    %58 = vector.shape_cast %57 : vector<1x32x128xf32> to vector<32x128xf32>
    %59 = vector.broadcast %10 : f32 to vector<32x128xf32>
    %60 = arith.mulf %59, %51 : vector<32x128xf32>
    %61 = arith.addf %58, %60 : vector<32x128xf32>
    %c0_62 = arith.constant 0 : index
    %c2_63 = arith.constant 2 : index
    %c0_64 = arith.constant 0 : index
    %62 = vector.load %arg14[%c0_62, %c2_63, %c0_64] : memref<12x36x128xf32, #tpu.memory_space<vmem>>, vector<1x32x128xf32>
    %63 = vector.shape_cast %62 : vector<1x32x128xf32> to vector<32x128xf32>
    %64 = vector.shape_cast %61 : vector<32x128xf32> to vector<1x32x128xf32>
    tpu.vector_store %arg14[%c0_62, %c2_63, %c0_64], %64 {strides = array<i32>} : memref<12x36x128xf32, #tpu.memory_space<vmem>>, vector<1x32x128xf32>,
    %c1_65 = arith.constant 1 : index
    %c2_66 = arith.constant 2 : index
    %c0_67 = arith.constant 0 : index
    %65 = vector.load %arg14[%c1_65, %c2_66, %c0_67] : memref<12x36x128xf32, #tpu.memory_space<vmem>>, vector<1x32x128xf32>
    %66 = vector.shape_cast %65 : vector<1x32x128xf32> to vector<32x128xf32>
    %67 = vector.broadcast %10 : f32 to vector<32x128xf32>
    %68 = arith.mulf %67, %56 : vector<32x128xf32>
    %69 = arith.addf %66, %68 : vector<32x128xf32>
    %c1_68 = arith.constant 1 : index
    %c2_69 = arith.constant 2 : index
    %c0_70 = arith.constant 0 : index
    %70 = vector.load %arg14[%c1_68, %c2_69, %c0_70] : memref<12x36x128xf32, #tpu.memory_space<vmem>>, vector<1x32x128xf32>
    %71 = vector.shape_cast %70 : vector<1x32x128xf32> to vector<32x128xf32>
    %72 = vector.shape_cast %69 : vector<32x128xf32> to vector<1x32x128xf32>
    tpu.vector_store %arg14[%c1_68, %c2_69, %c0_70], %72 {strides = array<i32>} : memref<12x36x128xf32, #tpu.memory_space<vmem>>, vector<1x32x128xf32>,
    %c3 = arith.constant 3 : index
    %c0_71 = arith.constant 0 : index
    %c0_72 = arith.constant 0 : index
    %73 = vector.load %arg13[%c3, %c0_71, %c0_72] : memref<8x32x128xf32, #tpu.memory_space<vmem>>, vector<1x32x128xf32>
    %74 = vector.shape_cast %73 : vector<1x32x128xf32> to vector<32x128xf32>
    %cst_73 = arith.constant 2.500000e-01 : f32
    %75 = vector.broadcast %cst_73 : f32 to vector<32x128xf32>
    %76 = arith.mulf %75, %44 : vector<32x128xf32>
    %cst_74 = arith.constant 7.500000e-01 : f32
    %77 = vector.broadcast %cst_74 : f32 to vector<32x128xf32>
    %78 = arith.mulf %77, %46 : vector<32x128xf32>
    %79 = arith.addf %76, %78 : vector<32x128xf32>
    %cst_75 = arith.constant 7.500000e-01 : f32
    %80 = vector.broadcast %cst_75 : f32 to vector<32x128xf32>
    %81 = arith.mulf %80, %46 : vector<32x128xf32>
    %cst_76 = arith.constant 2.500000e-01 : f32
    %82 = vector.broadcast %cst_76 : f32 to vector<32x128xf32>
    %83 = arith.mulf %82, %74 : vector<32x128xf32>
    %84 = arith.addf %81, %83 : vector<32x128xf32>
    %c2_77 = arith.constant 2 : index
    %c2_78 = arith.constant 2 : index
    %c0_79 = arith.constant 0 : index
    %85 = vector.load %arg14[%c2_77, %c2_78, %c0_79] : memref<12x36x128xf32, #tpu.memory_space<vmem>>, vector<1x32x128xf32>
    %86 = vector.shape_cast %85 : vector<1x32x128xf32> to vector<32x128xf32>
    %87 = vector.broadcast %10 : f32 to vector<32x128xf32>
    %88 = arith.mulf %87, %79 : vector<32x128xf32>
    %89 = arith.addf %86, %88 : vector<32x128xf32>
    %c2_80 = arith.constant 2 : index
    %c2_81 = arith.constant 2 : index
    %c0_82 = arith.constant 0 : index
    %90 = vector.load %arg14[%c2_80, %c2_81, %c0_82] : memref<12x36x128xf32, #tpu.memory_space<vmem>>, vector<1x32x128xf32>
    %91 = vector.shape_cast %90 : vector<1x32x128xf32> to vector<32x128xf32>
    %92 = vector.shape_cast %89 : vector<32x128xf32> to vector<1x32x128xf32>
    tpu.vector_store %arg14[%c2_80, %c2_81, %c0_82], %92 {strides = array<i32>} : memref<12x36x128xf32, #tpu.memory_space<vmem>>, vector<1x32x128xf32>,
    %c3_83 = arith.constant 3 : index
    %c2_84 = arith.constant 2 : index
    %c0_85 = arith.constant 0 : index
    %93 = vector.load %arg14[%c3_83, %c2_84, %c0_85] : memref<12x36x128xf32, #tpu.memory_space<vmem>>, vector<1x32x128xf32>
    %94 = vector.shape_cast %93 : vector<1x32x128xf32> to vector<32x128xf32>
    %95 = vector.broadcast %10 : f32 to vector<32x128xf32>
    %96 = arith.mulf %95, %84 : vector<32x128xf32>
    %97 = arith.addf %94, %96 : vector<32x128xf32>
    %c3_86 = arith.constant 3 : index
    %c2_87 = arith.constant 2 : index
    %c0_88 = arith.constant 0 : index
    %98 = vector.load %arg14[%c3_86, %c2_87, %c0_88] : memref<12x36x128xf32, #tpu.memory_space<vmem>>, vector<1x32x128xf32>
    %99 = vector.shape_cast %98 : vector<1x32x128xf32> to vector<32x128xf32>
    %100 = vector.shape_cast %97 : vector<32x128xf32> to vector<1x32x128xf32>
    tpu.vector_store %arg14[%c3_86, %c2_87, %c0_88], %100 {strides = array<i32>} : memref<12x36x128xf32, #tpu.memory_space<vmem>>, vector<1x32x128xf32>,
    %c4 = arith.constant 4 : index
    %c0_89 = arith.constant 0 : index
    %c0_90 = arith.constant 0 : index
    %101 = vector.load %arg13[%c4, %c0_89, %c0_90] : memref<8x32x128xf32, #tpu.memory_space<vmem>>, vector<1x32x128xf32>
    %102 = vector.shape_cast %101 : vector<1x32x128xf32> to vector<32x128xf32>
    %cst_91 = arith.constant 2.500000e-01 : f32
    %103 = vector.broadcast %cst_91 : f32 to vector<32x128xf32>
    %104 = arith.mulf %103, %46 : vector<32x128xf32>
    %cst_92 = arith.constant 7.500000e-01 : f32
    %105 = vector.broadcast %cst_92 : f32 to vector<32x128xf32>
    %106 = arith.mulf %105, %74 : vector<32x128xf32>
    %107 = arith.addf %104, %106 : vector<32x128xf32>
    %cst_93 = arith.constant 7.500000e-01 : f32
    %108 = vector.broadcast %cst_93 : f32 to vector<32x128xf32>
    %109 = arith.mulf %108, %74 : vector<32x128xf32>
    %cst_94 = arith.constant 2.500000e-01 : f32
    %110 = vector.broadcast %cst_94 : f32 to vector<32x128xf32>
    %111 = arith.mulf %110, %102 : vector<32x128xf32>
    %112 = arith.addf %109, %111 : vector<32x128xf32>
    %c4_95 = arith.constant 4 : index
    %c2_96 = arith.constant 2 : index
    %c0_97 = arith.constant 0 : index
    %113 = vector.load %arg14[%c4_95, %c2_96, %c0_97] : memref<12x36x128xf32, #tpu.memory_space<vmem>>, vector<1x32x128xf32>
    %114 = vector.shape_cast %113 : vector<1x32x128xf32> to vector<32x128xf32>
    %115 = vector.broadcast %10 : f32 to vector<32x128xf32>
    %116 = arith.mulf %115, %107 : vector<32x128xf32>
    %117 = arith.addf %114, %116 : vector<32x128xf32>
    %c4_98 = arith.constant 4 : index
    %c2_99 = arith.constant 2 : index
    %c0_100 = arith.constant 0 : index
    %118 = vector.load %arg14[%c4_98, %c2_99, %c0_100] : memref<12x36x128xf32, #tpu.memory_space<vmem>>, vector<1x32x128xf32>
    %119 = vector.shape_cast %118 : vector<1x32x128xf32> to vector<32x128xf32>
    %120 = vector.shape_cast %117 : vector<32x128xf32> to vector<1x32x128xf32>
    tpu.vector_store %arg14[%c4_98, %c2_99, %c0_100], %120 {strides = array<i32>} : memref<12x36x128xf32, #tpu.memory_space<vmem>>, vector<1x32x128xf32>,
    %c5 = arith.constant 5 : index
    %c2_101 = arith.constant 2 : index
    %c0_102 = arith.constant 0 : index
    %121 = vector.load %arg14[%c5, %c2_101, %c0_102] : memref<12x36x128xf32, #tpu.memory_space<vmem>>, vector<1x32x128xf32>
    %122 = vector.shape_cast %121 : vector<1x32x128xf32> to vector<32x128xf32>
    %123 = vector.broadcast %10 : f32 to vector<32x128xf32>
    %124 = arith.mulf %123, %112 : vector<32x128xf32>
    %125 = arith.addf %122, %124 : vector<32x128xf32>
    %c5_103 = arith.constant 5 : index
    %c2_104 = arith.constant 2 : index
    %c0_105 = arith.constant 0 : index
    %126 = vector.load %arg14[%c5_103, %c2_104, %c0_105] : memref<12x36x128xf32, #tpu.memory_space<vmem>>, vector<1x32x128xf32>
    %127 = vector.shape_cast %126 : vector<1x32x128xf32> to vector<32x128xf32>
    %128 = vector.shape_cast %125 : vector<32x128xf32> to vector<1x32x128xf32>
    tpu.vector_store %arg14[%c5_103, %c2_104, %c0_105], %128 {strides = array<i32>} : memref<12x36x128xf32, #tpu.memory_space<vmem>>, vector<1x32x128xf32>,
    %c5_106 = arith.constant 5 : index
    %c0_107 = arith.constant 0 : index
    %c0_108 = arith.constant 0 : index
    %129 = vector.load %arg13[%c5_106, %c0_107, %c0_108] : memref<8x32x128xf32, #tpu.memory_space<vmem>>, vector<1x32x128xf32>
    %130 = vector.shape_cast %129 : vector<1x32x128xf32> to vector<32x128xf32>
    %cst_109 = arith.constant 2.500000e-01 : f32
    %131 = vector.broadcast %cst_109 : f32 to vector<32x128xf32>
    %132 = arith.mulf %131, %74 : vector<32x128xf32>
    %cst_110 = arith.constant 7.500000e-01 : f32
    %133 = vector.broadcast %cst_110 : f32 to vector<32x128xf32>
    %134 = arith.mulf %133, %102 : vector<32x128xf32>
    %135 = arith.addf %132, %134 : vector<32x128xf32>
    %cst_111 = arith.constant 7.500000e-01 : f32
    %136 = vector.broadcast %cst_111 : f32 to vector<32x128xf32>
    %137 = arith.mulf %136, %102 : vector<32x128xf32>
    %cst_112 = arith.constant 2.500000e-01 : f32
    %138 = vector.broadcast %cst_112 : f32 to vector<32x128xf32>
    %139 = arith.mulf %138, %130 : vector<32x128xf32>
    %140 = arith.addf %137, %139 : vector<32x128xf32>
    %c6_113 = arith.constant 6 : index
    %c2_114 = arith.constant 2 : index
    %c0_115 = arith.constant 0 : index
    %141 = vector.load %arg14[%c6_113, %c2_114, %c0_115] : memref<12x36x128xf32, #tpu.memory_space<vmem>>, vector<1x32x128xf32>
    %142 = vector.shape_cast %141 : vector<1x32x128xf32> to vector<32x128xf32>
    %143 = vector.broadcast %10 : f32 to vector<32x128xf32>
    %144 = arith.mulf %143, %135 : vector<32x128xf32>
    %145 = arith.addf %142, %144 : vector<32x128xf32>
    %c6_116 = arith.constant 6 : index
    %c2_117 = arith.constant 2 : index
    %c0_118 = arith.constant 0 : index
    %146 = vector.load %arg14[%c6_116, %c2_117, %c0_118] : memref<12x36x128xf32, #tpu.memory_space<vmem>>, vector<1x32x128xf32>
    %147 = vector.shape_cast %146 : vector<1x32x128xf32> to vector<32x128xf32>
    %148 = vector.shape_cast %145 : vector<32x128xf32> to vector<1x32x128xf32>
    tpu.vector_store %arg14[%c6_116, %c2_117, %c0_118], %148 {strides = array<i32>} : memref<12x36x128xf32, #tpu.memory_space<vmem>>, vector<1x32x128xf32>,
    %c7 = arith.constant 7 : index
    %c2_119 = arith.constant 2 : index
    %c0_120 = arith.constant 0 : index
    %149 = vector.load %arg14[%c7, %c2_119, %c0_120] : memref<12x36x128xf32, #tpu.memory_space<vmem>>, vector<1x32x128xf32>
    %150 = vector.shape_cast %149 : vector<1x32x128xf32> to vector<32x128xf32>
    %151 = vector.broadcast %10 : f32 to vector<32x128xf32>
    %152 = arith.mulf %151, %140 : vector<32x128xf32>
    %153 = arith.addf %150, %152 : vector<32x128xf32>
    %c7_121 = arith.constant 7 : index
    %c2_122 = arith.constant 2 : index
    %c0_123 = arith.constant 0 : index
    %154 = vector.load %arg14[%c7_121, %c2_122, %c0_123] : memref<12x36x128xf32, #tpu.memory_space<vmem>>, vector<1x32x128xf32>
    %155 = vector.shape_cast %154 : vector<1x32x128xf32> to vector<32x128xf32>
    %156 = vector.shape_cast %153 : vector<32x128xf32> to vector<1x32x128xf32>
    tpu.vector_store %arg14[%c7_121, %c2_122, %c0_123], %156 {strides = array<i32>} : memref<12x36x128xf32, #tpu.memory_space<vmem>>, vector<1x32x128xf32>,
    %c6_124 = arith.constant 6 : index
    %c0_125 = arith.constant 0 : index
    %c0_126 = arith.constant 0 : index
    %157 = vector.load %arg13[%c6_124, %c0_125, %c0_126] : memref<8x32x128xf32, #tpu.memory_space<vmem>>, vector<1x32x128xf32>
    %158 = vector.shape_cast %157 : vector<1x32x128xf32> to vector<32x128xf32>
    %cst_127 = arith.constant 2.500000e-01 : f32
    %159 = vector.broadcast %cst_127 : f32 to vector<32x128xf32>
    %160 = arith.mulf %159, %102 : vector<32x128xf32>
    %cst_128 = arith.constant 7.500000e-01 : f32
    %161 = vector.broadcast %cst_128 : f32 to vector<32x128xf32>
    %162 = arith.mulf %161, %130 : vector<32x128xf32>
    %163 = arith.addf %160, %162 : vector<32x128xf32>
    %cst_129 = arith.constant 7.500000e-01 : f32
    %164 = vector.broadcast %cst_129 : f32 to vector<32x128xf32>
    %165 = arith.mulf %164, %130 : vector<32x128xf32>
    %cst_130 = arith.constant 2.500000e-01 : f32
    %166 = vector.broadcast %cst_130 : f32 to vector<32x128xf32>
    %167 = arith.mulf %166, %158 : vector<32x128xf32>
    %168 = arith.addf %165, %167 : vector<32x128xf32>
    %c8 = arith.constant 8 : index
    %c2_131 = arith.constant 2 : index
    %c0_132 = arith.constant 0 : index
    %169 = vector.load %arg14[%c8, %c2_131, %c0_132] : memref<12x36x128xf32, #tpu.memory_space<vmem>>, vector<1x32x128xf32>
    %170 = vector.shape_cast %169 : vector<1x32x128xf32> to vector<32x128xf32>
    %171 = vector.broadcast %10 : f32 to vector<32x128xf32>
    %172 = arith.mulf %171, %163 : vector<32x128xf32>
    %173 = arith.addf %170, %172 : vector<32x128xf32>
    %c8_133 = arith.constant 8 : index
    %c2_134 = arith.constant 2 : index
    %c0_135 = arith.constant 0 : index
    %174 = vector.load %arg14[%c8_133, %c2_134, %c0_135] : memref<12x36x128xf32, #tpu.memory_space<vmem>>, vector<1x32x128xf32>
    %175 = vector.shape_cast %174 : vector<1x32x128xf32> to vector<32x128xf32>
    %176 = vector.shape_cast %173 : vector<32x128xf32> to vector<1x32x128xf32>
    tpu.vector_store %arg14[%c8_133, %c2_134, %c0_135], %176 {strides = array<i32>} : memref<12x36x128xf32, #tpu.memory_space<vmem>>, vector<1x32x128xf32>,
    %c9 = arith.constant 9 : index
    %c2_136 = arith.constant 2 : index
    %c0_137 = arith.constant 0 : index
    %177 = vector.load %arg14[%c9, %c2_136, %c0_137] : memref<12x36x128xf32, #tpu.memory_space<vmem>>, vector<1x32x128xf32>
    %178 = vector.shape_cast %177 : vector<1x32x128xf32> to vector<32x128xf32>
    %179 = vector.broadcast %10 : f32 to vector<32x128xf32>
    %180 = arith.mulf %179, %168 : vector<32x128xf32>
    %181 = arith.addf %178, %180 : vector<32x128xf32>
    %c9_138 = arith.constant 9 : index
    %c2_139 = arith.constant 2 : index
    %c0_140 = arith.constant 0 : index
    %182 = vector.load %arg14[%c9_138, %c2_139, %c0_140] : memref<12x36x128xf32, #tpu.memory_space<vmem>>, vector<1x32x128xf32>
    %183 = vector.shape_cast %182 : vector<1x32x128xf32> to vector<32x128xf32>
    %184 = vector.shape_cast %181 : vector<32x128xf32> to vector<1x32x128xf32>
    tpu.vector_store %arg14[%c9_138, %c2_139, %c0_140], %184 {strides = array<i32>} : memref<12x36x128xf32, #tpu.memory_space<vmem>>, vector<1x32x128xf32>,
    %c7_141 = arith.constant 7 : index
    %c0_142 = arith.constant 0 : index
    %c0_143 = arith.constant 0 : index
    %185 = vector.load %arg13[%c7_141, %c0_142, %c0_143] : memref<8x32x128xf32, #tpu.memory_space<vmem>>, vector<1x32x128xf32>
    %186 = vector.shape_cast %185 : vector<1x32x128xf32> to vector<32x128xf32>
    %cst_144 = arith.constant 2.500000e-01 : f32
    %187 = vector.broadcast %cst_144 : f32 to vector<32x128xf32>
    %188 = arith.mulf %187, %130 : vector<32x128xf32>
    %cst_145 = arith.constant 7.500000e-01 : f32
    %189 = vector.broadcast %cst_145 : f32 to vector<32x128xf32>
    %190 = arith.mulf %189, %158 : vector<32x128xf32>
    %191 = arith.addf %188, %190 : vector<32x128xf32>
    %cst_146 = arith.constant 7.500000e-01 : f32
    %192 = vector.broadcast %cst_146 : f32 to vector<32x128xf32>
    %193 = arith.mulf %192, %158 : vector<32x128xf32>
    %cst_147 = arith.constant 2.500000e-01 : f32
    %194 = vector.broadcast %cst_147 : f32 to vector<32x128xf32>
    %195 = arith.mulf %194, %186 : vector<32x128xf32>
    %196 = arith.addf %193, %195 : vector<32x128xf32>
    %c10_148 = arith.constant 10 : index
    %c2_149 = arith.constant 2 : index
    %c0_150 = arith.constant 0 : index
    %197 = vector.load %arg14[%c10_148, %c2_149, %c0_150] : memref<12x36x128xf32, #tpu.memory_space<vmem>>, vector<1x32x128xf32>
    %198 = vector.shape_cast %197 : vector<1x32x128xf32> to vector<32x128xf32>
    %199 = vector.broadcast %10 : f32 to vector<32x128xf32>
    %200 = arith.mulf %199, %191 : vector<32x128xf32>
    %201 = arith.addf %198, %200 : vector<32x128xf32>
    %c10_151 = arith.constant 10 : index
    %c2_152 = arith.constant 2 : index
    %c0_153 = arith.constant 0 : index
    %202 = vector.load %arg14[%c10_151, %c2_152, %c0_153] : memref<12x36x128xf32, #tpu.memory_space<vmem>>, vector<1x32x128xf32>
    %203 = vector.shape_cast %202 : vector<1x32x128xf32> to vector<32x128xf32>
    %204 = vector.shape_cast %201 : vector<32x128xf32> to vector<1x32x128xf32>
    tpu.vector_store %arg14[%c10_151, %c2_152, %c0_153], %204 {strides = array<i32>} : memref<12x36x128xf32, #tpu.memory_space<vmem>>, vector<1x32x128xf32>,
    %c11 = arith.constant 11 : index
    %c2_154 = arith.constant 2 : index
    %c0_155 = arith.constant 0 : index
    %205 = vector.load %arg14[%c11, %c2_154, %c0_155] : memref<12x36x128xf32, #tpu.memory_space<vmem>>, vector<1x32x128xf32>
    %206 = vector.shape_cast %205 : vector<1x32x128xf32> to vector<32x128xf32>
    %207 = vector.broadcast %10 : f32 to vector<32x128xf32>
    %208 = arith.mulf %207, %196 : vector<32x128xf32>
    %209 = arith.addf %206, %208 : vector<32x128xf32>
    %c11_156 = arith.constant 11 : index
    %c2_157 = arith.constant 2 : index
    %c0_158 = arith.constant 0 : index
    %210 = vector.load %arg14[%c11_156, %c2_157, %c0_158] : memref<12x36x128xf32, #tpu.memory_space<vmem>>, vector<1x32x128xf32>
    %211 = vector.shape_cast %210 : vector<1x32x128xf32> to vector<32x128xf32>
    %212 = vector.shape_cast %209 : vector<32x128xf32> to vector<1x32x128xf32>
    tpu.vector_store %arg14[%c11_156, %c2_157, %c0_158], %212 {strides = array<i32>} : memref<12x36x128xf32, #tpu.memory_space<vmem>>, vector<1x32x128xf32>,
    %cst_159 = arith.constant 0.000000e+00 : f32
    %213 = vector.broadcast %cst_159 : f32 to vector<12x2x128xf32>
    %c0_160 = arith.constant 0 : index
    %c0_161 = arith.constant 0 : index
    %c0_162 = arith.constant 0 : index
    %214 = vector.load %arg14[%c0_160, %c0_161, %c0_162] : memref<12x36x128xf32, #tpu.memory_space<vmem>>, vector<12x2x128xf32>
    tpu.vector_store %arg14[%c0_160, %c0_161, %c0_162], %213 {strides = array<i32>} : memref<12x36x128xf32, #tpu.memory_space<vmem>>, vector<12x2x128xf32>,
    %cst_163 = arith.constant 0.000000e+00 : f32
    %215 = vector.broadcast %cst_163 : f32 to vector<12x2x128xf32>
    %c0_164 = arith.constant 0 : index
    %c34 = arith.constant 34 : index
    %c0_165 = arith.constant 0 : index
    %216 = vector.load %arg14[%c0_164, %c34, %c0_165] : memref<12x36x128xf32, #tpu.memory_space<vmem>>, vector<12x2x128xf32>
    tpu.vector_store %arg14[%c0_164, %c34, %c0_165], %215 {strides = array<i32>} : memref<12x36x128xf32, #tpu.memory_space<vmem>>, vector<12x2x128xf32>,
    %c0_i32_166 = arith.constant 0 : i32
    %217 = arith.cmpi eq, %arg1, %c0_i32_166 : i32
    %218 = arith.extui %217 : i1 to i32
    %c0_i32_167 = arith.constant 0 : i32
    %219 = arith.cmpi ne, %218, %c0_i32_167 : i32
    scf.if %219 {
      %cst_294 = arith.constant 0.000000e+00 : f32
      %415 = vector.broadcast %cst_294 : f32 to vector<2x36x128xf32>
      %c0_295 = arith.constant 0 : index
      %c0_296 = arith.constant 0 : index
      %c0_297 = arith.constant 0 : index
      %416 = vector.load %arg14[%c0_295, %c0_296, %c0_297] : memref<12x36x128xf32, #tpu.memory_space<vmem>>, vector<2x36x128xf32>
      tpu.vector_store %arg14[%c0_295, %c0_296, %c0_297], %415 {strides = array<i32>} : memref<12x36x128xf32, #tpu.memory_space<vmem>>, vector<2x36x128xf32>,
    } else {
    }
    %c3_i32_168 = arith.constant 3 : i32
    %220 = arith.cmpi eq, %arg1, %c3_i32_168 : i32
    %221 = arith.extui %220 : i1 to i32
    %c0_i32_169 = arith.constant 0 : i32
    %222 = arith.cmpi ne, %221, %c0_i32_169 : i32
    scf.if %222 {
      %cst_294 = arith.constant 0.000000e+00 : f32
      %415 = vector.broadcast %cst_294 : f32 to vector<2x36x128xf32>
      %c10_295 = arith.constant 10 : index
      %c0_296 = arith.constant 0 : index
      %c0_297 = arith.constant 0 : index
      %416 = vector.load %arg14[%c10_295, %c0_296, %c0_297] : memref<12x36x128xf32, #tpu.memory_space<vmem>>, vector<2x36x128xf32>
      tpu.vector_store %arg14[%c10_295, %c0_296, %c0_297], %415 {strides = array<i32>} : memref<12x36x128xf32, #tpu.memory_space<vmem>>, vector<2x36x128xf32>,
    } else {
    }
    %cst_170 = arith.constant 0.000000e+00 : f32
    %223 = vector.broadcast %cst_170 : f32 to vector<8x32x128xf32>
    %c0_171 = arith.constant 0 : index
    %c0_172 = arith.constant 0 : index
    %224 = vector.load %arg9[%c0_171, %c0_172] : memref<25x128xf32, #tpu.memory_space<vmem>>, vector<1x128xf32>
    %225 = vector.shape_cast %224 : vector<1x128xf32> to vector<128xf32>
    %c0_173 = arith.constant 0 : index
    %c0_174 = arith.constant 0 : index
    %c0_175 = arith.constant 0 : index
    %226 = vector.load %arg14[%c0_173, %c0_174, %c0_175] : memref<12x36x128xf32, #tpu.memory_space<vmem>>, vector<8x32x128xf32>
    %227 = vector.shape_cast %225 : vector<128xf32> to vector<1x1x128xf32>
    %228 = vector.broadcast %227 : vector<1x1x128xf32> to vector<8x32x128xf32>
    %229 = arith.mulf %228, %226 : vector<8x32x128xf32>
    %230 = arith.addf %223, %229 : vector<8x32x128xf32>
    %c1_176 = arith.constant 1 : index
    %c0_177 = arith.constant 0 : index
    %231 = vector.load %arg9[%c1_176, %c0_177] : memref<25x128xf32, #tpu.memory_space<vmem>>, vector<1x128xf32>
    %232 = vector.shape_cast %231 : vector<1x128xf32> to vector<128xf32>
    %c0_178 = arith.constant 0 : index
    %c1_179 = arith.constant 1 : index
    %c0_180 = arith.constant 0 : index
    %233 = vector.load %arg14[%c0_178, %c1_179, %c0_180] : memref<12x36x128xf32, #tpu.memory_space<vmem>>, vector<8x32x128xf32>
    %234 = vector.shape_cast %232 : vector<128xf32> to vector<1x1x128xf32>
    %235 = vector.broadcast %234 : vector<1x1x128xf32> to vector<8x32x128xf32>
    %236 = arith.mulf %235, %233 : vector<8x32x128xf32>
    %237 = arith.addf %230, %236 : vector<8x32x128xf32>
    %c2_181 = arith.constant 2 : index
    %c0_182 = arith.constant 0 : index
    %238 = vector.load %arg9[%c2_181, %c0_182] : memref<25x128xf32, #tpu.memory_space<vmem>>, vector<1x128xf32>
    %239 = vector.shape_cast %238 : vector<1x128xf32> to vector<128xf32>
    %c0_183 = arith.constant 0 : index
    %c2_184 = arith.constant 2 : index
    %c0_185 = arith.constant 0 : index
    %240 = vector.load %arg14[%c0_183, %c2_184, %c0_185] : memref<12x36x128xf32, #tpu.memory_space<vmem>>, vector<8x32x128xf32>
    %241 = vector.shape_cast %239 : vector<128xf32> to vector<1x1x128xf32>
    %242 = vector.broadcast %241 : vector<1x1x128xf32> to vector<8x32x128xf32>
    %243 = arith.mulf %242, %240 : vector<8x32x128xf32>
    %244 = arith.addf %237, %243 : vector<8x32x128xf32>
    %c3_186 = arith.constant 3 : index
    %c0_187 = arith.constant 0 : index
    %245 = vector.load %arg9[%c3_186, %c0_187] : memref<25x128xf32, #tpu.memory_space<vmem>>, vector<1x128xf32>
    %246 = vector.shape_cast %245 : vector<1x128xf32> to vector<128xf32>
    %c0_188 = arith.constant 0 : index
    %c3_189 = arith.constant 3 : index
    %c0_190 = arith.constant 0 : index
    %247 = vector.load %arg14[%c0_188, %c3_189, %c0_190] : memref<12x36x128xf32, #tpu.memory_space<vmem>>, vector<8x32x128xf32>
    %248 = vector.shape_cast %246 : vector<128xf32> to vector<1x1x128xf32>
    %249 = vector.broadcast %248 : vector<1x1x128xf32> to vector<8x32x128xf32>
    %250 = arith.mulf %249, %247 : vector<8x32x128xf32>
    %251 = arith.addf %244, %250 : vector<8x32x128xf32>
    %c4_191 = arith.constant 4 : index
    %c0_192 = arith.constant 0 : index
    %252 = vector.load %arg9[%c4_191, %c0_192] : memref<25x128xf32, #tpu.memory_space<vmem>>, vector<1x128xf32>
    %253 = vector.shape_cast %252 : vector<1x128xf32> to vector<128xf32>
    %c0_193 = arith.constant 0 : index
    %c4_194 = arith.constant 4 : index
    %c0_195 = arith.constant 0 : index
    %254 = vector.load %arg14[%c0_193, %c4_194, %c0_195] : memref<12x36x128xf32, #tpu.memory_space<vmem>>, vector<8x32x128xf32>
    %255 = vector.shape_cast %253 : vector<128xf32> to vector<1x1x128xf32>
    %256 = vector.broadcast %255 : vector<1x1x128xf32> to vector<8x32x128xf32>
    %257 = arith.mulf %256, %254 : vector<8x32x128xf32>
    %258 = arith.addf %251, %257 : vector<8x32x128xf32>
    %c5_196 = arith.constant 5 : index
    %c0_197 = arith.constant 0 : index
    %259 = vector.load %arg9[%c5_196, %c0_197] : memref<25x128xf32, #tpu.memory_space<vmem>>, vector<1x128xf32>
    %260 = vector.shape_cast %259 : vector<1x128xf32> to vector<128xf32>
    %c1_198 = arith.constant 1 : index
    %c0_199 = arith.constant 0 : index
    %c0_200 = arith.constant 0 : index
    %261 = vector.load %arg14[%c1_198, %c0_199, %c0_200] : memref<12x36x128xf32, #tpu.memory_space<vmem>>, vector<8x32x128xf32>
    %262 = vector.shape_cast %260 : vector<128xf32> to vector<1x1x128xf32>
    %263 = vector.broadcast %262 : vector<1x1x128xf32> to vector<8x32x128xf32>
    %264 = arith.mulf %263, %261 : vector<8x32x128xf32>
    %265 = arith.addf %258, %264 : vector<8x32x128xf32>
    %c6_201 = arith.constant 6 : index
    %c0_202 = arith.constant 0 : index
    %266 = vector.load %arg9[%c6_201, %c0_202] : memref<25x128xf32, #tpu.memory_space<vmem>>, vector<1x128xf32>
    %267 = vector.shape_cast %266 : vector<1x128xf32> to vector<128xf32>
    %c1_203 = arith.constant 1 : index
    %c1_204 = arith.constant 1 : index
    %c0_205 = arith.constant 0 : index
    %268 = vector.load %arg14[%c1_203, %c1_204, %c0_205] : memref<12x36x128xf32, #tpu.memory_space<vmem>>, vector<8x32x128xf32>
    %269 = vector.shape_cast %267 : vector<128xf32> to vector<1x1x128xf32>
    %270 = vector.broadcast %269 : vector<1x1x128xf32> to vector<8x32x128xf32>
    %271 = arith.mulf %270, %268 : vector<8x32x128xf32>
    %272 = arith.addf %265, %271 : vector<8x32x128xf32>
    %c7_206 = arith.constant 7 : index
    %c0_207 = arith.constant 0 : index
    %273 = vector.load %arg9[%c7_206, %c0_207] : memref<25x128xf32, #tpu.memory_space<vmem>>, vector<1x128xf32>
    %274 = vector.shape_cast %273 : vector<1x128xf32> to vector<128xf32>
    %c1_208 = arith.constant 1 : index
    %c2_209 = arith.constant 2 : index
    %c0_210 = arith.constant 0 : index
    %275 = vector.load %arg14[%c1_208, %c2_209, %c0_210] : memref<12x36x128xf32, #tpu.memory_space<vmem>>, vector<8x32x128xf32>
    %276 = vector.shape_cast %274 : vector<128xf32> to vector<1x1x128xf32>
    %277 = vector.broadcast %276 : vector<1x1x128xf32> to vector<8x32x128xf32>
    %278 = arith.mulf %277, %275 : vector<8x32x128xf32>
    %279 = arith.addf %272, %278 : vector<8x32x128xf32>
    %c8_211 = arith.constant 8 : index
    %c0_212 = arith.constant 0 : index
    %280 = vector.load %arg9[%c8_211, %c0_212] : memref<25x128xf32, #tpu.memory_space<vmem>>, vector<1x128xf32>
    %281 = vector.shape_cast %280 : vector<1x128xf32> to vector<128xf32>
    %c1_213 = arith.constant 1 : index
    %c3_214 = arith.constant 3 : index
    %c0_215 = arith.constant 0 : index
    %282 = vector.load %arg14[%c1_213, %c3_214, %c0_215] : memref<12x36x128xf32, #tpu.memory_space<vmem>>, vector<8x32x128xf32>
    %283 = vector.shape_cast %281 : vector<128xf32> to vector<1x1x128xf32>
    %284 = vector.broadcast %283 : vector<1x1x128xf32> to vector<8x32x128xf32>
    %285 = arith.mulf %284, %282 : vector<8x32x128xf32>
    %286 = arith.addf %279, %285 : vector<8x32x128xf32>
    %c9_216 = arith.constant 9 : index
    %c0_217 = arith.constant 0 : index
    %287 = vector.load %arg9[%c9_216, %c0_217] : memref<25x128xf32, #tpu.memory_space<vmem>>, vector<1x128xf32>
    %288 = vector.shape_cast %287 : vector<1x128xf32> to vector<128xf32>
    %c1_218 = arith.constant 1 : index
    %c4_219 = arith.constant 4 : index
    %c0_220 = arith.constant 0 : index
    %289 = vector.load %arg14[%c1_218, %c4_219, %c0_220] : memref<12x36x128xf32, #tpu.memory_space<vmem>>, vector<8x32x128xf32>
    %290 = vector.shape_cast %288 : vector<128xf32> to vector<1x1x128xf32>
    %291 = vector.broadcast %290 : vector<1x1x128xf32> to vector<8x32x128xf32>
    %292 = arith.mulf %291, %289 : vector<8x32x128xf32>
    %293 = arith.addf %286, %292 : vector<8x32x128xf32>
    %c10_221 = arith.constant 10 : index
    %c0_222 = arith.constant 0 : index
    %294 = vector.load %arg9[%c10_221, %c0_222] : memref<25x128xf32, #tpu.memory_space<vmem>>, vector<1x128xf32>
    %295 = vector.shape_cast %294 : vector<1x128xf32> to vector<128xf32>
    %c2_223 = arith.constant 2 : index
    %c0_224 = arith.constant 0 : index
    %c0_225 = arith.constant 0 : index
    %296 = vector.load %arg14[%c2_223, %c0_224, %c0_225] : memref<12x36x128xf32, #tpu.memory_space<vmem>>, vector<8x32x128xf32>
    %297 = vector.shape_cast %295 : vector<128xf32> to vector<1x1x128xf32>
    %298 = vector.broadcast %297 : vector<1x1x128xf32> to vector<8x32x128xf32>
    %299 = arith.mulf %298, %296 : vector<8x32x128xf32>
    %300 = arith.addf %293, %299 : vector<8x32x128xf32>
    %c11_226 = arith.constant 11 : index
    %c0_227 = arith.constant 0 : index
    %301 = vector.load %arg9[%c11_226, %c0_227] : memref<25x128xf32, #tpu.memory_space<vmem>>, vector<1x128xf32>
    %302 = vector.shape_cast %301 : vector<1x128xf32> to vector<128xf32>
    %c2_228 = arith.constant 2 : index
    %c1_229 = arith.constant 1 : index
    %c0_230 = arith.constant 0 : index
    %303 = vector.load %arg14[%c2_228, %c1_229, %c0_230] : memref<12x36x128xf32, #tpu.memory_space<vmem>>, vector<8x32x128xf32>
    %304 = vector.shape_cast %302 : vector<128xf32> to vector<1x1x128xf32>
    %305 = vector.broadcast %304 : vector<1x1x128xf32> to vector<8x32x128xf32>
    %306 = arith.mulf %305, %303 : vector<8x32x128xf32>
    %307 = arith.addf %300, %306 : vector<8x32x128xf32>
    %c12 = arith.constant 12 : index
    %c0_231 = arith.constant 0 : index
    %308 = vector.load %arg9[%c12, %c0_231] : memref<25x128xf32, #tpu.memory_space<vmem>>, vector<1x128xf32>
    %309 = vector.shape_cast %308 : vector<1x128xf32> to vector<128xf32>
    %c2_232 = arith.constant 2 : index
    %c2_233 = arith.constant 2 : index
    %c0_234 = arith.constant 0 : index
    %310 = vector.load %arg14[%c2_232, %c2_233, %c0_234] : memref<12x36x128xf32, #tpu.memory_space<vmem>>, vector<8x32x128xf32>
    %311 = vector.shape_cast %309 : vector<128xf32> to vector<1x1x128xf32>
    %312 = vector.broadcast %311 : vector<1x1x128xf32> to vector<8x32x128xf32>
    %313 = arith.mulf %312, %310 : vector<8x32x128xf32>
    %314 = arith.addf %307, %313 : vector<8x32x128xf32>
    %c13 = arith.constant 13 : index
    %c0_235 = arith.constant 0 : index
    %315 = vector.load %arg9[%c13, %c0_235] : memref<25x128xf32, #tpu.memory_space<vmem>>, vector<1x128xf32>
    %316 = vector.shape_cast %315 : vector<1x128xf32> to vector<128xf32>
    %c2_236 = arith.constant 2 : index
    %c3_237 = arith.constant 3 : index
    %c0_238 = arith.constant 0 : index
    %317 = vector.load %arg14[%c2_236, %c3_237, %c0_238] : memref<12x36x128xf32, #tpu.memory_space<vmem>>, vector<8x32x128xf32>
    %318 = vector.shape_cast %316 : vector<128xf32> to vector<1x1x128xf32>
    %319 = vector.broadcast %318 : vector<1x1x128xf32> to vector<8x32x128xf32>
    %320 = arith.mulf %319, %317 : vector<8x32x128xf32>
    %321 = arith.addf %314, %320 : vector<8x32x128xf32>
    %c14 = arith.constant 14 : index
    %c0_239 = arith.constant 0 : index
    %322 = vector.load %arg9[%c14, %c0_239] : memref<25x128xf32, #tpu.memory_space<vmem>>, vector<1x128xf32>
    %323 = vector.shape_cast %322 : vector<1x128xf32> to vector<128xf32>
    %c2_240 = arith.constant 2 : index
    %c4_241 = arith.constant 4 : index
    %c0_242 = arith.constant 0 : index
    %324 = vector.load %arg14[%c2_240, %c4_241, %c0_242] : memref<12x36x128xf32, #tpu.memory_space<vmem>>, vector<8x32x128xf32>
    %325 = vector.shape_cast %323 : vector<128xf32> to vector<1x1x128xf32>
    %326 = vector.broadcast %325 : vector<1x1x128xf32> to vector<8x32x128xf32>
    %327 = arith.mulf %326, %324 : vector<8x32x128xf32>
    %328 = arith.addf %321, %327 : vector<8x32x128xf32>
    %c15 = arith.constant 15 : index
    %c0_243 = arith.constant 0 : index
    %329 = vector.load %arg9[%c15, %c0_243] : memref<25x128xf32, #tpu.memory_space<vmem>>, vector<1x128xf32>
    %330 = vector.shape_cast %329 : vector<1x128xf32> to vector<128xf32>
    %c3_244 = arith.constant 3 : index
    %c0_245 = arith.constant 0 : index
    %c0_246 = arith.constant 0 : index
    %331 = vector.load %arg14[%c3_244, %c0_245, %c0_246] : memref<12x36x128xf32, #tpu.memory_space<vmem>>, vector<8x32x128xf32>
    %332 = vector.shape_cast %330 : vector<128xf32> to vector<1x1x128xf32>
    %333 = vector.broadcast %332 : vector<1x1x128xf32> to vector<8x32x128xf32>
    %334 = arith.mulf %333, %331 : vector<8x32x128xf32>
    %335 = arith.addf %328, %334 : vector<8x32x128xf32>
    %c16 = arith.constant 16 : index
    %c0_247 = arith.constant 0 : index
    %336 = vector.load %arg9[%c16, %c0_247] : memref<25x128xf32, #tpu.memory_space<vmem>>, vector<1x128xf32>
    %337 = vector.shape_cast %336 : vector<1x128xf32> to vector<128xf32>
    %c3_248 = arith.constant 3 : index
    %c1_249 = arith.constant 1 : index
    %c0_250 = arith.constant 0 : index
    %338 = vector.load %arg14[%c3_248, %c1_249, %c0_250] : memref<12x36x128xf32, #tpu.memory_space<vmem>>, vector<8x32x128xf32>
    %339 = vector.shape_cast %337 : vector<128xf32> to vector<1x1x128xf32>
    %340 = vector.broadcast %339 : vector<1x1x128xf32> to vector<8x32x128xf32>
    %341 = arith.mulf %340, %338 : vector<8x32x128xf32>
    %342 = arith.addf %335, %341 : vector<8x32x128xf32>
    %c17 = arith.constant 17 : index
    %c0_251 = arith.constant 0 : index
    %343 = vector.load %arg9[%c17, %c0_251] : memref<25x128xf32, #tpu.memory_space<vmem>>, vector<1x128xf32>
    %344 = vector.shape_cast %343 : vector<1x128xf32> to vector<128xf32>
    %c3_252 = arith.constant 3 : index
    %c2_253 = arith.constant 2 : index
    %c0_254 = arith.constant 0 : index
    %345 = vector.load %arg14[%c3_252, %c2_253, %c0_254] : memref<12x36x128xf32, #tpu.memory_space<vmem>>, vector<8x32x128xf32>
    %346 = vector.shape_cast %344 : vector<128xf32> to vector<1x1x128xf32>
    %347 = vector.broadcast %346 : vector<1x1x128xf32> to vector<8x32x128xf32>
    %348 = arith.mulf %347, %345 : vector<8x32x128xf32>
    %349 = arith.addf %342, %348 : vector<8x32x128xf32>
    %c18 = arith.constant 18 : index
    %c0_255 = arith.constant 0 : index
    %350 = vector.load %arg9[%c18, %c0_255] : memref<25x128xf32, #tpu.memory_space<vmem>>, vector<1x128xf32>
    %351 = vector.shape_cast %350 : vector<1x128xf32> to vector<128xf32>
    %c3_256 = arith.constant 3 : index
    %c3_257 = arith.constant 3 : index
    %c0_258 = arith.constant 0 : index
    %352 = vector.load %arg14[%c3_256, %c3_257, %c0_258] : memref<12x36x128xf32, #tpu.memory_space<vmem>>, vector<8x32x128xf32>
    %353 = vector.shape_cast %351 : vector<128xf32> to vector<1x1x128xf32>
    %354 = vector.broadcast %353 : vector<1x1x128xf32> to vector<8x32x128xf32>
    %355 = arith.mulf %354, %352 : vector<8x32x128xf32>
    %356 = arith.addf %349, %355 : vector<8x32x128xf32>
    %c19 = arith.constant 19 : index
    %c0_259 = arith.constant 0 : index
    %357 = vector.load %arg9[%c19, %c0_259] : memref<25x128xf32, #tpu.memory_space<vmem>>, vector<1x128xf32>
    %358 = vector.shape_cast %357 : vector<1x128xf32> to vector<128xf32>
    %c3_260 = arith.constant 3 : index
    %c4_261 = arith.constant 4 : index
    %c0_262 = arith.constant 0 : index
    %359 = vector.load %arg14[%c3_260, %c4_261, %c0_262] : memref<12x36x128xf32, #tpu.memory_space<vmem>>, vector<8x32x128xf32>
    %360 = vector.shape_cast %358 : vector<128xf32> to vector<1x1x128xf32>
    %361 = vector.broadcast %360 : vector<1x1x128xf32> to vector<8x32x128xf32>
    %362 = arith.mulf %361, %359 : vector<8x32x128xf32>
    %363 = arith.addf %356, %362 : vector<8x32x128xf32>
    %c20 = arith.constant 20 : index
    %c0_263 = arith.constant 0 : index
    %364 = vector.load %arg9[%c20, %c0_263] : memref<25x128xf32, #tpu.memory_space<vmem>>, vector<1x128xf32>
    %365 = vector.shape_cast %364 : vector<1x128xf32> to vector<128xf32>
    %c4_264 = arith.constant 4 : index
    %c0_265 = arith.constant 0 : index
    %c0_266 = arith.constant 0 : index
    %366 = vector.load %arg14[%c4_264, %c0_265, %c0_266] : memref<12x36x128xf32, #tpu.memory_space<vmem>>, vector<8x32x128xf32>
    %367 = vector.shape_cast %365 : vector<128xf32> to vector<1x1x128xf32>
    %368 = vector.broadcast %367 : vector<1x1x128xf32> to vector<8x32x128xf32>
    %369 = arith.mulf %368, %366 : vector<8x32x128xf32>
    %370 = arith.addf %363, %369 : vector<8x32x128xf32>
    %c21 = arith.constant 21 : index
    %c0_267 = arith.constant 0 : index
    %371 = vector.load %arg9[%c21, %c0_267] : memref<25x128xf32, #tpu.memory_space<vmem>>, vector<1x128xf32>
    %372 = vector.shape_cast %371 : vector<1x128xf32> to vector<128xf32>
    %c4_268 = arith.constant 4 : index
    %c1_269 = arith.constant 1 : index
    %c0_270 = arith.constant 0 : index
    %373 = vector.load %arg14[%c4_268, %c1_269, %c0_270] : memref<12x36x128xf32, #tpu.memory_space<vmem>>, vector<8x32x128xf32>
    %374 = vector.shape_cast %372 : vector<128xf32> to vector<1x1x128xf32>
    %375 = vector.broadcast %374 : vector<1x1x128xf32> to vector<8x32x128xf32>
    %376 = arith.mulf %375, %373 : vector<8x32x128xf32>
    %377 = arith.addf %370, %376 : vector<8x32x128xf32>
    %c22 = arith.constant 22 : index
    %c0_271 = arith.constant 0 : index
    %378 = vector.load %arg9[%c22, %c0_271] : memref<25x128xf32, #tpu.memory_space<vmem>>, vector<1x128xf32>
    %379 = vector.shape_cast %378 : vector<1x128xf32> to vector<128xf32>
    %c4_272 = arith.constant 4 : index
    %c2_273 = arith.constant 2 : index
    %c0_274 = arith.constant 0 : index
    %380 = vector.load %arg14[%c4_272, %c2_273, %c0_274] : memref<12x36x128xf32, #tpu.memory_space<vmem>>, vector<8x32x128xf32>
    %381 = vector.shape_cast %379 : vector<128xf32> to vector<1x1x128xf32>
    %382 = vector.broadcast %381 : vector<1x1x128xf32> to vector<8x32x128xf32>
    %383 = arith.mulf %382, %380 : vector<8x32x128xf32>
    %384 = arith.addf %377, %383 : vector<8x32x128xf32>
    %c23 = arith.constant 23 : index
    %c0_275 = arith.constant 0 : index
    %385 = vector.load %arg9[%c23, %c0_275] : memref<25x128xf32, #tpu.memory_space<vmem>>, vector<1x128xf32>
    %386 = vector.shape_cast %385 : vector<1x128xf32> to vector<128xf32>
    %c4_276 = arith.constant 4 : index
    %c3_277 = arith.constant 3 : index
    %c0_278 = arith.constant 0 : index
    %387 = vector.load %arg14[%c4_276, %c3_277, %c0_278] : memref<12x36x128xf32, #tpu.memory_space<vmem>>, vector<8x32x128xf32>
    %388 = vector.shape_cast %386 : vector<128xf32> to vector<1x1x128xf32>
    %389 = vector.broadcast %388 : vector<1x1x128xf32> to vector<8x32x128xf32>
    %390 = arith.mulf %389, %387 : vector<8x32x128xf32>
    %391 = arith.addf %384, %390 : vector<8x32x128xf32>
    %c24 = arith.constant 24 : index
    %c0_279 = arith.constant 0 : index
    %392 = vector.load %arg9[%c24, %c0_279] : memref<25x128xf32, #tpu.memory_space<vmem>>, vector<1x128xf32>
    %393 = vector.shape_cast %392 : vector<1x128xf32> to vector<128xf32>
    %c4_280 = arith.constant 4 : index
    %c4_281 = arith.constant 4 : index
    %c0_282 = arith.constant 0 : index
    %394 = vector.load %arg14[%c4_280, %c4_281, %c0_282] : memref<12x36x128xf32, #tpu.memory_space<vmem>>, vector<8x32x128xf32>
    %395 = vector.shape_cast %393 : vector<128xf32> to vector<1x1x128xf32>
    %396 = vector.broadcast %395 : vector<1x1x128xf32> to vector<8x32x128xf32>
    %397 = arith.mulf %396, %394 : vector<8x32x128xf32>
    %398 = arith.addf %391, %397 : vector<8x32x128xf32>
    %399 = vector.shape_cast %398 : vector<8x32x128xf32> to vector<256x128xf32>
    %c0_283 = arith.constant 0 : index
    %c0_284 = arith.constant 0 : index
    %400 = vector.load %arg10[%c0_283, %c0_284] : memref<128x128xf32, #tpu.memory_space<vmem>>, vector<128x128xf32>
    %cst_285 = arith.constant dense<0.000000e+00> : vector<256x128xf32>
    %401 = tpu.matmul %399, %400, %cst_285 {dimension_numbers = #tpu.dot_dimension_numbers<[1], [0], [0], [1], [0, 0, 1, 1], [], []>} : vector<256x128xf32>, vector<128x128xf32>, vector<256x128xf32> -> vector<256x128xf32>
    %c0_286 = arith.constant 0 : index
    %c0_287 = arith.constant 0 : index
    %402 = vector.load %arg11[%c0_286, %c0_287] : memref<1x128xf32, #tpu.memory_space<vmem>>, vector<1x128xf32>
    %403 = vector.shape_cast %402 : vector<1x128xf32> to vector<128xf32>
    %404 = vector.shape_cast %403 : vector<128xf32> to vector<1x128xf32>
    %405 = vector.broadcast %404 : vector<1x128xf32> to vector<256x128xf32>
    %406 = arith.addf %401, %405 : vector<256x128xf32>
    %cst_288 = arith.constant 0.000000e+00 : f32
    %cst_289 = arith.constant 6.000000e+00 : f32
    %407 = vector.broadcast %cst_288 : f32 to vector<256x128xf32>
    %408 = arith.maximumf %407, %406 : vector<256x128xf32>
    %409 = vector.broadcast %cst_289 : f32 to vector<256x128xf32>
    %410 = arith.minimumf %409, %408 : vector<256x128xf32>
    %411 = vector.shape_cast %410 : vector<256x128xf32> to vector<8x32x128xf32>
    %c0_290 = arith.constant 0 : index
    %c0_291 = arith.constant 0 : index
    %c0_292 = arith.constant 0 : index
    %c0_293 = arith.constant 0 : index
    %412 = vector.load %arg12[%c0_290, %c0_291, %c0_292, %c0_293] : memref<1x8x32x128xf32, #tpu.memory_space<vmem>>, vector<1x8x32x128xf32>
    %413 = vector.shape_cast %412 : vector<1x8x32x128xf32> to vector<8x32x128xf32>
    %414 = vector.shape_cast %411 : vector<8x32x128xf32> to vector<1x8x32x128xf32>
    tpu.vector_store %arg12[%c0_290, %c0_291, %c0_292, %c0_293], %414 {strides = array<i32>} : memref<1x8x32x128xf32, #tpu.memory_space<vmem>>, vector<1x8x32x128xf32>,
    return
  }
  func.func @transform_0(%arg0: i32, %arg1: i32) -> i32 {
    %c0_i32 = arith.constant 0 : i32
    %c0_i32_0 = arith.constant 0 : i32
    return %c0_i32 : i32
  }
  func.func @transform_1(%arg0: i32, %arg1: i32) -> (i32, i32, i32, i32) {
    %c2_i32 = arith.constant 2 : i32
    %0 = arith.muli %arg1, %c2_i32 : i32
    %c1_i32 = arith.constant 1 : i32
    %1 = arith.subi %0, %c1_i32 : i32
    %c0_i32 = arith.constant 0 : i32
    %2 = arith.maxsi %1, %c0_i32 : i32
    %c0_i32_0 = arith.constant 0 : i32
    %c0_i32_1 = arith.constant 0 : i32
    %c0_i32_2 = arith.constant 0 : i32
    return %arg0, %2, %c0_i32_0, %c0_i32_1 : i32, i32, i32, i32
  }
  func.func @transform_2(%arg0: i32, %arg1: i32) -> (i32, i32, i32, i32) {
    %c0_i32 = arith.constant 0 : i32
    %c0_i32_0 = arith.constant 0 : i32
    %c0_i32_1 = arith.constant 0 : i32
    return %arg0, %arg1, %c0_i32, %c0_i32_0 : i32, i32, i32, i32
  }
  func.func @transform_3(%arg0: i32, %arg1: i32) -> (i32, i32, i32, i32) {
    %c1_i32 = arith.constant 1 : i32
    %0 = arith.addi %arg1, %c1_i32 : i32
    %c2_i32 = arith.constant 2 : i32
    %1 = arith.muli %0, %c2_i32 : i32
    %c7_i32 = arith.constant 7 : i32
    %2 = arith.minsi %1, %c7_i32 : i32
    %c0_i32 = arith.constant 0 : i32
    %c0_i32_0 = arith.constant 0 : i32
    %c0_i32_1 = arith.constant 0 : i32
    return %arg0, %2, %c0_i32, %c0_i32_0 : i32, i32, i32, i32
  }
  func.func @transform_4(%arg0: i32, %arg1: i32) -> (i32, i32, i32, i32) {
    %c4_i32 = arith.constant 4 : i32
    %0 = arith.muli %arg1, %c4_i32 : i32
    %c1_i32 = arith.constant 1 : i32
    %1 = arith.subi %0, %c1_i32 : i32
    %c0_i32 = arith.constant 0 : i32
    %2 = arith.maxsi %1, %c0_i32 : i32
    %c0_i32_0 = arith.constant 0 : i32
    %c0_i32_1 = arith.constant 0 : i32
    %c0_i32_2 = arith.constant 0 : i32
    return %arg0, %2, %c0_i32_0, %c0_i32_1 : i32, i32, i32, i32
  }
  func.func @transform_5(%arg0: i32, %arg1: i32) -> (i32, i32, i32, i32) {
    %c0_i32 = arith.constant 0 : i32
    %c0_i32_0 = arith.constant 0 : i32
    %c0_i32_1 = arith.constant 0 : i32
    return %arg0, %arg1, %c0_i32, %c0_i32_0 : i32, i32, i32, i32
  }
  func.func @transform_6(%arg0: i32, %arg1: i32) -> (i32, i32, i32, i32) {
    %c1_i32 = arith.constant 1 : i32
    %0 = arith.addi %arg1, %c1_i32 : i32
    %c4_i32 = arith.constant 4 : i32
    %1 = arith.muli %0, %c4_i32 : i32
    %c15_i32 = arith.constant 15 : i32
    %2 = arith.minsi %1, %c15_i32 : i32
    %c0_i32 = arith.constant 0 : i32
    %c0_i32_0 = arith.constant 0 : i32
    %c0_i32_1 = arith.constant 0 : i32
    return %arg0, %2, %c0_i32, %c0_i32_0 : i32, i32, i32, i32
  }
  func.func @transform_7(%arg0: i32, %arg1: i32) -> (i32, i32) {
    %c0_i32 = arith.constant 0 : i32
    %c0_i32_0 = arith.constant 0 : i32
    %c0_i32_1 = arith.constant 0 : i32
    return %c0_i32, %c0_i32_0 : i32, i32
  }
  func.func @transform_8(%arg0: i32, %arg1: i32) -> (i32, i32) {
    %c0_i32 = arith.constant 0 : i32
    %c0_i32_0 = arith.constant 0 : i32
    %c0_i32_1 = arith.constant 0 : i32
    return %c0_i32, %c0_i32_0 : i32, i32
  }
  func.func @transform_9(%arg0: i32, %arg1: i32) -> (i32, i32) {
    %c0_i32 = arith.constant 0 : i32
    %c0_i32_0 = arith.constant 0 : i32
    %c0_i32_1 = arith.constant 0 : i32
    return %c0_i32, %c0_i32_0 : i32, i32
  }
  func.func @transform_10(%arg0: i32, %arg1: i32) -> (i32, i32, i32, i32) {
    %c0_i32 = arith.constant 0 : i32
    %c0_i32_0 = arith.constant 0 : i32
    %c0_i32_1 = arith.constant 0 : i32
    return %arg0, %arg1, %c0_i32, %c0_i32_0 : i32, i32, i32, i32
  }
}

</mosaic_0001>

<llo_original>
// kernel: _lambda_.1
$region0: #{_lambda_.1}
  #allocation0 [shape = 'u32[]', space=smem, size = 0x4, offset = 0x4, fixed_abs, tag = 'smem constant byte address 0x4 - core index']
  #allocation1 [shape = 'u32[144,128]{1,0:T(1,128)}', space=vmem, size = 0x12000, scoped, tag = 'internal scratch']
  #allocation2 [shape = 'f32[8,32,128]{2,1,0:T(8,128)}', space=vmem, size = 0x20000, scoped, tag = 'scratch operand']
  #allocation3 [shape = 'f32[12,36,128]{2,1,0:T(8,128)}', space=vmem, size = 0x3c000, scoped, tag = 'scratch operand']
  %s0 = inlined_call_operand.hbm [shape: f32[2], index: 0, kind: input, shape index: {}]
  %s1 = inlined_call_operand.hbm [shape: f32[2,16,32,128], index: 1, kind: input, shape index: {}, may-alias: {1,2,3}]
  %s2 = inlined_call_operand.hbm [shape: f32[2,16,32,128], index: 2, kind: input, shape index: {}, may-alias: {1,2,3}]
  %s3 = inlined_call_operand.hbm [shape: f32[2,16,32,128], index: 3, kind: input, shape index: {}, may-alias: {1,2,3}]
  %s4 = inlined_call_operand.hbm [shape: f32[2,32,32,128], index: 4, kind: input, shape index: {}, may-alias: {4,5,6}]
  %s5 = inlined_call_operand.hbm [shape: f32[2,32,32,128], index: 5, kind: input, shape index: {}, may-alias: {4,5,6}]
  %s6 = inlined_call_operand.hbm [shape: f32[2,32,32,128], index: 6, kind: input, shape index: {}, may-alias: {4,5,6}]
  %s7 = inlined_call_operand.hbm [shape: f32[25,128], index: 7, kind: input, shape index: {}]
  %s8 = inlined_call_operand.hbm [shape: f32[128,128], index: 8, kind: input, shape index: {}]
  %s9 = inlined_call_operand.hbm [shape: f32[1,128], index: 9, kind: input, shape index: {}]
  %s10 = inlined_call_operand.hbm [shape: f32[2,32,32,128], index: 10, kind: output, shape index: {}]
  %s11 = sld [smem:[#allocation0]]
  $region129: #{_lambda_.1} parent=0
    _
  %s13 = ssub.s32 1, %s11
  %s14 = scalar_select 0, %s13, %s11
  $region1: #{_lambda_.1} parent=0
    #allocation4 [shape = 'u8[512]{0}', space=smem, size = 0x200, scoped, tag = 'input window, operand 0, single buffered']
    #allocation5 [shape = 's32[2]{0}', space=sflag, size = 0x8, scoped, tag = 'scoped memory for _lambda_.1']
    #allocation6 [shape = 's32[2]{0}', space=sflag, size = 0x8, scoped, tag = 'scoped memory for _lambda_.1']
    #allocation7 [shape = 's32[2]{0}', space=sflag, size = 0x8, scoped, tag = 'scoped memory for _lambda_.1']
    #allocation8 [shape = 'u8[65536]{0}', space=vmem, size = 0x10000, scoped, tag = 'input window, operand 1']
    #allocation9 [shape = 'u8[131072]{0}', space=vmem, size = 0x20000, scoped, tag = 'input window, operand 2']
    #allocation10 [shape = 's32[2]{0}', space=sflag, size = 0x8, scoped, tag = 'scoped memory for _lambda_.1']
    #allocation11 [shape = 'u8[65536]{0}', space=vmem, size = 0x10000, scoped, tag = 'input window, operand 3']
    #allocation12 [shape = 'u8[65536]{0}', space=vmem, size = 0x10000, scoped, tag = 'input window, operand 4']
    #allocation13 [shape = 's32[2]{0}', space=sflag, size = 0x8, scoped, tag = 'scoped memory for _lambda_.1']
    #allocation14 [shape = 'u8[262144]{0}', space=vmem, size = 0x40000, scoped, tag = 'input window, operand 5']
    #allocation15 [shape = 'u8[65536]{0}', space=vmem, size = 0x10000, scoped, tag = 'input window, operand 6']
    #allocation16 [shape = 's32[2]{0}', space=sflag, size = 0x8, scoped, tag = 'scoped memory for _lambda_.1']
    #allocation17 [shape = 'u8[16384]{0}', space=vmem, size = 0x4000, scoped, tag = 'input window, operand 7, single buffered']
    #allocation18 [shape = 'u8[65536]{0}', space=vmem, size = 0x10000, scoped, tag = 'input window, operand 8, single buffered']
    #allocation19 [shape = 's32[1]{0}', space=sflag, size = 0x4, scoped, tag = 'scoped memory for _lambda_.1']
    #allocation20 [shape = 'u8[512]{0}', space=vmem, size = 0x400, scoped, tag = 'input window, operand 9, single buffered']
    #allocation21 [shape = 'u8[262144]{0}', space=vmem, size = 0x40000, scoped, tag = 'output window, operand 0']
    %15 = vsyncpa [#allocation7], 0
    %16 = vsyncpa [#allocation5], 0
    %s17 = scalar_lea.sflag [#allocation5], 1
    %18 = vsyncpa %s17, 0
    %19 = vsyncpa [#allocation10], 0
    %s20 = scalar_lea.sflag [#allocation10], 1
    %21 = vsyncpa %s20, 0
    %22 = vsyncpa [#allocation13], 0
    %s23 = scalar_lea.sflag [#allocation13], 1
    %24 = vsyncpa %s23, 0
    %25 = vsyncpa [#allocation16], 0
    %s26 = scalar_lea.sflag [#allocation16], 1
    %27 = vsyncpa %s26, 0
    %28 = vsyncpa [#allocation19], 0
    %29 = vsyncpa [#allocation6], 0
    %s30 = scalar_lea.sflag [#allocation6], 1
    %31 = vsyncpa %s30, 0
    loop: start=0, step=1, limit=10
    $region2: #{_lambda_.1} parent=1 // loop_pre_header
      _
    $region3: #{_lambda_.1} parent=1 // loop_header
      %s33 = sphi 0, %s37
      %p34 = scmp.ge.s32.totalorder %s33, 10
      %s40 = sphi 0, %s52
      %s41 = sphi 0, %s48
      %s42 = sphi 0, %s40
      %s43 = sphi 0, %s41
      %s44 = sphi 0, %s42
      %s45 = sphi 0, %s43
      %s53 = sphi 0, %s53
      %s55 = sphi 0, %s53
      %s56 = sphi 0, %s55
      %s70 = sphi 0, %s56
      %s86 = sphi 0, %s88
      %s89 = sphi 0, %s86
      %s90 = sphi 0, %s89
      %s106 = sphi 0, %s90
      %s114 = sphi 0, %s116
      %s117 = sphi 0, %s114
      %s118 = sphi 0, %s117
      %s134 = sphi 0, %s118
      %s150 = sphi 0, %s152
      %s153 = sphi 0, %s150
      %s154 = sphi 0, %s153
      %s170 = sphi 0, %s154
      %s186 = sphi 0, %s188
      %s189 = sphi 0, %s186
      %s190 = sphi 0, %s189
      %s206 = sphi 0, %s190
      %s214 = sphi 0, %s216
      %s217 = sphi 0, %s214
      %s218 = sphi 0, %s217
      %s234 = sphi 0, %s218
      %s250 = sphi 0, %s252
      %s253 = sphi 0, %s250
      %s254 = sphi 0, %s253
      %s270 = sphi 0, %s254
      %s274 = sphi 0, %s274
      %s276 = sphi 0, %s274
      %s277 = sphi 0, %s276
      %s291 = sphi 0, %s277
      %s295 = sphi 0, %s295
      %s297 = sphi 0, %s295
      %s298 = sphi 0, %s297
      %s312 = sphi 0, %s298
      %s316 = sphi 0, %s316
      %s318 = sphi 0, %s316
      %s319 = sphi 0, %s318
      %s333 = sphi 0, %s319
      %s341 = sphi 0, %s343
      %s344 = sphi 0, %s341
      %s345 = sphi 0, %s344
      %s361 = sphi 0, %s345
    $region4: #{_lambda_.1} parent=1 // loop_header_branch
      %36 = sbr.rel (%p34) target = $region8
    $region5: #{_lambda_.1} parent=1 // loop_body
      %s38 = ssub.s32 %s33, 1
      %s39 = ssub.s32 %s33, 2
      %s46 = sadd.s32 1, %s41
      %p47 = scmp.ge.s32.totalorder %s46, 4
      %s48 = scalar_select %p47, 0, %s46
      %s49 = sadd.s32 1, %s40
      %s50 = scalar_select %p47, %s49, %s40
      %p51 = scmp.ge.s32.totalorder %s50, 2
      %s52 = scalar_select %p51, 0, %s50
      %s54 = sadd.s32 %s53, 1
      %p57 = scmp.eq.s32.totalorder %s33, 7
      %p58 = scmp.ne.s32.totalorder %s53, %s55
      %p59 = scmp.eq.s32.totalorder %s33, 0
      %p60 = por %p58, %p59
      %p61 = scmp.ne.s32.totalorder %s53, %s55
      %p62 = scmp.eq.s32.totalorder %s38, 7
      %p63 = por %p61, %p62
      %p64 = scmp.ne.s32.totalorder %s55, %s56
      %p65 = scmp.eq.s32.totalorder %s38, 0
      %p66 = por %p64, %p65
      %p67 = scmp.ne.s32.totalorder %s55, %s56
      %p68 = scmp.eq.s32.totalorder %s39, 7
      %p69 = por %p67, %p68
      %p71 = scmp.ne.s32.totalorder %s56, %s70
      %p72 = scmp.eq.s32.totalorder %s39, 0
      %p73 = por %p71, %p72
      %s74 = smul.u32 %s41, 2
      %s75 = ssub.s32 %s74, 1
      %p76 = scmp.gt.s32.totalorder %s75, 0
      %s77 = scalar_select %p76, %s75, 0
      %s78 = smul.u32 %s48, 2
      %s79 = ssub.s32 %s78, 1
      %p80 = scmp.gt.s32.totalorder %s79, 0
      %s81 = scalar_select %p80, %s79, 0
      %s82 = ssub.s32 %s40, %s52
      %s83 = ssub.s32 %s77, %s81
      %s84 = sor.u32 %s82, %s83
      %p85 = scmp.eq.s32.totalorder %s84, 0
      %s87 = sadd.s32 %s86, 1
      %s88 = scalar_select %p85, %s86, %s87
      %p91 = pneg %p85
      %p92 = scmp.eq.s32.totalorder %s33, 7
      %p93 = por %p91, %p92
      %p94 = scmp.ne.s32.totalorder %s86, %s89
      %p95 = scmp.eq.s32.totalorder %s33, 0
      %p96 = por %p94, %p95
      %p97 = scmp.ne.s32.totalorder %s86, %s89
      %p98 = scmp.eq.s32.totalorder %s38, 7
      %p99 = por %p97, %p98
      %p100 = scmp.ne.s32.totalorder %s89, %s90
      %p101 = scmp.eq.s32.totalorder %s38, 0
      %p102 = por %p100, %p101
      %p103 = scmp.ne.s32.totalorder %s89, %s90
      %p104 = scmp.eq.s32.totalorder %s39, 7
      %p105 = por %p103, %p104
      %p107 = scmp.ne.s32.totalorder %s90, %s106
      %p108 = scmp.eq.s32.totalorder %s39, 0
      %p109 = por %p107, %p108
      %s110 = ssub.s32 %s40, %s52
      %s111 = ssub.s32 %s41, %s48
      %s112 = sor.u32 %s110, %s111
      %p113 = scmp.eq.s32.totalorder %s112, 0
      %s115 = sadd.s32 %s114, 1
      %s116 = scalar_select %p113, %s114, %s115
      %p119 = pneg %p113
      %p120 = scmp.eq.s32.totalorder %s33, 7
      %p121 = por %p119, %p120
      %p122 = scmp.ne.s32.totalorder %s114, %s117
      %p123 = scmp.eq.s32.totalorder %s33, 0
      %p124 = por %p122, %p123
      %p125 = scmp.ne.s32.totalorder %s114, %s117
      %p126 = scmp.eq.s32.totalorder %s38, 7
      %p127 = por %p125, %p126
      %p128 = scmp.ne.s32.totalorder %s117, %s118
      %p129 = scmp.eq.s32.totalorder %s38, 0
      %p130 = por %p128, %p129
      %p131 = scmp.ne.s32.totalorder %s117, %s118
      %p132 = scmp.eq.s32.totalorder %s39, 7
      %p133 = por %p131, %p132
      %p135 = scmp.ne.s32.totalorder %s118, %s134
      %p136 = scmp.eq.s32.totalorder %s39, 0
      %p137 = por %p135, %p136
      %s138 = sadd.s32 %s41, 1
      %s139 = smul.u32 %s138, 2
      %p140 = scmp.lt.s32.totalorder %s139, 7
      %s141 = scalar_select %p140, %s139, 7
      %s142 = sadd.s32 %s48, 1
      %s143 = smul.u32 %s142, 2
      %p144 = scmp.lt.s32.totalorder %s143, 7
      %s145 = scalar_select %p144, %s143, 7
      %s146 = ssub.s32 %s40, %s52
      %s147 = ssub.s32 %s141, %s145
      %s148 = sor.u32 %s146, %s147
      %p149 = scmp.eq.s32.totalorder %s148, 0
      %s151 = sadd.s32 %s150, 1
      %s152 = scalar_select %p149, %s150, %s151
      %p155 = pneg %p149
      %p156 = scmp.eq.s32.totalorder %s33, 7
      %p157 = por %p155, %p156
      %p158 = scmp.ne.s32.totalorder %s150, %s153
      %p159 = scmp.eq.s32.totalorder %s33, 0
      %p160 = por %p158, %p159
      %p161 = scmp.ne.s32.totalorder %s150, %s153
      %p162 = scmp.eq.s32.totalorder %s38, 7
      %p163 = por %p161, %p162
      %p164 = scmp.ne.s32.totalorder %s153, %s154
      %p165 = scmp.eq.s32.totalorder %s38, 0
      %p166 = por %p164, %p165
      %p167 = scmp.ne.s32.totalorder %s153, %s154
      %p168 = scmp.eq.s32.totalorder %s39, 7
      %p169 = por %p167, %p168
      %p171 = scmp.ne.s32.totalorder %s154, %s170
      %p172 = scmp.eq.s32.totalorder %s39, 0
      %p173 = por %p171, %p172
      %s174 = smul.u32 %s41, 4
      %s175 = ssub.s32 %s174, 1
      %p176 = scmp.gt.s32.totalorder %s175, 0
      %s177 = scalar_select %p176, %s175, 0
      %s178 = smul.u32 %s48, 4
      %s179 = ssub.s32 %s178, 1
      %p180 = scmp.gt.s32.totalorder %s179, 0
      %s181 = scalar_select %p180, %s179, 0
      %s182 = ssub.s32 %s40, %s52
      %s183 = ssub.s32 %s177, %s181
      %s184 = sor.u32 %s182, %s183
      %p185 = scmp.eq.s32.totalorder %s184, 0
      %s187 = sadd.s32 %s186, 1
      %s188 = scalar_select %p185, %s186, %s187
      %p191 = pneg %p185
      %p192 = scmp.eq.s32.totalorder %s33, 7
      %p193 = por %p191, %p192
      %p194 = scmp.ne.s32.totalorder %s186, %s189
      %p195 = scmp.eq.s32.totalorder %s33, 0
      %p196 = por %p194, %p195
      %p197 = scmp.ne.s32.totalorder %s186, %s189
      %p198 = scmp.eq.s32.totalorder %s38, 7
      %p199 = por %p197, %p198
      %p200 = scmp.ne.s32.totalorder %s189, %s190
      %p201 = scmp.eq.s32.totalorder %s38, 0
      %p202 = por %p200, %p201
      %p203 = scmp.ne.s32.totalorder %s189, %s190
      %p204 = scmp.eq.s32.totalorder %s39, 7
      %p205 = por %p203, %p204
      %p207 = scmp.ne.s32.totalorder %s190, %s206
      %p208 = scmp.eq.s32.totalorder %s39, 0
      %p209 = por %p207, %p208
      %s210 = ssub.s32 %s40, %s52
      %s211 = ssub.s32 %s41, %s48
      %s212 = sor.u32 %s210, %s211
      %p213 = scmp.eq.s32.totalorder %s212, 0
      %s215 = sadd.s32 %s214, 1
      %s216 = scalar_select %p213, %s214, %s215
      %p219 = pneg %p213
      %p220 = scmp.eq.s32.totalorder %s33, 7
      %p221 = por %p219, %p220
      %p222 = scmp.ne.s32.totalorder %s214, %s217
      %p223 = scmp.eq.s32.totalorder %s33, 0
      %p224 = por %p222, %p223
      %p225 = scmp.ne.s32.totalorder %s214, %s217
      %p226 = scmp.eq.s32.totalorder %s38, 7
      %p227 = por %p225, %p226
      %p228 = scmp.ne.s32.totalorder %s217, %s218
      %p229 = scmp.eq.s32.totalorder %s38, 0
      %p230 = por %p228, %p229
      %p231 = scmp.ne.s32.totalorder %s217, %s218
      %p232 = scmp.eq.s32.totalorder %s39, 7
      %p233 = por %p231, %p232
      %p235 = scmp.ne.s32.totalorder %s218, %s234
      %p236 = scmp.eq.s32.totalorder %s39, 0
      %p237 = por %p235, %p236
      %s238 = sadd.s32 %s41, 1
      %s239 = smul.u32 %s238, 4
      %p240 = scmp.lt.s32.totalorder %s239, 15
      %s241 = scalar_select %p240, %s239, 15
      %s242 = sadd.s32 %s48, 1
      %s243 = smul.u32 %s242, 4
      %p244 = scmp.lt.s32.totalorder %s243, 15
      %s245 = scalar_select %p244, %s243, 15
      %s246 = ssub.s32 %s40, %s52
      %s247 = ssub.s32 %s241, %s245
      %s248 = sor.u32 %s246, %s247
      %p249 = scmp.eq.s32.totalorder %s248, 0
      %s251 = sadd.s32 %s250, 1
      %s252 = scalar_select %p249, %s250, %s251
      %p255 = pneg %p249
      %p256 = scmp.eq.s32.totalorder %s33, 7
      %p257 = por %p255, %p256
      %p258 = scmp.ne.s32.totalorder %s250, %s253
      %p259 = scmp.eq.s32.totalorder %s33, 0
      %p260 = por %p258, %p259
      %p261 = scmp.ne.s32.totalorder %s250, %s253
      %p262 = scmp.eq.s32.totalorder %s38, 7
      %p263 = por %p261, %p262
      %p264 = scmp.ne.s32.totalorder %s253, %s254
      %p265 = scmp.eq.s32.totalorder %s38, 0
      %p266 = por %p264, %p265
      %p267 = scmp.ne.s32.totalorder %s253, %s254
      %p268 = scmp.eq.s32.totalorder %s39, 7
      %p269 = por %p267, %p268
      %p271 = scmp.ne.s32.totalorder %s254, %s270
      %p272 = scmp.eq.s32.totalorder %s39, 0
      %p273 = por %p271, %p272
      %s275 = sadd.s32 %s274, 1
      %p278 = scmp.eq.s32.totalorder %s33, 7
      %p279 = scmp.ne.s32.totalorder %s274, %s276
      %p280 = scmp.eq.s32.totalorder %s33, 0
      %p281 = por %p279, %p280
      %p282 = scmp.ne.s32.totalorder %s274, %s276
      %p283 = scmp.eq.s32.totalorder %s38, 7
      %p284 = por %p282, %p283
      %p285 = scmp.ne.s32.totalorder %s276, %s277
      %p286 = scmp.eq.s32.totalorder %s38, 0
      %p287 = por %p285, %p286
      %p288 = scmp.ne.s32.totalorder %s276, %s277
      %p289 = scmp.eq.s32.totalorder %s39, 7
      %p290 = por %p288, %p289
      %p292 = scmp.ne.s32.totalorder %s277, %s291
      %p293 = scmp.eq.s32.totalorder %s39, 0
      %p294 = por %p292, %p293
      %s296 = sadd.s32 %s295, 1
      %p299 = scmp.eq.s32.totalorder %s33, 7
      %p300 = scmp.ne.s32.totalorder %s295, %s297
      %p301 = scmp.eq.s32.totalorder %s33, 0
      %p302 = por %p300, %p301
      %p303 = scmp.ne.s32.totalorder %s295, %s297
      %p304 = scmp.eq.s32.totalorder %s38, 7
      %p305 = por %p303, %p304
      %p306 = scmp.ne.s32.totalorder %s297, %s298
      %p307 = scmp.eq.s32.totalorder %s38, 0
      %p308 = por %p306, %p307
      %p309 = scmp.ne.s32.totalorder %s297, %s298
      %p310 = scmp.eq.s32.totalorder %s39, 7
      %p311 = por %p309, %p310
      %p313 = scmp.ne.s32.totalorder %s298, %s312
      %p314 = scmp.eq.s32.totalorder %s39, 0
      %p315 = por %p313, %p314
      %s317 = sadd.s32 %s316, 1
      %p320 = scmp.eq.s32.totalorder %s33, 7
      %p321 = scmp.ne.s32.totalorder %s316, %s318
      %p322 = scmp.eq.s32.totalorder %s33, 0
      %p323 = por %p321, %p322
      %p324 = scmp.ne.s32.totalorder %s316, %s318
      %p325 = scmp.eq.s32.totalorder %s38, 7
      %p326 = por %p324, %p325
      %p327 = scmp.ne.s32.totalorder %s318, %s319
      %p328 = scmp.eq.s32.totalorder %s38, 0
      %p329 = por %p327, %p328
      %p330 = scmp.ne.s32.totalorder %s318, %s319
      %p331 = scmp.eq.s32.totalorder %s39, 7
      %p332 = por %p330, %p331
      %p334 = scmp.ne.s32.totalorder %s319, %s333
      %p335 = scmp.eq.s32.totalorder %s39, 0
      %p336 = por %p334, %p335
      %s337 = ssub.s32 %s40, %s52
      %s338 = ssub.s32 %s41, %s48
      %s339 = sor.u32 %s337, %s338
      %p340 = scmp.eq.s32.totalorder %s339, 0
      %s342 = sadd.s32 %s341, 1
      %s343 = scalar_select %p340, %s341, %s342
      %p346 = pneg %p340
      %p347 = scmp.eq.s32.totalorder %s33, 7
      %p348 = por %p346, %p347
      %p349 = scmp.ne.s32.totalorder %s341, %s344
      %p350 = scmp.eq.s32.totalorder %s33, 0
      %p351 = por %p349, %p350
      %p352 = scmp.ne.s32.totalorder %s341, %s344
      %p353 = scmp.eq.s32.totalorder %s38, 7
      %p354 = por %p352, %p353
      %p355 = scmp.ne.s32.totalorder %s344, %s345
      %p356 = scmp.eq.s32.totalorder %s38, 0
      %p357 = por %p355, %p356
      %p358 = scmp.ne.s32.totalorder %s344, %s345
      %p359 = scmp.eq.s32.totalorder %s39, 7
      %p360 = por %p358, %p359
      %p362 = scmp.ne.s32.totalorder %s345, %s361
      %p363 = scmp.eq.s32.totalorder %s39, 0
      %p364 = por %p362, %p363
      %p365 = scmp.le.s32.totalorder 1, %s33
      %p366 = scmp.lt.s32.totalorder %s33, 9
      %p367 = pnand %p365, %p366
      %p368 = pneg %p367
      // Predicated region
      $region9: #{_lambda_.1} parent=5 // pred_check
        _
      $region10: #{_lambda_.1} parent=5 // pred_check_branch
        %370 = sbr.rel (%p367) target = $region12
      $region11: #{_lambda_.1} parent=5 // pred_region
        %s371 = ssub.s32 %s33, 1
        // Predicated region
        $region13: #{_lambda_.1} parent=11 // pred_check
          %p372 = pneg %p66
        $region14: #{_lambda_.1} parent=11 // pred_check_branch
          %374 = sbr.rel (%p372) target = $region16
        $region15: #{_lambda_.1} parent=11 // pred_region
          %s376 = ssub.s32 16, 16
          %377 = vsyncadd [#allocation7], %s376
          %380 = dma.hbm_to_smem %s0, 16, [#allocation4], [#allocation7]
        $region16: #{_lambda_.1} parent=11 // pred_fallthru
          _
        // Predicated region
        $region17: #{_lambda_.1} parent=11 // pred_check
          %p381 = pneg %p287
        $region18: #{_lambda_.1} parent=11 // pred_check_branch
          %383 = sbr.rel (%p381) target = $region20
        $region19: #{_lambda_.1} parent=11 // pred_region
          %s385 = ssub.s32 512, 512
          %386 = vsyncadd [#allocation16], %s385
          %s387 = sshll.u32 [#allocation17], 4
          %s388 = int_to_ptr.vmem [resolvable:$true] %s387
          %393 = dma.hbm_to_vmem [thread:$0]  %s7, 512, %s388, [#allocation16], 128, 128, 8
        $region20: #{_lambda_.1} parent=11 // pred_fallthru
          _
        // Predicated region
        $region21: #{_lambda_.1} parent=11 // pred_check
          %p394 = pneg %p308
        $region22: #{_lambda_.1} parent=11 // pred_check_branch
          %396 = sbr.rel (%p394) target = $region24
        $region23: #{_lambda_.1} parent=11 // pred_region
          %s398 = ssub.s32 2048, 2048
          %399 = vsyncadd [#allocation19], %s398
          %s400 = sshll.u32 [#allocation18], 4
          %s401 = int_to_ptr.vmem [resolvable:$true] %s400
          %406 = dma.hbm_to_vmem [thread:$0]  %s8, 2048, %s401, [#allocation19], 128, 128, 8
        $region24: #{_lambda_.1} parent=11 // pred_fallthru
          _
        // Predicated region
        $region25: #{_lambda_.1} parent=11 // pred_check
          %p407 = pneg %p329
        $region26: #{_lambda_.1} parent=11 // pred_check_branch
          %409 = sbr.rel (%p407) target = $region28
        $region27: #{_lambda_.1} parent=11 // pred_region
          %s411 = ssub.s32 16, 16
          %412 = vsyncadd [#allocation19], %s411
          %s414 = sshll.u32 [#allocation20], 4
          %s415 = int_to_ptr.vmem [resolvable:$true] %s414
          %417 = dma.hbm_to_vmem [thread:$0]  %s9, 16, %s415, [#allocation19]
        $region28: #{_lambda_.1} parent=11 // pred_fallthru
          _
      $region12: #{_lambda_.1} parent=5 // pred_fallthru
        _
      %p418 = scmp.lt.s32.totalorder %s33, 8
      // Predicated region
      $region29: #{_lambda_.1} parent=5 // pred_check
        %p419 = pneg %p418
      $region30: #{_lambda_.1} parent=5 // pred_check_branch
        %421 = sbr.rel (%p419) target = $region32
      $region31: #{_lambda_.1} parent=5 // pred_region
        // Predicated region
        $region33: #{_lambda_.1} parent=31 // pred_check
          %p422 = pneg %p96
        $region34: #{_lambda_.1} parent=31 // pred_check_branch
          %424 = sbr.rel (%p422) target = $region36
        $region35: #{_lambda_.1} parent=31 // pred_region
          %s425 = sand.u32 %s86, 1
          %s426 = scalar_lea.sflag [#allocation5], %s425
          %s427 = sand.u32 %s86, 1
          %s428 = smul.addr %s427, 64
          %s429 = scalar_lea.vmem [#allocation8], %s428
          %s430 = smul.u32 %s41, 2
          %s431 = ssub.s32 %s430, 1
          %p432 = scmp.gt.s32.totalorder %s431, 0
          %s433 = scalar_select %p432, %s431, 0
          %s434 = smul.u32 2, %s433
          %s436 = ssub.s32 1024, 1024
          %437 = vsyncadd %s426, %s436
          %s438 = smul.addr %s434, 4
          %s439 = smul.addr %s40, 64
          %s440 = sadd.s32 %s438, %s439
          %s441 = smul.addr %s440, 128
          %s442 = scalar_lea.hbm %s1, %s441
          %s443 = sshll.u32 %s429, 4
          %s444 = int_to_ptr.vmem [resolvable:$true] %s443
          %449 = dma.hbm_to_vmem [thread:$0]  %s442, 1024, %s444, %s426, 128, 128, 8
        $region36: #{_lambda_.1} parent=31 // pred_fallthru
          _
        // Predicated region
        $region37: #{_lambda_.1} parent=31 // pred_check
          %p450 = pneg %p124
        $region38: #{_lambda_.1} parent=31 // pred_check_branch
          %452 = sbr.rel (%p450) target = $region40
        $region39: #{_lambda_.1} parent=31 // pred_region
          %s453 = sand.u32 %s33, 1
          %s454 = scalar_lea.sflag [#allocation10], %s453
          %s455 = sand.u32 %s114, 1
          %s456 = smul.addr %s455, 128
          %s457 = scalar_lea.vmem [#allocation9], %s456
          %s458 = smul.u32 4, %s41
          %s460 = ssub.s32 2048, 2048
          %461 = vsyncadd %s454, %s460
          %s462 = smul.addr %s458, 4
          %s463 = smul.addr %s40, 64
          %s464 = sadd.s32 %s462, %s463
          %s465 = smul.addr %s464, 128
          %s466 = scalar_lea.hbm %s2, %s465
          %s467 = sshll.u32 %s457, 4
          %s468 = int_to_ptr.vmem [resolvable:$true] %s467
          %473 = dma.hbm_to_vmem [thread:$0]  %s466, 2048, %s468, %s454, 128, 128, 8
        $region40: #{_lambda_.1} parent=31 // pred_fallthru
          _
        // Predicated region
        $region41: #{_lambda_.1} parent=31 // pred_check
          %p474 = pneg %p160
        $region42: #{_lambda_.1} parent=31 // pred_check_branch
          %476 = sbr.rel (%p474) target = $region44
        $region43: #{_lambda_.1} parent=31 // pred_region
          %s477 = sand.u32 %s33, 1
          %s478 = scalar_lea.sflag [#allocation10], %s477
          %s479 = sand.u32 %s150, 1
          %s480 = smul.addr %s479, 64
          %s481 = scalar_lea.vmem [#allocation11], %s480
          %s482 = sadd.s32 %s41, 1
          %s483 = smul.u32 %s482, 2
          %p484 = scmp.lt.s32.totalorder %s483, 7
          %s485 = scalar_select %p484, %s483, 7
          %s486 = smul.u32 2, %s485
          %s488 = ssub.s32 1024, 1024
          %489 = vsyncadd %s478, %s488
          %s490 = smul.addr %s486, 4
          %s491 = smul.addr %s40, 64
          %s492 = sadd.s32 %s490, %s491
          %s493 = smul.addr %s492, 128
          %s494 = scalar_lea.hbm %s3, %s493
          %s495 = sshll.u32 %s481, 4
          %s496 = int_to_ptr.vmem [resolvable:$true] %s495
          %501 = dma.hbm_to_vmem [thread:$0]  %s494, 1024, %s496, %s478, 128, 128, 8
        $region44: #{_lambda_.1} parent=31 // pred_fallthru
          _
        // Predicated region
        $region45: #{_lambda_.1} parent=31 // pred_check
          %p502 = pneg %p196
        $region46: #{_lambda_.1} parent=31 // pred_check_branch
          %504 = sbr.rel (%p502) target = $region48
        $region47: #{_lambda_.1} parent=31 // pred_region
          %s505 = sand.u32 %s33, 1
          %s506 = scalar_lea.sflag [#allocation13], %s505
          %s507 = sand.u32 %s186, 1
          %s508 = smul.addr %s507, 64
          %s509 = scalar_lea.vmem [#allocation12], %s508
          %s510 = smul.u32 %s41, 4
          %s511 = ssub.s32 %s510, 1
          %p512 = scmp.gt.s32.totalorder %s511, 0
          %s513 = scalar_select %p512, %s511, 0
          %s514 = smul.u32 2, %s513
          %s516 = ssub.s32 1024, 1024
          %517 = vsyncadd %s506, %s516
          %s518 = smul.addr %s514, 4
          %s519 = smul.addr %s40, 128
          %s520 = sadd.s32 %s518, %s519
          %s521 = smul.addr %s520, 128
          %s522 = scalar_lea.hbm %s4, %s521
          %s523 = sshll.u32 %s509, 4
          %s524 = int_to_ptr.vmem [resolvable:$true] %s523
          %529 = dma.hbm_to_vmem [thread:$0]  %s522, 1024, %s524, %s506, 128, 128, 8
        $region48: #{_lambda_.1} parent=31 // pred_fallthru
          _
        // Predicated region
        $region49: #{_lambda_.1} parent=31 // pred_check
          %p530 = pneg %p224
        $region50: #{_lambda_.1} parent=31 // pred_check_branch
          %532 = sbr.rel (%p530) target = $region52
        $region51: #{_lambda_.1} parent=31 // pred_region
          %s533 = sand.u32 %s33, 1
          %s534 = scalar_lea.sflag [#allocation13], %s533
          %s535 = sand.u32 %s214, 1
          %s536 = smul.addr %s535, 256
          %s537 = scalar_lea.vmem [#allocation14], %s536
          %s538 = smul.u32 8, %s41
          %s540 = ssub.s32 4096, 4096
          %541 = vsyncadd %s534, %s540
          %s542 = smul.addr %s538, 4
          %s543 = smul.addr %s40, 128
          %s544 = sadd.s32 %s542, %s543
          %s545 = smul.addr %s544, 128
          %s546 = scalar_lea.hbm %s5, %s545
          %s547 = sshll.u32 %s537, 4
          %s548 = int_to_ptr.vmem [resolvable:$true] %s547
          %553 = dma.hbm_to_vmem [thread:$0]  %s546, 4096, %s548, %s534, 128, 128, 8
        $region52: #{_lambda_.1} parent=31 // pred_fallthru
          _
        // Predicated region
        $region53: #{_lambda_.1} parent=31 // pred_check
          %p554 = pneg %p260
        $region54: #{_lambda_.1} parent=31 // pred_check_branch
          %556 = sbr.rel (%p554) target = $region56
        $region55: #{_lambda_.1} parent=31 // pred_region
          %s557 = sand.u32 %s33, 1
          %s558 = scalar_lea.sflag [#allocation16], %s557
          %s559 = sand.u32 %s250, 1
          %s560 = smul.addr %s559, 64
          %s561 = scalar_lea.vmem [#allocation15], %s560
          %s562 = sadd.s32 %s41, 1
          %s563 = smul.u32 %s562, 4
          %p564 = scmp.lt.s32.totalorder %s563, 15
          %s565 = scalar_select %p564, %s563, 15
          %s566 = smul.u32 2, %s565
          %s568 = ssub.s32 1024, 1024
          %569 = vsyncadd %s558, %s568
          %s570 = smul.addr %s566, 4
          %s571 = smul.addr %s40, 128
          %s572 = sadd.s32 %s570, %s571
          %s573 = smul.addr %s572, 128
          %s574 = scalar_lea.hbm %s6, %s573
          %s575 = sshll.u32 %s561, 4
          %s576 = int_to_ptr.vmem [resolvable:$true] %s575
          %581 = dma.hbm_to_vmem [thread:$0]  %s574, 1024, %s576, %s558, 128, 128, 8
        $region56: #{_lambda_.1} parent=31 // pred_fallthru
          _
      $region32: #{_lambda_.1} parent=5 // pred_fallthru
        _
      %p582 = scmp.le.s32.totalorder 1, %s33
      %p583 = scmp.lt.s32.totalorder %s33, 9
      %p584 = pnand %p582, %p583
      %p585 = pneg %p584
      // Predicated region
      $region57: #{_lambda_.1} parent=5 // pred_check
        _
      $region58: #{_lambda_.1} parent=5 // pred_check_branch
        %587 = sbr.rel (%p584) target = $region60
      $region59: #{_lambda_.1} parent=5 // pred_region
        %s588 = ssub.s32 %s33, 1
        // Predicated region
        $region61: #{_lambda_.1} parent=59 // pred_check
          %p589 = pneg %p66
        $region62: #{_lambda_.1} parent=59 // pred_check_branch
          %591 = sbr.rel (%p589) target = $region64
        $region63: #{_lambda_.1} parent=59 // pred_region
          %592 = dma.done [#allocation7], 16
        $region64: #{_lambda_.1} parent=59 // pred_fallthru
          _
        %s593 = sand.u32 %s89, 1
        %s594 = scalar_lea.sflag [#allocation5], %s593
        %s595 = sand.u32 %s89, 1
        %s596 = smul.addr %s595, 64
        %s597 = scalar_lea.vmem [#allocation8], %s596
        // Predicated region
        $region65: #{_lambda_.1} parent=59 // pred_check
          %p598 = pneg %p102
        $region66: #{_lambda_.1} parent=59 // pred_check_branch
          %600 = sbr.rel (%p598) target = $region68
        $region67: #{_lambda_.1} parent=59 // pred_region
          %601 = dma.done %s594, 1024
        $region68: #{_lambda_.1} parent=59 // pred_fallthru
          _
        %s602 = sand.u32 %s38, 1
        %s603 = scalar_lea.sflag [#allocation10], %s602
        %s604 = sand.u32 %s117, 1
        %s605 = smul.addr %s604, 128
        %s606 = scalar_lea.vmem [#allocation9], %s605
        // Predicated region
        $region69: #{_lambda_.1} parent=59 // pred_check
          %p607 = pneg %p130
        $region70: #{_lambda_.1} parent=59 // pred_check_branch
          %609 = sbr.rel (%p607) target = $region72
        $region71: #{_lambda_.1} parent=59 // pred_region
          %610 = dma.done %s603, 2048
        $region72: #{_lambda_.1} parent=59 // pred_fallthru
          _
        %s611 = sand.u32 %s38, 1
        %s612 = scalar_lea.sflag [#allocation10], %s611
        %s613 = sand.u32 %s153, 1
        %s614 = smul.addr %s613, 64
        %s615 = scalar_lea.vmem [#allocation11], %s614
        // Predicated region
        $region73: #{_lambda_.1} parent=59 // pred_check
          %p616 = pneg %p166
        $region74: #{_lambda_.1} parent=59 // pred_check_branch
          %618 = sbr.rel (%p616) target = $region76
        $region75: #{_lambda_.1} parent=59 // pred_region
          %619 = dma.done %s612, 1024
        $region76: #{_lambda_.1} parent=59 // pred_fallthru
          _
        %s620 = sand.u32 %s38, 1
        %s621 = scalar_lea.sflag [#allocation13], %s620
        %s622 = sand.u32 %s189, 1
        %s623 = smul.addr %s622, 64
        %s624 = scalar_lea.vmem [#allocation12], %s623
        // Predicated region
        $region77: #{_lambda_.1} parent=59 // pred_check
          %p625 = pneg %p202
        $region78: #{_lambda_.1} parent=59 // pred_check_branch
          %627 = sbr.rel (%p625) target = $region80
        $region79: #{_lambda_.1} parent=59 // pred_region
          %628 = dma.done %s621, 1024
        $region80: #{_lambda_.1} parent=59 // pred_fallthru
          _
        %s629 = sand.u32 %s38, 1
        %s630 = scalar_lea.sflag [#allocation13], %s629
        %s631 = sand.u32 %s217, 1
        %s632 = smul.addr %s631, 256
        %s633 = scalar_lea.vmem [#allocation14], %s632
        // Predicated region
        $region81: #{_lambda_.1} parent=59 // pred_check
          %p634 = pneg %p230
        $region82: #{_lambda_.1} parent=59 // pred_check_branch
          %636 = sbr.rel (%p634) target = $region84
        $region83: #{_lambda_.1} parent=59 // pred_region
          %637 = dma.done %s630, 4096
        $region84: #{_lambda_.1} parent=59 // pred_fallthru
          _
        %s638 = sand.u32 %s38, 1
        %s639 = scalar_lea.sflag [#allocation16], %s638
        %s640 = sand.u32 %s253, 1
        %s641 = smul.addr %s640, 64
        %s642 = scalar_lea.vmem [#allocation15], %s641
        // Predicated region
        $region85: #{_lambda_.1} parent=59 // pred_check
          %p643 = pneg %p266
        $region86: #{_lambda_.1} parent=59 // pred_check_branch
          %645 = sbr.rel (%p643) target = $region88
        $region87: #{_lambda_.1} parent=59 // pred_region
          %646 = dma.done %s639, 1024
        $region88: #{_lambda_.1} parent=59 // pred_fallthru
          _
        // Predicated region
        $region89: #{_lambda_.1} parent=59 // pred_check
          %p647 = pneg %p287
        $region90: #{_lambda_.1} parent=59 // pred_check_branch
          %649 = sbr.rel (%p647) target = $region92
        $region91: #{_lambda_.1} parent=59 // pred_region
          %650 = dma.done [#allocation16], 512
        $region92: #{_lambda_.1} parent=59 // pred_fallthru
          _
        // Predicated region
        $region93: #{_lambda_.1} parent=59 // pred_check
          %p651 = pneg %p308
        $region94: #{_lambda_.1} parent=59 // pred_check_branch
          %653 = sbr.rel (%p651) target = $region96
        $region95: #{_lambda_.1} parent=59 // pred_region
          %654 = dma.done [#allocation19], 2048
        $region96: #{_lambda_.1} parent=59 // pred_fallthru
          _
        // Predicated region
        $region97: #{_lambda_.1} parent=59 // pred_check
          %p655 = pneg %p329
        $region98: #{_lambda_.1} parent=59 // pred_check_branch
          %657 = sbr.rel (%p655) target = $region100
        $region99: #{_lambda_.1} parent=59 // pred_region
          %658 = dma.done [#allocation19], 16
        $region100: #{_lambda_.1} parent=59 // pred_fallthru
          _
        %659 = sfence
        %p660 = pneg %p66
        %p661 = pneg %p63
        %s662 = sand.u32 %s89, 1
        %s663 = scalar_lea.sflag [#allocation5], %s662
        %s664 = sand.u32 %s89, 1
        %s665 = smul.addr %s664, 64
        %s666 = scalar_lea.vmem [#allocation8], %s665
        %p667 = pneg %p102
        %p668 = pneg %p99
        %s669 = sand.u32 %s38, 1
        %s670 = scalar_lea.sflag [#allocation10], %s669
        %s671 = sand.u32 %s117, 1
        %s672 = smul.addr %s671, 128
        %s673 = scalar_lea.vmem [#allocation9], %s672
        %p674 = pneg %p130
        %p675 = pneg %p127
        %s676 = sand.u32 %s38, 1
        %s677 = scalar_lea.sflag [#allocation10], %s676
        %s678 = sand.u32 %s153, 1
        %s679 = smul.addr %s678, 64
        %s680 = scalar_lea.vmem [#allocation11], %s679
        %p681 = pneg %p166
        %p682 = pneg %p163
        %s683 = sand.u32 %s38, 1
        %s684 = scalar_lea.sflag [#allocation13], %s683
        %s685 = sand.u32 %s189, 1
        %s686 = smul.addr %s685, 64
        %s687 = scalar_lea.vmem [#allocation12], %s686
        %p688 = pneg %p202
        %p689 = pneg %p199
        %s690 = sand.u32 %s38, 1
        %s691 = scalar_lea.sflag [#allocation13], %s690
        %s692 = sand.u32 %s217, 1
        %s693 = smul.addr %s692, 256
        %s694 = scalar_lea.vmem [#allocation14], %s693
        %p695 = pneg %p230
        %p696 = pneg %p227
        %s697 = sand.u32 %s38, 1
        %s698 = scalar_lea.sflag [#allocation16], %s697
        %s699 = sand.u32 %s253, 1
        %s700 = smul.addr %s699, 64
        %s701 = scalar_lea.vmem [#allocation15], %s700
        %p702 = pneg %p266
        %p703 = pneg %p263
        %p704 = pneg %p287
        %p705 = pneg %p284
        %p706 = pneg %p308
        %p707 = pneg %p305
        %p708 = pneg %p329
        %p709 = pneg %p326
        %p710 = pneg %p357
        %p711 = pneg %p354
        %s712 = sand.u32 %s344, 1
        %s713 = scalar_lea.sflag [#allocation6], %s712
        %s714 = sand.u32 %s344, 1
        %s715 = smul.addr %s714, 256
        %s716 = scalar_lea.vmem [#allocation21], %s715
        %s717 = smul.u32 %s43, 2
        %s718 = ssub.s32 %s717, 1
        %p719 = scmp.gt.s32.totalorder %s718, 0
        %s720 = scalar_select %p719, %s718, 0
        %s721 = smul.u32 2, %s720
        %s722 = smul.u32 4, %s43
        %s723 = sadd.s32 %s43, 1
        %s724 = smul.u32 %s723, 2
        %p725 = scmp.lt.s32.totalorder %s724, 7
        %s726 = scalar_select %p725, %s724, 7
        %s727 = smul.u32 2, %s726
        %s728 = smul.u32 %s43, 4
        %s729 = ssub.s32 %s728, 1
        %p730 = scmp.gt.s32.totalorder %s729, 0
        %s731 = scalar_select %p730, %s729, 0
        %s732 = smul.u32 2, %s731
        %s733 = smul.u32 8, %s43
        %s734 = sadd.s32 %s43, 1
        %s735 = smul.u32 %s734, 4
        %p736 = scmp.lt.s32.totalorder %s735, 15
        %s737 = scalar_select %p736, %s735, 15
        %s738 = smul.u32 2, %s737
        %s739 = smul.u32 8, %s43
        %s740 = sld [smem:[#allocation4]]
        %s741 = smax.f32 %s740, 0.0
        %s742 = smin.f32 %s741, 6.0
        %s743 = sld [smem:[#allocation4 + $0x1]]
        %s744 = smax.f32 %s743, 0.0
        %s745 = smin.f32 %s744, 6.0
        %s746 = sadd.f32 %s742, %s745
        %s747 = sadd.f32 %s746, 1e-08
        %v748 = vstv %s747
        %v749 = vrcp.pop %v748
        %s750 = vtos %v749
        %s751 = smul.f32 %s742, %s750
        %s752 = smul.f32 %s745, %s750
        %v753 = vld [vmem:[%s597] sm:$0xff]
        %v754 = vld [vmem:[%s597 + $0x8] sm:$0xff]
        %v755 = vld [vmem:[%s597 + $0x10] sm:$0xff]
        %v756 = vld [vmem:[%s597 + $0x18] sm:$0xff]
        %v757 = vld [vmem:[%s597 + $0x20] sm:$0xff]
        %v758 = vld [vmem:[%s597 + $0x28] sm:$0xff]
        %v759 = vld [vmem:[%s597 + $0x30] sm:$0xff]
        %v760 = vld [vmem:[%s597 + $0x38] sm:$0xff]
        %761 = vst [vmem:[#allocation2] sm:$0xff] %v753
        %762 = vst [vmem:[#allocation2 + $0x8] sm:$0xff] %v754
        %763 = vst [vmem:[#allocation2 + $0x10] sm:$0xff] %v755
        %764 = vst [vmem:[#allocation2 + $0x18] sm:$0xff] %v756
        %765 = vst [vmem:[#allocation2 + $0x20] sm:$0xff] %v757
        %766 = vst [vmem:[#allocation2 + $0x28] sm:$0xff] %v758
        %767 = vst [vmem:[#allocation2 + $0x30] sm:$0xff] %v759
        %768 = vst [vmem:[#allocation2 + $0x38] sm:$0xff] %v760
        %v769 = vld [vmem:[%s606] sm:$0xff]
        %v770 = vld [vmem:[%s606 + $0x8] sm:$0xff]
        %v771 = vld [vmem:[%s606 + $0x10] sm:$0xff]
        %v772 = vld [vmem:[%s606 + $0x18] sm:$0xff]
        %v773 = vld [vmem:[%s606 + $0x20] sm:$0xff]
        %v774 = vld [vmem:[%s606 + $0x28] sm:$0xff]
        %v775 = vld [vmem:[%s606 + $0x30] sm:$0xff]
        %v776 = vld [vmem:[%s606 + $0x38] sm:$0xff]
        %v777 = vld [vmem:[%s606 + $0x40] sm:$0xff]
        %v778 = vld [vmem:[%s606 + $0x48] sm:$0xff]
        %v779 = vld [vmem:[%s606 + $0x50] sm:$0xff]
        %v780 = vld [vmem:[%s606 + $0x58] sm:$0xff]
        %v781 = vld [vmem:[%s606 + $0x60] sm:$0xff]
        %v782 = vld [vmem:[%s606 + $0x68] sm:$0xff]
        %v783 = vld [vmem:[%s606 + $0x70] sm:$0xff]
        %v784 = vld [vmem:[%s606 + $0x78] sm:$0xff]
        %s785 = scalar_lea.vmem [#allocation2], 64
        %786 = vst [vmem:[%s785] sm:$0xff] %v769
        %787 = vst [vmem:[%s785 + $0x8] sm:$0xff] %v770
        %788 = vst [vmem:[%s785 + $0x10] sm:$0xff] %v771
        %789 = vst [vmem:[%s785 + $0x18] sm:$0xff] %v772
        %790 = vst [vmem:[%s785 + $0x20] sm:$0xff] %v773
        %791 = vst [vmem:[%s785 + $0x28] sm:$0xff] %v774
        %792 = vst [vmem:[%s785 + $0x30] sm:$0xff] %v775
        %793 = vst [vmem:[%s785 + $0x38] sm:$0xff] %v776
        %794 = vst [vmem:[%s785 + $0x40] sm:$0xff] %v777
        %795 = vst [vmem:[%s785 + $0x48] sm:$0xff] %v778
        %796 = vst [vmem:[%s785 + $0x50] sm:$0xff] %v779
        %797 = vst [vmem:[%s785 + $0x58] sm:$0xff] %v780
        %798 = vst [vmem:[%s785 + $0x60] sm:$0xff] %v781
        %799 = vst [vmem:[%s785 + $0x68] sm:$0xff] %v782
        %800 = vst [vmem:[%s785 + $0x70] sm:$0xff] %v783
        %801 = vst [vmem:[%s785 + $0x78] sm:$0xff] %v784
        %v802 = vld [vmem:[%s615] sm:$0xff]
        %v803 = vld [vmem:[%s615 + $0x8] sm:$0xff]
        %v804 = vld [vmem:[%s615 + $0x10] sm:$0xff]
        %v805 = vld [vmem:[%s615 + $0x18] sm:$0xff]
        %v806 = vld [vmem:[%s615 + $0x20] sm:$0xff]
        %v807 = vld [vmem:[%s615 + $0x28] sm:$0xff]
        %v808 = vld [vmem:[%s615 + $0x30] sm:$0xff]
        %v809 = vld [vmem:[%s615 + $0x38] sm:$0xff]
        %s810 = scalar_lea.vmem [#allocation2], 192
        %811 = vst [vmem:[%s810] sm:$0xff] %v802
        %812 = vst [vmem:[%s810 + $0x8] sm:$0xff] %v803
        %813 = vst [vmem:[%s810 + $0x10] sm:$0xff] %v804
        %814 = vst [vmem:[%s810 + $0x18] sm:$0xff] %v805
        %815 = vst [vmem:[%s810 + $0x20] sm:$0xff] %v806
        %816 = vst [vmem:[%s810 + $0x28] sm:$0xff] %v807
        %817 = vst [vmem:[%s810 + $0x30] sm:$0xff] %v808
        %818 = vst [vmem:[%s810 + $0x38] sm:$0xff] %v809
        %p819 = scmp.eq.s32.totalorder %s43, 0
        // Predicated region
        $region101: #{_lambda_.1} parent=59 // pred_check
          %p820 = pneg %p819
        $region102: #{_lambda_.1} parent=59 // pred_check_branch
          %822 = sbr.rel (%p820) target = $region104
        $region103: #{_lambda_.1} parent=59 // pred_region
          %v823 = vld [vmem:[%s606] sm:$0xff]
          %v824 = vld [vmem:[%s606 + $0x8] sm:$0xff]
          %v825 = vld [vmem:[%s606 + $0x10] sm:$0xff]
          %v826 = vld [vmem:[%s606 + $0x18] sm:$0xff]
          %s827 = scalar_lea.vmem [#allocation2], 32
          %828 = vst [vmem:[%s827] sm:$0xff] %v823
          %829 = vst [vmem:[%s827 + $0x8] sm:$0xff] %v824
          %830 = vst [vmem:[%s827 + $0x10] sm:$0xff] %v825
          %831 = vst [vmem:[%s827 + $0x18] sm:$0xff] %v826
        $region104: #{_lambda_.1} parent=59 // pred_fallthru
          _
        %p832 = scmp.eq.s32.totalorder %s43, 3
        // Predicated region
        $region105: #{_lambda_.1} parent=59 // pred_check
          %p833 = pneg %p832
        $region106: #{_lambda_.1} parent=59 // pred_check_branch
          %835 = sbr.rel (%p833) target = $region108
        $region107: #{_lambda_.1} parent=59 // pred_region
          %s836 = scalar_lea.vmem %s606, 96 [#allocation9]
          %v837 = vld [vmem:[%s836] sm:$0xff]
          %v838 = vld [vmem:[%s836 + $0x8] sm:$0xff]
          %v839 = vld [vmem:[%s836 + $0x10] sm:$0xff]
          %v840 = vld [vmem:[%s836 + $0x18] sm:$0xff]
          %841 = vst [vmem:[%s810] sm:$0xff] %v837
          %842 = vst [vmem:[%s810 + $0x8] sm:$0xff] %v838
          %843 = vst [vmem:[%s810 + $0x10] sm:$0xff] %v839
          %844 = vst [vmem:[%s810 + $0x18] sm:$0xff] %v840
        $region108: #{_lambda_.1} parent=59 // pred_fallthru
          _
        %v845 = vld [vmem:[%s624] sm:$0xff]
        %v846 = vld [vmem:[%s624 + $0x8] sm:$0xff]
        %v847 = vld [vmem:[%s624 + $0x10] sm:$0xff]
        %v848 = vld [vmem:[%s624 + $0x18] sm:$0xff]
        %v849 = vld [vmem:[%s624 + $0x20] sm:$0xff]
        %v850 = vld [vmem:[%s624 + $0x28] sm:$0xff]
        %v851 = vld [vmem:[%s624 + $0x30] sm:$0xff]
        %v852 = vld [vmem:[%s624 + $0x38] sm:$0xff]
        %v853 = vstv %s751
        %v854 = vmul.f32 %v853, %v845
        %v855 = vmul.f32 %v853, %v846
        %v856 = vmul.f32 %v853, %v847
        %v857 = vmul.f32 %v853, %v848
        %v858 = vmul.f32 %v853, %v849
        %v859 = vmul.f32 %v853, %v850
        %v860 = vmul.f32 %v853, %v851
        %v861 = vmul.f32 %v853, %v852
        %862 = vst [vmem:[#allocation3 + $0x2] sm:$0xff] %v854
        %863 = vst [vmem:[#allocation3 + $0xa] sm:$0xff] %v855
        %864 = vst [vmem:[#allocation3 + $0x12] sm:$0xff] %v856
        %865 = vst [vmem:[#allocation3 + $0x1a] sm:$0xff] %v857
        %866 = vst [vmem:[#allocation3 + $0x2a] sm:$0xff] %v858
        %867 = vst [vmem:[#allocation3 + $0x32] sm:$0xff] %v859
        %868 = vst [vmem:[#allocation3 + $0x3a] sm:$0xff] %v860
        %869 = vst [vmem:[#allocation3 + $0x42] sm:$0xff] %v861
        %v870 = vld [vmem:[%s633] sm:$0xff]
        %v871 = vld [vmem:[%s633 + $0x8] sm:$0xff]
        %v872 = vld [vmem:[%s633 + $0x10] sm:$0xff]
        %v873 = vld [vmem:[%s633 + $0x18] sm:$0xff]
        %v874 = vld [vmem:[%s633 + $0x20] sm:$0xff]
        %v875 = vld [vmem:[%s633 + $0x28] sm:$0xff]
        %v876 = vld [vmem:[%s633 + $0x30] sm:$0xff]
        %v877 = vld [vmem:[%s633 + $0x38] sm:$0xff]
        %v878 = vld [vmem:[%s633 + $0x40] sm:$0xff]
        %v879 = vld [vmem:[%s633 + $0x48] sm:$0xff]
        %v880 = vld [vmem:[%s633 + $0x50] sm:$0xff]
        %v881 = vld [vmem:[%s633 + $0x58] sm:$0xff]
        %v882 = vld [vmem:[%s633 + $0x60] sm:$0xff]
        %v883 = vld [vmem:[%s633 + $0x68] sm:$0xff]
        %v884 = vld [vmem:[%s633 + $0x70] sm:$0xff]
        %v885 = vld [vmem:[%s633 + $0x78] sm:$0xff]
        %v886 = vld [vmem:[%s633 + $0x80] sm:$0xff]
        %v887 = vld [vmem:[%s633 + $0x88] sm:$0xff]
        %v888 = vld [vmem:[%s633 + $0x90] sm:$0xff]
        %v889 = vld [vmem:[%s633 + $0x98] sm:$0xff]
        %v890 = vld [vmem:[%s633 + $0xa0] sm:$0xff]
        %v891 = vld [vmem:[%s633 + $0xa8] sm:$0xff]
        %v892 = vld [vmem:[%s633 + $0xb0] sm:$0xff]
        %v893 = vld [vmem:[%s633 + $0xb8] sm:$0xff]
        %v894 = vld [vmem:[%s633 + $0xc0] sm:$0xff]
        %v895 = vld [vmem:[%s633 + $0xc8] sm:$0xff]
        %v896 = vld [vmem:[%s633 + $0xd0] sm:$0xff]
        %v897 = vld [vmem:[%s633 + $0xd8] sm:$0xff]
        %v898 = vld [vmem:[%s633 + $0xe0] sm:$0xff]
        %v899 = vld [vmem:[%s633 + $0xe8] sm:$0xff]
        %v900 = vld [vmem:[%s633 + $0xf0] sm:$0xff]
        %v901 = vld [vmem:[%s633 + $0xf8] sm:$0xff]
        %v902 = vmul.f32 %v853, %v870
        %v903 = vmul.f32 %v853, %v871
        %v904 = vmul.f32 %v853, %v872
        %v905 = vmul.f32 %v853, %v873
        %v906 = vmul.f32 %v853, %v874
        %v907 = vmul.f32 %v853, %v875
        %v908 = vmul.f32 %v853, %v876
        %v909 = vmul.f32 %v853, %v877
        %v910 = vmul.f32 %v853, %v878
        %v911 = vmul.f32 %v853, %v879
        %v912 = vmul.f32 %v853, %v880
        %v913 = vmul.f32 %v853, %v881
        %v914 = vmul.f32 %v853, %v882
        %v915 = vmul.f32 %v853, %v883
        %v916 = vmul.f32 %v853, %v884
        %v917 = vmul.f32 %v853, %v885
        %v918 = vmul.f32 %v853, %v886
        %v919 = vmul.f32 %v853, %v887
        %v920 = vmul.f32 %v853, %v888
        %v921 = vmul.f32 %v853, %v889
        %v922 = vmul.f32 %v853, %v890
        %v923 = vmul.f32 %v853, %v891
        %v924 = vmul.f32 %v853, %v892
        %v925 = vmul.f32 %v853, %v893
        %v926 = vmul.f32 %v853, %v894
        %v927 = vmul.f32 %v853, %v895
        %v928 = vmul.f32 %v853, %v896
        %v929 = vmul.f32 %v853, %v897
        %v930 = vmul.f32 %v853, %v898
        %v931 = vmul.f32 %v853, %v899
        %v932 = vmul.f32 %v853, %v900
        %v933 = vmul.f32 %v853, %v901
        %s934 = scalar_lea.vmem [#allocation3], 80
        %935 = vst [vmem:[%s934 + $0x2] sm:$0xff] %v902
        %936 = vst [vmem:[%s934 + $0xa] sm:$0xff] %v903
        %937 = vst [vmem:[%s934 + $0x12] sm:$0xff] %v904
        %938 = vst [vmem:[%s934 + $0x1a] sm:$0xff] %v905
        %939 = vst [vmem:[%s934 + $0x2a] sm:$0xff] %v906
        %940 = vst [vmem:[%s934 + $0x32] sm:$0xff] %v907
        %941 = vst [vmem:[%s934 + $0x3a] sm:$0xff] %v908
        %942 = vst [vmem:[%s934 + $0x42] sm:$0xff] %v909
        %943 = vst [vmem:[%s934 + $0x52] sm:$0xff] %v910
        %944 = vst [vmem:[%s934 + $0x5a] sm:$0xff] %v911
        %945 = vst [vmem:[%s934 + $0x62] sm:$0xff] %v912
        %946 = vst [vmem:[%s934 + $0x6a] sm:$0xff] %v913
        %947 = vst [vmem:[%s934 + $0x7a] sm:$0xff] %v914
        %948 = vst [vmem:[%s934 + $0x82] sm:$0xff] %v915
        %949 = vst [vmem:[%s934 + $0x8a] sm:$0xff] %v916
        %950 = vst [vmem:[%s934 + $0x92] sm:$0xff] %v917
        %951 = vst [vmem:[%s934 + $0xa2] sm:$0xff] %v918
        %952 = vst [vmem:[%s934 + $0xaa] sm:$0xff] %v919
        %953 = vst [vmem:[%s934 + $0xb2] sm:$0xff] %v920
        %954 = vst [vmem:[%s934 + $0xba] sm:$0xff] %v921
        %955 = vst [vmem:[%s934 + $0xca] sm:$0xff] %v922
        %956 = vst [vmem:[%s934 + $0xd2] sm:$0xff] %v923
        %957 = vst [vmem:[%s934 + $0xda] sm:$0xff] %v924
        %958 = vst [vmem:[%s934 + $0xe2] sm:$0xff] %v925
        %959 = vst [vmem:[%s934 + $0xf2] sm:$0xff] %v926
        %960 = vst [vmem:[%s934 + $0xfa] sm:$0xff] %v927
        %961 = vst [vmem:[%s934 + $0x102] sm:$0xff] %v928
        %962 = vst [vmem:[%s934 + $0x10a] sm:$0xff] %v929
        %963 = vst [vmem:[%s934 + $0x11a] sm:$0xff] %v930
        %964 = vst [vmem:[%s934 + $0x122] sm:$0xff] %v931
        %965 = vst [vmem:[%s934 + $0x12a] sm:$0xff] %v932
        %966 = vst [vmem:[%s934 + $0x132] sm:$0xff] %v933
        %v967 = vld [vmem:[%s642] sm:$0xff]
        %v968 = vld [vmem:[%s642 + $0x8] sm:$0xff]
        %v969 = vld [vmem:[%s642 + $0x10] sm:$0xff]
        %v970 = vld [vmem:[%s642 + $0x18] sm:$0xff]
        %v971 = vld [vmem:[%s642 + $0x20] sm:$0xff]
        %v972 = vld [vmem:[%s642 + $0x28] sm:$0xff]
        %v973 = vld [vmem:[%s642 + $0x30] sm:$0xff]
        %v974 = vld [vmem:[%s642 + $0x38] sm:$0xff]
        %v975 = vmul.f32 %v853, %v967
        %v976 = vmul.f32 %v853, %v968
        %v977 = vmul.f32 %v853, %v969
        %v978 = vmul.f32 %v853, %v970
        %v979 = vmul.f32 %v853, %v971
        %v980 = vmul.f32 %v853, %v972
        %v981 = vmul.f32 %v853, %v973
        %v982 = vmul.f32 %v853, %v974
        %s983 = scalar_lea.vmem [#allocation3], 400
        %984 = vst [vmem:[%s983 + $0x2] sm:$0xff] %v975
        %985 = vst [vmem:[%s983 + $0xa] sm:$0xff] %v976
        %986 = vst [vmem:[%s983 + $0x12] sm:$0xff] %v977
        %987 = vst [vmem:[%s983 + $0x1a] sm:$0xff] %v978
        %988 = vst [vmem:[%s983 + $0x2a] sm:$0xff] %v979
        %989 = vst [vmem:[%s983 + $0x32] sm:$0xff] %v980
        %990 = vst [vmem:[%s983 + $0x3a] sm:$0xff] %v981
        %991 = vst [vmem:[%s983 + $0x42] sm:$0xff] %v982
        %v992 = vld [vmem:[#allocation2] sm:$0xff]
        %v993 = vld [vmem:[#allocation2 + $0x8] sm:$0xff]
        %v994 = vld [vmem:[#allocation2 + $0x10] sm:$0xff]
        %v995 = vld [vmem:[#allocation2 + $0x18] sm:$0xff]
        %s996 = scalar_lea.vmem [#allocation2], 32
        %v997 = vld [vmem:[%s996] sm:$0xff]
        %v998 = vld [vmem:[%s996 + $0x8] sm:$0xff]
        %v999 = vld [vmem:[%s996 + $0x10] sm:$0xff]
        %v1000 = vld [vmem:[%s996 + $0x18] sm:$0xff]
        %v1001 = vld [vmem:[%s785] sm:$0xff]
        %v1002 = vld [vmem:[%s785 + $0x8] sm:$0xff]
        %v1003 = vld [vmem:[%s785 + $0x10] sm:$0xff]
        %v1004 = vld [vmem:[%s785 + $0x18] sm:$0xff]
        %v1005 = vmul.f32 %v992, 0.25
        %v1006 = vmul.f32 %v993, 0.25
        %v1007 = vmul.f32 %v994, 0.25
        %v1008 = vmul.f32 %v995, 0.25
        %v1009 = vmul.f32 %v997, 0.75
        %v1010 = vmul.f32 %v998, 0.75
        %v1011 = vmul.f32 %v999, 0.75
        %v1012 = vmul.f32 %v1000, 0.75
        %v1013 = vadd.f32 %v1005, %v1009
        %v1014 = vadd.f32 %v1006, %v1010
        %v1015 = vadd.f32 %v1007, %v1011
        %v1016 = vadd.f32 %v1008, %v1012
        %v1017 = vmul.f32 %v1001, 0.25
        %v1018 = vmul.f32 %v1002, 0.25
        %v1019 = vmul.f32 %v1003, 0.25
        %v1020 = vmul.f32 %v1004, 0.25
        %v1021 = vadd.f32 %v1009, %v1017
        %v1022 = vadd.f32 %v1010, %v1018
        %v1023 = vadd.f32 %v1011, %v1019
        %v1024 = vadd.f32 %v1012, %v1020
        %v1025 = vld [vmem:[#allocation3 + $0x2] sm:$0xff]
        %v1026 = vld [vmem:[#allocation3 + $0xa] sm:$0xff]
        %v1027 = vld [vmem:[#allocation3 + $0x12] sm:$0xff]
        %v1028 = vld [vmem:[#allocation3 + $0x1a] sm:$0xff]
        %v1029 = vstv %s752
        %v1030 = vmul.f32 %v1029, %v1013
        %v1031 = vmul.f32 %v1029, %v1014
        %v1032 = vmul.f32 %v1029, %v1015
        %v1033 = vmul.f32 %v1029, %v1016
        %v1034 = vadd.f32 %v1025, %v1030
        %v1035 = vadd.f32 %v1026, %v1031
        %v1036 = vadd.f32 %v1027, %v1032
        %v1037 = vadd.f32 %v1028, %v1033
        %1038 = vst [vmem:[#allocation3 + $0x2] sm:$0xff] %v1034
        %1039 = vst [vmem:[#allocation3 + $0xa] sm:$0xff] %v1035
        %1040 = vst [vmem:[#allocation3 + $0x12] sm:$0xff] %v1036
        %1041 = vst [vmem:[#allocation3 + $0x1a] sm:$0xff] %v1037
        %s1042 = scalar_lea.vmem [#allocation3], 40
        %v1043 = vld [vmem:[%s1042 + $0x2] sm:$0xff]
        %v1044 = vld [vmem:[%s1042 + $0xa] sm:$0xff]
        %v1045 = vld [vmem:[%s1042 + $0x12] sm:$0xff]
        %v1046 = vld [vmem:[%s1042 + $0x1a] sm:$0xff]
        %v1047 = vmul.f32 %v1029, %v1021
        %v1048 = vmul.f32 %v1029, %v1022
        %v1049 = vmul.f32 %v1029, %v1023
        %v1050 = vmul.f32 %v1029, %v1024
        %v1051 = vadd.f32 %v1043, %v1047
        %v1052 = vadd.f32 %v1044, %v1048
        %v1053 = vadd.f32 %v1045, %v1049
        %v1054 = vadd.f32 %v1046, %v1050
        %1055 = vst [vmem:[%s1042 + $0x2] sm:$0xff] %v1051
        %1056 = vst [vmem:[%s1042 + $0xa] sm:$0xff] %v1052
        %1057 = vst [vmem:[%s1042 + $0x12] sm:$0xff] %v1053
        %1058 = vst [vmem:[%s1042 + $0x1a] sm:$0xff] %v1054
        %s1059 = scalar_lea.vmem [#allocation2], 96
        %v1060 = vld [vmem:[%s1059] sm:$0xff]
        %v1061 = vld [vmem:[%s1059 + $0x8] sm:$0xff]
        %v1062 = vld [vmem:[%s1059 + $0x10] sm:$0xff]
        %v1063 = vld [vmem:[%s1059 + $0x18] sm:$0xff]
        %v1064 = vmul.f32 %v997, 0.25
        %v1065 = vmul.f32 %v998, 0.25
        %v1066 = vmul.f32 %v999, 0.25
        %v1067 = vmul.f32 %v1000, 0.25
        %v1068 = vmul.f32 %v1001, 0.75
        %v1069 = vmul.f32 %v1002, 0.75
        %v1070 = vmul.f32 %v1003, 0.75
        %v1071 = vmul.f32 %v1004, 0.75
        %v1072 = vadd.f32 %v1064, %v1068
        %v1073 = vadd.f32 %v1065, %v1069
        %v1074 = vadd.f32 %v1066, %v1070
        %v1075 = vadd.f32 %v1067, %v1071
        %v1076 = vmul.f32 %v1060, 0.25
        %v1077 = vmul.f32 %v1061, 0.25
        %v1078 = vmul.f32 %v1062, 0.25
        %v1079 = vmul.f32 %v1063, 0.25
        %v1080 = vadd.f32 %v1068, %v1076
        %v1081 = vadd.f32 %v1069, %v1077
        %v1082 = vadd.f32 %v1070, %v1078
        %v1083 = vadd.f32 %v1071, %v1079
        %v1084 = vld [vmem:[%s934 + $0x2] sm:$0xff]
        %v1085 = vld [vmem:[%s934 + $0xa] sm:$0xff]
        %v1086 = vld [vmem:[%s934 + $0x12] sm:$0xff]
        %v1087 = vld [vmem:[%s934 + $0x1a] sm:$0xff]
        %v1088 = vmul.f32 %v1029, %v1072
        %v1089 = vmul.f32 %v1029, %v1073
        %v1090 = vmul.f32 %v1029, %v1074
        %v1091 = vmul.f32 %v1029, %v1075
        %v1092 = vadd.f32 %v1084, %v1088
        %v1093 = vadd.f32 %v1085, %v1089
        %v1094 = vadd.f32 %v1086, %v1090
        %v1095 = vadd.f32 %v1087, %v1091
        %1096 = vst [vmem:[%s934 + $0x2] sm:$0xff] %v1092
        %1097 = vst [vmem:[%s934 + $0xa] sm:$0xff] %v1093
        %1098 = vst [vmem:[%s934 + $0x12] sm:$0xff] %v1094
        %1099 = vst [vmem:[%s934 + $0x1a] sm:$0xff] %v1095
        %s1100 = scalar_lea.vmem [#allocation3], 120
        %v1101 = vld [vmem:[%s1100 + $0x2] sm:$0xff]
        %v1102 = vld [vmem:[%s1100 + $0xa] sm:$0xff]
        %v1103 = vld [vmem:[%s1100 + $0x12] sm:$0xff]
        %v1104 = vld [vmem:[%s1100 + $0x1a] sm:$0xff]
        %v1105 = vmul.f32 %v1029, %v1080
        %v1106 = vmul.f32 %v1029, %v1081
        %v1107 = vmul.f32 %v1029, %v1082
        %v1108 = vmul.f32 %v1029, %v1083
        %v1109 = vadd.f32 %v1101, %v1105
        %v1110 = vadd.f32 %v1102, %v1106
        %v1111 = vadd.f32 %v1103, %v1107
        %v1112 = vadd.f32 %v1104, %v1108
        %1113 = vst [vmem:[%s1100 + $0x2] sm:$0xff] %v1109
        %1114 = vst [vmem:[%s1100 + $0xa] sm:$0xff] %v1110
        %1115 = vst [vmem:[%s1100 + $0x12] sm:$0xff] %v1111
        %1116 = vst [vmem:[%s1100 + $0x1a] sm:$0xff] %v1112
        %s1117 = scalar_lea.vmem [#allocation2], 128
        %v1118 = vld [vmem:[%s1117] sm:$0xff]
        %v1119 = vld [vmem:[%s1117 + $0x8] sm:$0xff]
        %v1120 = vld [vmem:[%s1117 + $0x10] sm:$0xff]
        %v1121 = vld [vmem:[%s1117 + $0x18] sm:$0xff]
        %v1122 = vmul.f32 %v1060, 0.75
        %v1123 = vmul.f32 %v1061, 0.75
        %v1124 = vmul.f32 %v1062, 0.75
        %v1125 = vmul.f32 %v1063, 0.75
        %v1126 = vadd.f32 %v1017, %v1122
        %v1127 = vadd.f32 %v1018, %v1123
        %v1128 = vadd.f32 %v1019, %v1124
        %v1129 = vadd.f32 %v1020, %v1125
        %v1130 = vmul.f32 %v1118, 0.25
        %v1131 = vmul.f32 %v1119, 0.25
        %v1132 = vmul.f32 %v1120, 0.25
        %v1133 = vmul.f32 %v1121, 0.25
        %v1134 = vadd.f32 %v1122, %v1130
        %v1135 = vadd.f32 %v1123, %v1131
        %v1136 = vadd.f32 %v1124, %v1132
        %v1137 = vadd.f32 %v1125, %v1133
        %s1138 = scalar_lea.vmem [#allocation3], 160
        %v1139 = vld [vmem:[%s1138 + $0x2] sm:$0xff]
        %v1140 = vld [vmem:[%s1138 + $0xa] sm:$0xff]
        %v1141 = vld [vmem:[%s1138 + $0x12] sm:$0xff]
        %v1142 = vld [vmem:[%s1138 + $0x1a] sm:$0xff]
        %v1143 = vmul.f32 %v1029, %v1126
        %v1144 = vmul.f32 %v1029, %v1127
        %v1145 = vmul.f32 %v1029, %v1128
        %v1146 = vmul.f32 %v1029, %v1129
        %v1147 = vadd.f32 %v1139, %v1143
        %v1148 = vadd.f32 %v1140, %v1144
        %v1149 = vadd.f32 %v1141, %v1145
        %v1150 = vadd.f32 %v1142, %v1146
        %1151 = vst [vmem:[%s1138 + $0x2] sm:$0xff] %v1147
        %1152 = vst [vmem:[%s1138 + $0xa] sm:$0xff] %v1148
        %1153 = vst [vmem:[%s1138 + $0x12] sm:$0xff] %v1149
        %1154 = vst [vmem:[%s1138 + $0x1a] sm:$0xff] %v1150
        %s1155 = scalar_lea.vmem [#allocation3], 200
        %v1156 = vld [vmem:[%s1155 + $0x2] sm:$0xff]
        %v1157 = vld [vmem:[%s1155 + $0xa] sm:$0xff]
        %v1158 = vld [vmem:[%s1155 + $0x12] sm:$0xff]
        %v1159 = vld [vmem:[%s1155 + $0x1a] sm:$0xff]
        %v1160 = vmul.f32 %v1029, %v1134
        %v1161 = vmul.f32 %v1029, %v1135
        %v1162 = vmul.f32 %v1029, %v1136
        %v1163 = vmul.f32 %v1029, %v1137
        %v1164 = vadd.f32 %v1156, %v1160
        %v1165 = vadd.f32 %v1157, %v1161
        %v1166 = vadd.f32 %v1158, %v1162
        %v1167 = vadd.f32 %v1159, %v1163
        %1168 = vst [vmem:[%s1155 + $0x2] sm:$0xff] %v1164
        %1169 = vst [vmem:[%s1155 + $0xa] sm:$0xff] %v1165
        %1170 = vst [vmem:[%s1155 + $0x12] sm:$0xff] %v1166
        %1171 = vst [vmem:[%s1155 + $0x1a] sm:$0xff] %v1167
        %s1172 = scalar_lea.vmem [#allocation2], 160
        %v1173 = vld [vmem:[%s1172] sm:$0xff]
        %v1174 = vld [vmem:[%s1172 + $0x8] sm:$0xff]
        %v1175 = vld [vmem:[%s1172 + $0x10] sm:$0xff]
        %v1176 = vld [vmem:[%s1172 + $0x18] sm:$0xff]
        %v1177 = vmul.f32 %v1118, 0.75
        %v1178 = vmul.f32 %v1119, 0.75
        %v1179 = vmul.f32 %v1120, 0.75
        %v1180 = vmul.f32 %v1121, 0.75
        %v1181 = vadd.f32 %v1076, %v1177
        %v1182 = vadd.f32 %v1077, %v1178
        %v1183 = vadd.f32 %v1078, %v1179
        %v1184 = vadd.f32 %v1079, %v1180
        %v1185 = vmul.f32 %v1173, 0.25
        %v1186 = vmul.f32 %v1174, 0.25
        %v1187 = vmul.f32 %v1175, 0.25
        %v1188 = vmul.f32 %v1176, 0.25
        %v1189 = vadd.f32 %v1177, %v1185
        %v1190 = vadd.f32 %v1178, %v1186
        %v1191 = vadd.f32 %v1179, %v1187
        %v1192 = vadd.f32 %v1180, %v1188
        %s1193 = scalar_lea.vmem [#allocation3], 240
        %v1194 = vld [vmem:[%s1193 + $0x2] sm:$0xff]
        %v1195 = vld [vmem:[%s1193 + $0xa] sm:$0xff]
        %v1196 = vld [vmem:[%s1193 + $0x12] sm:$0xff]
        %v1197 = vld [vmem:[%s1193 + $0x1a] sm:$0xff]
        %v1198 = vmul.f32 %v1029, %v1181
        %v1199 = vmul.f32 %v1029, %v1182
        %v1200 = vmul.f32 %v1029, %v1183
        %v1201 = vmul.f32 %v1029, %v1184
        %v1202 = vadd.f32 %v1194, %v1198
        %v1203 = vadd.f32 %v1195, %v1199
        %v1204 = vadd.f32 %v1196, %v1200
        %v1205 = vadd.f32 %v1197, %v1201
        %1206 = vst [vmem:[%s1193 + $0x2] sm:$0xff] %v1202
        %1207 = vst [vmem:[%s1193 + $0xa] sm:$0xff] %v1203
        %1208 = vst [vmem:[%s1193 + $0x12] sm:$0xff] %v1204
        %1209 = vst [vmem:[%s1193 + $0x1a] sm:$0xff] %v1205
        %s1210 = scalar_lea.vmem [#allocation3], 280
        %v1211 = vld [vmem:[%s1210 + $0x2] sm:$0xff]
        %v1212 = vld [vmem:[%s1210 + $0xa] sm:$0xff]
        %v1213 = vld [vmem:[%s1210 + $0x12] sm:$0xff]
        %v1214 = vld [vmem:[%s1210 + $0x1a] sm:$0xff]
        %v1215 = vmul.f32 %v1029, %v1189
        %v1216 = vmul.f32 %v1029, %v1190
        %v1217 = vmul.f32 %v1029, %v1191
        %v1218 = vmul.f32 %v1029, %v1192
        %v1219 = vadd.f32 %v1211, %v1215
        %v1220 = vadd.f32 %v1212, %v1216
        %v1221 = vadd.f32 %v1213, %v1217
        %v1222 = vadd.f32 %v1214, %v1218
        %1223 = vst [vmem:[%s1210 + $0x2] sm:$0xff] %v1219
        %1224 = vst [vmem:[%s1210 + $0xa] sm:$0xff] %v1220
        %1225 = vst [vmem:[%s1210 + $0x12] sm:$0xff] %v1221
        %1226 = vst [vmem:[%s1210 + $0x1a] sm:$0xff] %v1222
        %v1227 = vld [vmem:[%s810] sm:$0xff]
        %v1228 = vld [vmem:[%s810 + $0x8] sm:$0xff]
        %v1229 = vld [vmem:[%s810 + $0x10] sm:$0xff]
        %v1230 = vld [vmem:[%s810 + $0x18] sm:$0xff]
        %v1231 = vmul.f32 %v1173, 0.75
        %v1232 = vmul.f32 %v1174, 0.75
        %v1233 = vmul.f32 %v1175, 0.75
        %v1234 = vmul.f32 %v1176, 0.75
        %v1235 = vadd.f32 %v1130, %v1231
        %v1236 = vadd.f32 %v1131, %v1232
        %v1237 = vadd.f32 %v1132, %v1233
        %v1238 = vadd.f32 %v1133, %v1234
        %v1239 = vmul.f32 %v1227, 0.25
        %v1240 = vmul.f32 %v1228, 0.25
        %v1241 = vmul.f32 %v1229, 0.25
        %v1242 = vmul.f32 %v1230, 0.25
        %v1243 = vadd.f32 %v1231, %v1239
        %v1244 = vadd.f32 %v1232, %v1240
        %v1245 = vadd.f32 %v1233, %v1241
        %v1246 = vadd.f32 %v1234, %v1242
        %s1247 = scalar_lea.vmem [#allocation3], 320
        %v1248 = vld [vmem:[%s1247 + $0x2] sm:$0xff]
        %v1249 = vld [vmem:[%s1247 + $0xa] sm:$0xff]
        %v1250 = vld [vmem:[%s1247 + $0x12] sm:$0xff]
        %v1251 = vld [vmem:[%s1247 + $0x1a] sm:$0xff]
        %v1252 = vmul.f32 %v1029, %v1235
        %v1253 = vmul.f32 %v1029, %v1236
        %v1254 = vmul.f32 %v1029, %v1237
        %v1255 = vmul.f32 %v1029, %v1238
        %v1256 = vadd.f32 %v1248, %v1252
        %v1257 = vadd.f32 %v1249, %v1253
        %v1258 = vadd.f32 %v1250, %v1254
        %v1259 = vadd.f32 %v1251, %v1255
        %1260 = vst [vmem:[%s1247 + $0x2] sm:$0xff] %v1256
        %1261 = vst [vmem:[%s1247 + $0xa] sm:$0xff] %v1257
        %1262 = vst [vmem:[%s1247 + $0x12] sm:$0xff] %v1258
        %1263 = vst [vmem:[%s1247 + $0x1a] sm:$0xff] %v1259
        %s1264 = scalar_lea.vmem [#allocation3], 360
        %v1265 = vld [vmem:[%s1264 + $0x2] sm:$0xff]
        %v1266 = vld [vmem:[%s1264 + $0xa] sm:$0xff]
        %v1267 = vld [vmem:[%s1264 + $0x12] sm:$0xff]
        %v1268 = vld [vmem:[%s1264 + $0x1a] sm:$0xff]
        %v1269 = vmul.f32 %v1029, %v1243
        %v1270 = vmul.f32 %v1029, %v1244
        %v1271 = vmul.f32 %v1029, %v1245
        %v1272 = vmul.f32 %v1029, %v1246
        %v1273 = vadd.f32 %v1265, %v1269
        %v1274 = vadd.f32 %v1266, %v1270
        %v1275 = vadd.f32 %v1267, %v1271
        %v1276 = vadd.f32 %v1268, %v1272
        %1277 = vst [vmem:[%s1264 + $0x2] sm:$0xff] %v1273
        %1278 = vst [vmem:[%s1264 + $0xa] sm:$0xff] %v1274
        %1279 = vst [vmem:[%s1264 + $0x12] sm:$0xff] %v1275
        %1280 = vst [vmem:[%s1264 + $0x1a] sm:$0xff] %v1276
        %s1281 = scalar_lea.vmem [#allocation2], 224
        %v1282 = vld [vmem:[%s1281] sm:$0xff]
        %v1283 = vld [vmem:[%s1281 + $0x8] sm:$0xff]
        %v1284 = vld [vmem:[%s1281 + $0x10] sm:$0xff]
        %v1285 = vld [vmem:[%s1281 + $0x18] sm:$0xff]
        %v1286 = vmul.f32 %v1227, 0.75
        %v1287 = vmul.f32 %v1228, 0.75
        %v1288 = vmul.f32 %v1229, 0.75
        %v1289 = vmul.f32 %v1230, 0.75
        %v1290 = vadd.f32 %v1185, %v1286
        %v1291 = vadd.f32 %v1186, %v1287
        %v1292 = vadd.f32 %v1187, %v1288
        %v1293 = vadd.f32 %v1188, %v1289
        %v1294 = vmul.f32 %v1282, 0.25
        %v1295 = vmul.f32 %v1283, 0.25
        %v1296 = vmul.f32 %v1284, 0.25
        %v1297 = vmul.f32 %v1285, 0.25
        %v1298 = vadd.f32 %v1286, %v1294
        %v1299 = vadd.f32 %v1287, %v1295
        %v1300 = vadd.f32 %v1288, %v1296
        %v1301 = vadd.f32 %v1289, %v1297
        %v1302 = vld [vmem:[%s983 + $0x2] sm:$0xff]
        %v1303 = vld [vmem:[%s983 + $0xa] sm:$0xff]
        %v1304 = vld [vmem:[%s983 + $0x12] sm:$0xff]
        %v1305 = vld [vmem:[%s983 + $0x1a] sm:$0xff]
        %v1306 = vmul.f32 %v1029, %v1290
        %v1307 = vmul.f32 %v1029, %v1291
        %v1308 = vmul.f32 %v1029, %v1292
        %v1309 = vmul.f32 %v1029, %v1293
        %v1310 = vadd.f32 %v1302, %v1306
        %v1311 = vadd.f32 %v1303, %v1307
        %v1312 = vadd.f32 %v1304, %v1308
        %v1313 = vadd.f32 %v1305, %v1309
        %1314 = vst [vmem:[%s983 + $0x2] sm:$0xff] %v1310
        %1315 = vst [vmem:[%s983 + $0xa] sm:$0xff] %v1311
        %1316 = vst [vmem:[%s983 + $0x12] sm:$0xff] %v1312
        %1317 = vst [vmem:[%s983 + $0x1a] sm:$0xff] %v1313
        %s1318 = scalar_lea.vmem [#allocation3], 440
        %v1319 = vld [vmem:[%s1318 + $0x2] sm:$0xff]
        %v1320 = vld [vmem:[%s1318 + $0xa] sm:$0xff]
        %v1321 = vld [vmem:[%s1318 + $0x12] sm:$0xff]
        %v1322 = vld [vmem:[%s1318 + $0x1a] sm:$0xff]
        %v1323 = vmul.f32 %v1029, %v1298
        %v1324 = vmul.f32 %v1029, %v1299
        %v1325 = vmul.f32 %v1029, %v1300
        %v1326 = vmul.f32 %v1029, %v1301
        %v1327 = vadd.f32 %v1319, %v1323
        %v1328 = vadd.f32 %v1320, %v1324
        %v1329 = vadd.f32 %v1321, %v1325
        %v1330 = vadd.f32 %v1322, %v1326
        %1331 = vst [vmem:[%s1318 + $0x2] sm:$0xff] %v1327
        %1332 = vst [vmem:[%s1318 + $0xa] sm:$0xff] %v1328
        %1333 = vst [vmem:[%s1318 + $0x12] sm:$0xff] %v1329
        %1334 = vst [vmem:[%s1318 + $0x1a] sm:$0xff] %v1330
        %1335 = vst [vmem:[#allocation3] sm:$0x3] 0.0
        %1336 = vst [vmem:[#allocation3 + $0x28] sm:$0x3] 0.0
        %1337 = vst [vmem:[#allocation3 + $0x50] sm:$0x3] 0.0
        %1338 = vst [vmem:[#allocation3 + $0x78] sm:$0x3] 0.0
        %1339 = vst [vmem:[#allocation3 + $0xa0] sm:$0x3] 0.0
        %1340 = vst [vmem:[#allocation3 + $0xc8] sm:$0x3] 0.0
        %1341 = vst [vmem:[#allocation3 + $0xf0] sm:$0x3] 0.0
        %1342 = vst [vmem:[#allocation3 + $0x118] sm:$0x3] 0.0
        %1343 = vst [vmem:[#allocation3 + $0x140] sm:$0x3] 0.0
        %1344 = vst [vmem:[#allocation3 + $0x168] sm:$0x3] 0.0
        %1345 = vst [vmem:[#allocation3 + $0x190] sm:$0x3] 0.0
        %1346 = vst [vmem:[#allocation3 + $0x1b8] sm:$0x3] 0.0
        %1347 = vst [vmem:[#allocation3 + $0x22] sm:$0x3] 0.0
        %1348 = vst [vmem:[#allocation3 + $0x4a] sm:$0x3] 0.0
        %1349 = vst [vmem:[#allocation3 + $0x72] sm:$0x3] 0.0
        %1350 = vst [vmem:[#allocation3 + $0x9a] sm:$0x3] 0.0
        %1351 = vst [vmem:[#allocation3 + $0xc2] sm:$0x3] 0.0
        %1352 = vst [vmem:[#allocation3 + $0xea] sm:$0x3] 0.0
        %1353 = vst [vmem:[#allocation3 + $0x112] sm:$0x3] 0.0
        %1354 = vst [vmem:[#allocation3 + $0x13a] sm:$0x3] 0.0
        %1355 = vst [vmem:[#allocation3 + $0x162] sm:$0x3] 0.0
        %1356 = vst [vmem:[#allocation3 + $0x18a] sm:$0x3] 0.0
        %1357 = vst [vmem:[#allocation3 + $0x1b2] sm:$0x3] 0.0
        %1358 = vst [vmem:[#allocation3 + $0x1da] sm:$0x3] 0.0
        // Predicated region
        $region109: #{_lambda_.1} parent=59 // pred_check
          %p1359 = pneg %p819
        $region110: #{_lambda_.1} parent=59 // pred_check_branch
          %1361 = sbr.rel (%p1359) target = $region112
        $region111: #{_lambda_.1} parent=59 // pred_region
          %1362 = vst [vmem:[#allocation3] sm:$0xff] 0.0
          %1363 = vst [vmem:[#allocation3 + $0x8] sm:$0xff] 0.0
          %1364 = vst [vmem:[#allocation3 + $0x10] sm:$0xff] 0.0
          %1365 = vst [vmem:[#allocation3 + $0x18] sm:$0xff] 0.0
          %1366 = vst [vmem:[#allocation3 + $0x20] sm:$0xf] 0.0
          %1367 = vst [vmem:[#allocation3 + $0x28] sm:$0xff] 0.0
          %1368 = vst [vmem:[#allocation3 + $0x30] sm:$0xff] 0.0
          %1369 = vst [vmem:[#allocation3 + $0x38] sm:$0xff] 0.0
          %1370 = vst [vmem:[#allocation3 + $0x40] sm:$0xff] 0.0
          %1371 = vst [vmem:[#allocation3 + $0x48] sm:$0xf] 0.0
        $region112: #{_lambda_.1} parent=59 // pred_fallthru
          _
        // Predicated region
        $region113: #{_lambda_.1} parent=59 // pred_check
          %p1372 = pneg %p832
        $region114: #{_lambda_.1} parent=59 // pred_check_branch
          %1374 = sbr.rel (%p1372) target = $region116
        $region115: #{_lambda_.1} parent=59 // pred_region
          %1375 = vst [vmem:[%s983] sm:$0xff] 0.0
          %1376 = vst [vmem:[%s983 + $0x8] sm:$0xff] 0.0
          %1377 = vst [vmem:[%s983 + $0x10] sm:$0xff] 0.0
          %1378 = vst [vmem:[%s983 + $0x18] sm:$0xff] 0.0
          %1379 = vst [vmem:[%s983 + $0x20] sm:$0xf] 0.0
          %1380 = vst [vmem:[%s983 + $0x28] sm:$0xff] 0.0
          %1381 = vst [vmem:[%s983 + $0x30] sm:$0xff] 0.0
          %1382 = vst [vmem:[%s983 + $0x38] sm:$0xff] 0.0
          %1383 = vst [vmem:[%s983 + $0x40] sm:$0xff] 0.0
          %1384 = vst [vmem:[%s983 + $0x48] sm:$0xf] 0.0
        $region116: #{_lambda_.1} parent=59 // pred_fallthru
          _
        %v1385 = vld [vmem:[#allocation17] sm:$0x1]
        %v1386 = vld [vmem:[#allocation3] sm:$0xff]
        %v1387 = vld [vmem:[#allocation3 + $0x8] sm:$0xff]
        %v1388 = vld [vmem:[#allocation3 + $0x10] sm:$0xff]
        %v1389 = vld [vmem:[#allocation3 + $0x18] sm:$0xff]
        %v1390 = vld [vmem:[#allocation3 + $0x28] sm:$0xff]
        %v1391 = vld [vmem:[#allocation3 + $0x30] sm:$0xff]
        %v1392 = vld [vmem:[#allocation3 + $0x38] sm:$0xff]
        %v1393 = vld [vmem:[#allocation3 + $0x40] sm:$0xff]
        %v1394 = vld [vmem:[#allocation3 + $0x50] sm:$0xff]
        %v1395 = vld [vmem:[#allocation3 + $0x58] sm:$0xff]
        %v1396 = vld [vmem:[#allocation3 + $0x60] sm:$0xff]
        %v1397 = vld [vmem:[#allocation3 + $0x68] sm:$0xff]
        %v1398 = vld [vmem:[#allocation3 + $0x78] sm:$0xff]
        %v1399 = vld [vmem:[#allocation3 + $0x80] sm:$0xff]
        %v1400 = vld [vmem:[#allocation3 + $0x88] sm:$0xff]
        %v1401 = vld [vmem:[#allocation3 + $0x90] sm:$0xff]
        %v1402 = vld [vmem:[#allocation3 + $0xa0] sm:$0xff]
        %v1403 = vld [vmem:[#allocation3 + $0xa8] sm:$0xff]
        %v1404 = vld [vmem:[#allocation3 + $0xb0] sm:$0xff]
        %v1405 = vld [vmem:[#allocation3 + $0xb8] sm:$0xff]
        %v1406 = vld [vmem:[#allocation3 + $0xc8] sm:$0xff]
        %v1407 = vld [vmem:[#allocation3 + $0xd0] sm:$0xff]
        %v1408 = vld [vmem:[#allocation3 + $0xd8] sm:$0xff]
        %v1409 = vld [vmem:[#allocation3 + $0xe0] sm:$0xff]
        %v1410 = vld [vmem:[#allocation3 + $0xf0] sm:$0xff]
        %v1411 = vld [vmem:[#allocation3 + $0xf8] sm:$0xff]
        %v1412 = vld [vmem:[#allocation3 + $0x100] sm:$0xff]
        %v1413 = vld [vmem:[#allocation3 + $0x108] sm:$0xff]
        %v1414 = vld [vmem:[#allocation3 + $0x118] sm:$0xff]
        %v1415 = vld [vmem:[#allocation3 + $0x120] sm:$0xff]
        %v1416 = vld [vmem:[#allocation3 + $0x128] sm:$0xff]
        %v1417 = vld [vmem:[#allocation3 + $0x130] sm:$0xff]
        %v1418 = vlaneseq
        %v1419 = vshrl.u32 %v1418, 7
        %v1420 = vsub.s32 0, %v1419
        %v1421 = vrot.slane %v1385, %v1420
        %v1422 = vmul.f32 %v1421, %v1386
        %v1423 = vmul.f32 %v1421, %v1387
        %v1424 = vmul.f32 %v1421, %v1388
        %v1425 = vmul.f32 %v1421, %v1389
        %v1426 = vmul.f32 %v1421, %v1390
        %v1427 = vmul.f32 %v1421, %v1391
        %v1428 = vmul.f32 %v1421, %v1392
        %v1429 = vmul.f32 %v1421, %v1393
        %v1430 = vmul.f32 %v1421, %v1394
        %v1431 = vmul.f32 %v1421, %v1395
        %v1432 = vmul.f32 %v1421, %v1396
        %v1433 = vmul.f32 %v1421, %v1397
        %v1434 = vmul.f32 %v1421, %v1398
        %v1435 = vmul.f32 %v1421, %v1399
        %v1436 = vmul.f32 %v1421, %v1400
        %v1437 = vmul.f32 %v1421, %v1401
        %v1438 = vmul.f32 %v1421, %v1402
        %v1439 = vmul.f32 %v1421, %v1403
        %v1440 = vmul.f32 %v1421, %v1404
        %v1441 = vmul.f32 %v1421, %v1405
        %v1442 = vmul.f32 %v1421, %v1406
        %v1443 = vmul.f32 %v1421, %v1407
        %v1444 = vmul.f32 %v1421, %v1408
        %v1445 = vmul.f32 %v1421, %v1409
        %v1446 = vmul.f32 %v1421, %v1410
        %v1447 = vmul.f32 %v1421, %v1411
        %v1448 = vmul.f32 %v1421, %v1412
        %v1449 = vmul.f32 %v1421, %v1413
        %v1450 = vmul.f32 %v1421, %v1414
        %v1451 = vmul.f32 %v1421, %v1415
        %v1452 = vmul.f32 %v1421, %v1416
        %v1453 = vmul.f32 %v1421, %v1417
        %v1454 = vadd.f32 %v1422, 0.0
        %v1455 = vadd.f32 %v1423, 0.0
        %v1456 = vadd.f32 %v1424, 0.0
        %v1457 = vadd.f32 %v1425, 0.0
        %v1458 = vadd.f32 %v1426, 0.0
        %v1459 = vadd.f32 %v1427, 0.0
        %v1460 = vadd.f32 %v1428, 0.0
        %v1461 = vadd.f32 %v1429, 0.0
        %v1462 = vadd.f32 %v1430, 0.0
        %v1463 = vadd.f32 %v1431, 0.0
        %v1464 = vadd.f32 %v1432, 0.0
        %v1465 = vadd.f32 %v1433, 0.0
        %v1466 = vadd.f32 %v1434, 0.0
        %v1467 = vadd.f32 %v1435, 0.0
        %v1468 = vadd.f32 %v1436, 0.0
        %v1469 = vadd.f32 %v1437, 0.0
        %v1470 = vadd.f32 %v1438, 0.0
        %v1471 = vadd.f32 %v1439, 0.0
        %v1472 = vadd.f32 %v1440, 0.0
        %v1473 = vadd.f32 %v1441, 0.0
        %v1474 = vadd.f32 %v1442, 0.0
        %v1475 = vadd.f32 %v1443, 0.0
        %v1476 = vadd.f32 %v1444, 0.0
        %v1477 = vadd.f32 %v1445, 0.0
        %v1478 = vadd.f32 %v1446, 0.0
        %v1479 = vadd.f32 %v1447, 0.0
        %v1480 = vadd.f32 %v1448, 0.0
        %v1481 = vadd.f32 %v1449, 0.0
        %v1482 = vadd.f32 %v1450, 0.0
        %v1483 = vadd.f32 %v1451, 0.0
        %v1484 = vadd.f32 %v1452, 0.0
        %v1485 = vadd.f32 %v1453, 0.0
        %v1486 = vld [vmem:[#allocation17 + $0x1] sm:$0x1]
        %v1487 = vld [vmem:[#allocation3 + $0x1] sm:$0xff]
        %v1488 = vld [vmem:[#allocation3 + $0x9] sm:$0xff]
        %v1489 = vld [vmem:[#allocation3 + $0x11] sm:$0xff]
        %v1490 = vld [vmem:[#allocation3 + $0x19] sm:$0xff]
        %v1491 = vld [vmem:[#allocation3 + $0x29] sm:$0xff]
        %v1492 = vld [vmem:[#allocation3 + $0x31] sm:$0xff]
        %v1493 = vld [vmem:[#allocation3 + $0x39] sm:$0xff]
        %v1494 = vld [vmem:[#allocation3 + $0x41] sm:$0xff]
        %v1495 = vld [vmem:[#allocation3 + $0x51] sm:$0xff]
        %v1496 = vld [vmem:[#allocation3 + $0x59] sm:$0xff]
        %v1497 = vld [vmem:[#allocation3 + $0x61] sm:$0xff]
        %v1498 = vld [vmem:[#allocation3 + $0x69] sm:$0xff]
        %v1499 = vld [vmem:[#allocation3 + $0x79] sm:$0xff]
        %v1500 = vld [vmem:[#allocation3 + $0x81] sm:$0xff]
        %v1501 = vld [vmem:[#allocation3 + $0x89] sm:$0xff]
        %v1502 = vld [vmem:[#allocation3 + $0x91] sm:$0xff]
        %v1503 = vld [vmem:[#allocation3 + $0xa1] sm:$0xff]
        %v1504 = vld [vmem:[#allocation3 + $0xa9] sm:$0xff]
        %v1505 = vld [vmem:[#allocation3 + $0xb1] sm:$0xff]
        %v1506 = vld [vmem:[#allocation3 + $0xb9] sm:$0xff]
        %v1507 = vld [vmem:[#allocation3 + $0xc9] sm:$0xff]
        %v1508 = vld [vmem:[#allocation3 + $0xd1] sm:$0xff]
        %v1509 = vld [vmem:[#allocation3 + $0xd9] sm:$0xff]
        %v1510 = vld [vmem:[#allocation3 + $0xe1] sm:$0xff]
        %v1511 = vld [vmem:[#allocation3 + $0xf1] sm:$0xff]
        %v1512 = vld [vmem:[#allocation3 + $0xf9] sm:$0xff]
        %v1513 = vld [vmem:[#allocation3 + $0x101] sm:$0xff]
        %v1514 = vld [vmem:[#allocation3 + $0x109] sm:$0xff]
        %v1515 = vld [vmem:[#allocation3 + $0x119] sm:$0xff]
        %v1516 = vld [vmem:[#allocation3 + $0x121] sm:$0xff]
        %v1517 = vld [vmem:[#allocation3 + $0x129] sm:$0xff]
        %v1518 = vld [vmem:[#allocation3 + $0x131] sm:$0xff]
        %v1519 = vlaneseq
        %v1520 = vshrl.u32 %v1519, 7
        %v1521 = vsub.s32 0, %v1520
        %v1522 = vrot.slane %v1486, %v1521
        %v1523 = vmul.f32 %v1522, %v1487
        %v1524 = vmul.f32 %v1522, %v1488
        %v1525 = vmul.f32 %v1522, %v1489
        %v1526 = vmul.f32 %v1522, %v1490
        %v1527 = vmul.f32 %v1522, %v1491
        %v1528 = vmul.f32 %v1522, %v1492
        %v1529 = vmul.f32 %v1522, %v1493
        %v1530 = vmul.f32 %v1522, %v1494
        %v1531 = vmul.f32 %v1522, %v1495
        %v1532 = vmul.f32 %v1522, %v1496
        %v1533 = vmul.f32 %v1522, %v1497
        %v1534 = vmul.f32 %v1522, %v1498
        %v1535 = vmul.f32 %v1522, %v1499
        %v1536 = vmul.f32 %v1522, %v1500
        %v1537 = vmul.f32 %v1522, %v1501
        %v1538 = vmul.f32 %v1522, %v1502
        %v1539 = vmul.f32 %v1522, %v1503
        %v1540 = vmul.f32 %v1522, %v1504
        %v1541 = vmul.f32 %v1522, %v1505
        %v1542 = vmul.f32 %v1522, %v1506
        %v1543 = vmul.f32 %v1522, %v1507
        %v1544 = vmul.f32 %v1522, %v1508
        %v1545 = vmul.f32 %v1522, %v1509
        %v1546 = vmul.f32 %v1522, %v1510
        %v1547 = vmul.f32 %v1522, %v1511
        %v1548 = vmul.f32 %v1522, %v1512
        %v1549 = vmul.f32 %v1522, %v1513
        %v1550 = vmul.f32 %v1522, %v1514
        %v1551 = vmul.f32 %v1522, %v1515
        %v1552 = vmul.f32 %v1522, %v1516
        %v1553 = vmul.f32 %v1522, %v1517
        %v1554 = vmul.f32 %v1522, %v1518
        %v1555 = vadd.f32 %v1454, %v1523
        %v1556 = vadd.f32 %v1455, %v1524
        %v1557 = vadd.f32 %v1456, %v1525
        %v1558 = vadd.f32 %v1457, %v1526
        %v1559 = vadd.f32 %v1458, %v1527
        %v1560 = vadd.f32 %v1459, %v1528
        %v1561 = vadd.f32 %v1460, %v1529
        %v1562 = vadd.f32 %v1461, %v1530
        %v1563 = vadd.f32 %v1462, %v1531
        %v1564 = vadd.f32 %v1463, %v1532
        %v1565 = vadd.f32 %v1464, %v1533
        %v1566 = vadd.f32 %v1465, %v1534
        %v1567 = vadd.f32 %v1466, %v1535
        %v1568 = vadd.f32 %v1467, %v1536
        %v1569 = vadd.f32 %v1468, %v1537
        %v1570 = vadd.f32 %v1469, %v1538
        %v1571 = vadd.f32 %v1470, %v1539
        %v1572 = vadd.f32 %v1471, %v1540
        %v1573 = vadd.f32 %v1472, %v1541
        %v1574 = vadd.f32 %v1473, %v1542
        %v1575 = vadd.f32 %v1474, %v1543
        %v1576 = vadd.f32 %v1475, %v1544
        %v1577 = vadd.f32 %v1476, %v1545
        %v1578 = vadd.f32 %v1477, %v1546
        %v1579 = vadd.f32 %v1478, %v1547
        %v1580 = vadd.f32 %v1479, %v1548
        %v1581 = vadd.f32 %v1480, %v1549
        %v1582 = vadd.f32 %v1481, %v1550
        %v1583 = vadd.f32 %v1482, %v1551
        %v1584 = vadd.f32 %v1483, %v1552
        %v1585 = vadd.f32 %v1484, %v1553
        %v1586 = vadd.f32 %v1485, %v1554
        %v1587 = vld [vmem:[#allocation17 + $0x2] sm:$0x1]
        %v1588 = vld [vmem:[#allocation3 + $0x2] sm:$0xff]
        %v1589 = vld [vmem:[#allocation3 + $0xa] sm:$0xff]
        %v1590 = vld [vmem:[#allocation3 + $0x12] sm:$0xff]
        %v1591 = vld [vmem:[#allocation3 + $0x1a] sm:$0xff]
        %v1592 = vld [vmem:[#allocation3 + $0x2a] sm:$0xff]
        %v1593 = vld [vmem:[#allocation3 + $0x32] sm:$0xff]
        %v1594 = vld [vmem:[#allocation3 + $0x3a] sm:$0xff]
        %v1595 = vld [vmem:[#allocation3 + $0x42] sm:$0xff]
        %v1596 = vld [vmem:[#allocation3 + $0x52] sm:$0xff]
        %v1597 = vld [vmem:[#allocation3 + $0x5a] sm:$0xff]
        %v1598 = vld [vmem:[#allocation3 + $0x62] sm:$0xff]
        %v1599 = vld [vmem:[#allocation3 + $0x6a] sm:$0xff]
        %v1600 = vld [vmem:[#allocation3 + $0x7a] sm:$0xff]
        %v1601 = vld [vmem:[#allocation3 + $0x82] sm:$0xff]
        %v1602 = vld [vmem:[#allocation3 + $0x8a] sm:$0xff]
        %v1603 = vld [vmem:[#allocation3 + $0x92] sm:$0xff]
        %v1604 = vld [vmem:[#allocation3 + $0xa2] sm:$0xff]
        %v1605 = vld [vmem:[#allocation3 + $0xaa] sm:$0xff]
        %v1606 = vld [vmem:[#allocation3 + $0xb2] sm:$0xff]
        %v1607 = vld [vmem:[#allocation3 + $0xba] sm:$0xff]
        %v1608 = vld [vmem:[#allocation3 + $0xca] sm:$0xff]
        %v1609 = vld [vmem:[#allocation3 + $0xd2] sm:$0xff]
        %v1610 = vld [vmem:[#allocation3 + $0xda] sm:$0xff]
        %v1611 = vld [vmem:[#allocation3 + $0xe2] sm:$0xff]
        %v1612 = vld [vmem:[#allocation3 + $0xf2] sm:$0xff]
        %v1613 = vld [vmem:[#allocation3 + $0xfa] sm:$0xff]
        %v1614 = vld [vmem:[#allocation3 + $0x102] sm:$0xff]
        %v1615 = vld [vmem:[#allocation3 + $0x10a] sm:$0xff]
        %v1616 = vld [vmem:[#allocation3 + $0x11a] sm:$0xff]
        %v1617 = vld [vmem:[#allocation3 + $0x122] sm:$0xff]
        %v1618 = vld [vmem:[#allocation3 + $0x12a] sm:$0xff]
        %v1619 = vld [vmem:[#allocation3 + $0x132] sm:$0xff]
        %v1620 = vlaneseq
        %v1621 = vshrl.u32 %v1620, 7
        %v1622 = vsub.s32 0, %v1621
        %v1623 = vrot.slane %v1587, %v1622
        %v1624 = vmul.f32 %v1623, %v1588
        %v1625 = vmul.f32 %v1623, %v1589
        %v1626 = vmul.f32 %v1623, %v1590
        %v1627 = vmul.f32 %v1623, %v1591
        %v1628 = vmul.f32 %v1623, %v1592
        %v1629 = vmul.f32 %v1623, %v1593
        %v1630 = vmul.f32 %v1623, %v1594
        %v1631 = vmul.f32 %v1623, %v1595
        %v1632 = vmul.f32 %v1623, %v1596
        %v1633 = vmul.f32 %v1623, %v1597
        %v1634 = vmul.f32 %v1623, %v1598
        %v1635 = vmul.f32 %v1623, %v1599
        %v1636 = vmul.f32 %v1623, %v1600
        %v1637 = vmul.f32 %v1623, %v1601
        %v1638 = vmul.f32 %v1623, %v1602
        %v1639 = vmul.f32 %v1623, %v1603
        %v1640 = vmul.f32 %v1623, %v1604
        %v1641 = vmul.f32 %v1623, %v1605
        %v1642 = vmul.f32 %v1623, %v1606
        %v1643 = vmul.f32 %v1623, %v1607
        %v1644 = vmul.f32 %v1623, %v1608
        %v1645 = vmul.f32 %v1623, %v1609
        %v1646 = vmul.f32 %v1623, %v1610
        %v1647 = vmul.f32 %v1623, %v1611
        %v1648 = vmul.f32 %v1623, %v1612
        %v1649 = vmul.f32 %v1623, %v1613
        %v1650 = vmul.f32 %v1623, %v1614
        %v1651 = vmul.f32 %v1623, %v1615
        %v1652 = vmul.f32 %v1623, %v1616
        %v1653 = vmul.f32 %v1623, %v1617
        %v1654 = vmul.f32 %v1623, %v1618
        %v1655 = vmul.f32 %v1623, %v1619
        %v1656 = vadd.f32 %v1555, %v1624
        %v1657 = vadd.f32 %v1556, %v1625
        %v1658 = vadd.f32 %v1557, %v1626
        %v1659 = vadd.f32 %v1558, %v1627
        %v1660 = vadd.f32 %v1559, %v1628
        %v1661 = vadd.f32 %v1560, %v1629
        %v1662 = vadd.f32 %v1561, %v1630
        %v1663 = vadd.f32 %v1562, %v1631
        %v1664 = vadd.f32 %v1563, %v1632
        %v1665 = vadd.f32 %v1564, %v1633
        %v1666 = vadd.f32 %v1565, %v1634
        %v1667 = vadd.f32 %v1566, %v1635
        %v1668 = vadd.f32 %v1567, %v1636
        %v1669 = vadd.f32 %v1568, %v1637
        %v1670 = vadd.f32 %v1569, %v1638
        %v1671 = vadd.f32 %v1570, %v1639
        %v1672 = vadd.f32 %v1571, %v1640
        %v1673 = vadd.f32 %v1572, %v1641
        %v1674 = vadd.f32 %v1573, %v1642
        %v1675 = vadd.f32 %v1574, %v1643
        %v1676 = vadd.f32 %v1575, %v1644
        %v1677 = vadd.f32 %v1576, %v1645
        %v1678 = vadd.f32 %v1577, %v1646
        %v1679 = vadd.f32 %v1578, %v1647
        %v1680 = vadd.f32 %v1579, %v1648
        %v1681 = vadd.f32 %v1580, %v1649
        %v1682 = vadd.f32 %v1581, %v1650
        %v1683 = vadd.f32 %v1582, %v1651
        %v1684 = vadd.f32 %v1583, %v1652
        %v1685 = vadd.f32 %v1584, %v1653
        %v1686 = vadd.f32 %v1585, %v1654
        %v1687 = vadd.f32 %v1586, %v1655
        %v1688 = vld [vmem:[#allocation17 + $0x3] sm:$0x1]
        %v1689 = vld [vmem:[#allocation3 + $0x3] sm:$0xff]
        %v1690 = vld [vmem:[#allocation3 + $0xb] sm:$0xff]
        %v1691 = vld [vmem:[#allocation3 + $0x13] sm:$0xff]
        %v1692 = vld [vmem:[#allocation3 + $0x1b] sm:$0xff]
        %v1693 = vld [vmem:[#allocation3 + $0x2b] sm:$0xff]
        %v1694 = vld [vmem:[#allocation3 + $0x33] sm:$0xff]
        %v1695 = vld [vmem:[#allocation3 + $0x3b] sm:$0xff]
        %v1696 = vld [vmem:[#allocation3 + $0x43] sm:$0xff]
        %v1697 = vld [vmem:[#allocation3 + $0x53] sm:$0xff]
        %v1698 = vld [vmem:[#allocation3 + $0x5b] sm:$0xff]
        %v1699 = vld [vmem:[#allocation3 + $0x63] sm:$0xff]
        %v1700 = vld [vmem:[#allocation3 + $0x6b] sm:$0xff]
        %v1701 = vld [vmem:[#allocation3 + $0x7b] sm:$0xff]
        %v1702 = vld [vmem:[#allocation3 + $0x83] sm:$0xff]
        %v1703 = vld [vmem:[#allocation3 + $0x8b] sm:$0xff]
        %v1704 = vld [vmem:[#allocation3 + $0x93] sm:$0xff]
        %v1705 = vld [vmem:[#allocation3 + $0xa3] sm:$0xff]
        %v1706 = vld [vmem:[#allocation3 + $0xab] sm:$0xff]
        %v1707 = vld [vmem:[#allocation3 + $0xb3] sm:$0xff]
        %v1708 = vld [vmem:[#allocation3 + $0xbb] sm:$0xff]
        %v1709 = vld [vmem:[#allocation3 + $0xcb] sm:$0xff]
        %v1710 = vld [vmem:[#allocation3 + $0xd3] sm:$0xff]
        %v1711 = vld [vmem:[#allocation3 + $0xdb] sm:$0xff]
        %v1712 = vld [vmem:[#allocation3 + $0xe3] sm:$0xff]
        %v1713 = vld [vmem:[#allocation3 + $0xf3] sm:$0xff]
        %v1714 = vld [vmem:[#allocation3 + $0xfb] sm:$0xff]
        %v1715 = vld [vmem:[#allocation3 + $0x103] sm:$0xff]
        %v1716 = vld [vmem:[#allocation3 + $0x10b] sm:$0xff]
        %v1717 = vld [vmem:[#allocation3 + $0x11b] sm:$0xff]
        %v1718 = vld [vmem:[#allocation3 + $0x123] sm:$0xff]
        %v1719 = vld [vmem:[#allocation3 + $0x12b] sm:$0xff]
        %v1720 = vld [vmem:[#allocation3 + $0x133] sm:$0xff]
        %v1721 = vlaneseq
        %v1722 = vshrl.u32 %v1721, 7
        %v1723 = vsub.s32 0, %v1722
        %v1724 = vrot.slane %v1688, %v1723
        %v1725 = vmul.f32 %v1724, %v1689
        %v1726 = vmul.f32 %v1724, %v1690
        %v1727 = vmul.f32 %v1724, %v1691
        %v1728 = vmul.f32 %v1724, %v1692
        %v1729 = vmul.f32 %v1724, %v1693
        %v1730 = vmul.f32 %v1724, %v1694
        %v1731 = vmul.f32 %v1724, %v1695
        %v1732 = vmul.f32 %v1724, %v1696
        %v1733 = vmul.f32 %v1724, %v1697
        %v1734 = vmul.f32 %v1724, %v1698
        %v1735 = vmul.f32 %v1724, %v1699
        %v1736 = vmul.f32 %v1724, %v1700
        %v1737 = vmul.f32 %v1724, %v1701
        %v1738 = vmul.f32 %v1724, %v1702
        %v1739 = vmul.f32 %v1724, %v1703
        %v1740 = vmul.f32 %v1724, %v1704
        %v1741 = vmul.f32 %v1724, %v1705
        %v1742 = vmul.f32 %v1724, %v1706
        %v1743 = vmul.f32 %v1724, %v1707
        %v1744 = vmul.f32 %v1724, %v1708
        %v1745 = vmul.f32 %v1724, %v1709
        %v1746 = vmul.f32 %v1724, %v1710
        %v1747 = vmul.f32 %v1724, %v1711
        %v1748 = vmul.f32 %v1724, %v1712
        %v1749 = vmul.f32 %v1724, %v1713
        %v1750 = vmul.f32 %v1724, %v1714
        %v1751 = vmul.f32 %v1724, %v1715
        %v1752 = vmul.f32 %v1724, %v1716
        %v1753 = vmul.f32 %v1724, %v1717
        %v1754 = vmul.f32 %v1724, %v1718
        %v1755 = vmul.f32 %v1724, %v1719
        %v1756 = vmul.f32 %v1724, %v1720
        %v1757 = vadd.f32 %v1656, %v1725
        %v1758 = vadd.f32 %v1657, %v1726
        %v1759 = vadd.f32 %v1658, %v1727
        %v1760 = vadd.f32 %v1659, %v1728
        %v1761 = vadd.f32 %v1660, %v1729
        %v1762 = vadd.f32 %v1661, %v1730
        %v1763 = vadd.f32 %v1662, %v1731
        %v1764 = vadd.f32 %v1663, %v1732
        %v1765 = vadd.f32 %v1664, %v1733
        %v1766 = vadd.f32 %v1665, %v1734
        %v1767 = vadd.f32 %v1666, %v1735
        %v1768 = vadd.f32 %v1667, %v1736
        %v1769 = vadd.f32 %v1668, %v1737
        %v1770 = vadd.f32 %v1669, %v1738
        %v1771 = vadd.f32 %v1670, %v1739
        %v1772 = vadd.f32 %v1671, %v1740
        %v1773 = vadd.f32 %v1672, %v1741
        %v1774 = vadd.f32 %v1673, %v1742
        %v1775 = vadd.f32 %v1674, %v1743
        %v1776 = vadd.f32 %v1675, %v1744
        %v1777 = vadd.f32 %v1676, %v1745
        %v1778 = vadd.f32 %v1677, %v1746
        %v1779 = vadd.f32 %v1678, %v1747
        %v1780 = vadd.f32 %v1679, %v1748
        %v1781 = vadd.f32 %v1680, %v1749
        %v1782 = vadd.f32 %v1681, %v1750
        %v1783 = vadd.f32 %v1682, %v1751
        %v1784 = vadd.f32 %v1683, %v1752
        %v1785 = vadd.f32 %v1684, %v1753
        %v1786 = vadd.f32 %v1685, %v1754
        %v1787 = vadd.f32 %v1686, %v1755
        %v1788 = vadd.f32 %v1687, %v1756
        %v1789 = vld [vmem:[#allocation17 + $0x4] sm:$0x1]
        %v1790 = vld [vmem:[#allocation3 + $0x4] sm:$0xff]
        %v1791 = vld [vmem:[#allocation3 + $0xc] sm:$0xff]
        %v1792 = vld [vmem:[#allocation3 + $0x14] sm:$0xff]
        %v1793 = vld [vmem:[#allocation3 + $0x1c] sm:$0xff]
        %v1794 = vld [vmem:[#allocation3 + $0x2c] sm:$0xff]
        %v1795 = vld [vmem:[#allocation3 + $0x34] sm:$0xff]
        %v1796 = vld [vmem:[#allocation3 + $0x3c] sm:$0xff]
        %v1797 = vld [vmem:[#allocation3 + $0x44] sm:$0xff]
        %v1798 = vld [vmem:[#allocation3 + $0x54] sm:$0xff]
        %v1799 = vld [vmem:[#allocation3 + $0x5c] sm:$0xff]
        %v1800 = vld [vmem:[#allocation3 + $0x64] sm:$0xff]
        %v1801 = vld [vmem:[#allocation3 + $0x6c] sm:$0xff]
        %v1802 = vld [vmem:[#allocation3 + $0x7c] sm:$0xff]
        %v1803 = vld [vmem:[#allocation3 + $0x84] sm:$0xff]
        %v1804 = vld [vmem:[#allocation3 + $0x8c] sm:$0xff]
        %v1805 = vld [vmem:[#allocation3 + $0x94] sm:$0xff]
        %v1806 = vld [vmem:[#allocation3 + $0xa4] sm:$0xff]
        %v1807 = vld [vmem:[#allocation3 + $0xac] sm:$0xff]
        %v1808 = vld [vmem:[#allocation3 + $0xb4] sm:$0xff]
        %v1809 = vld [vmem:[#allocation3 + $0xbc] sm:$0xff]
        %v1810 = vld [vmem:[#allocation3 + $0xcc] sm:$0xff]
        %v1811 = vld [vmem:[#allocation3 + $0xd4] sm:$0xff]
        %v1812 = vld [vmem:[#allocation3 + $0xdc] sm:$0xff]
        %v1813 = vld [vmem:[#allocation3 + $0xe4] sm:$0xff]
        %v1814 = vld [vmem:[#allocation3 + $0xf4] sm:$0xff]
        %v1815 = vld [vmem:[#allocation3 + $0xfc] sm:$0xff]
        %v1816 = vld [vmem:[#allocation3 + $0x104] sm:$0xff]
        %v1817 = vld [vmem:[#allocation3 + $0x10c] sm:$0xff]
        %v1818 = vld [vmem:[#allocation3 + $0x11c] sm:$0xff]
        %v1819 = vld [vmem:[#allocation3 + $0x124] sm:$0xff]
        %v1820 = vld [vmem:[#allocation3 + $0x12c] sm:$0xff]
        %v1821 = vld [vmem:[#allocation3 + $0x134] sm:$0xff]
        %v1822 = vlaneseq
        %v1823 = vshrl.u32 %v1822, 7
        %v1824 = vsub.s32 0, %v1823
        %v1825 = vrot.slane %v1789, %v1824
        %v1826 = vmul.f32 %v1825, %v1790
        %v1827 = vmul.f32 %v1825, %v1791
        %v1828 = vmul.f32 %v1825, %v1792
        %v1829 = vmul.f32 %v1825, %v1793
        %v1830 = vmul.f32 %v1825, %v1794
        %v1831 = vmul.f32 %v1825, %v1795
        %v1832 = vmul.f32 %v1825, %v1796
        %v1833 = vmul.f32 %v1825, %v1797
        %v1834 = vmul.f32 %v1825, %v1798
        %v1835 = vmul.f32 %v1825, %v1799
        %v1836 = vmul.f32 %v1825, %v1800
        %v1837 = vmul.f32 %v1825, %v1801
        %v1838 = vmul.f32 %v1825, %v1802
        %v1839 = vmul.f32 %v1825, %v1803
        %v1840 = vmul.f32 %v1825, %v1804
        %v1841 = vmul.f32 %v1825, %v1805
        %v1842 = vmul.f32 %v1825, %v1806
        %v1843 = vmul.f32 %v1825, %v1807
        %v1844 = vmul.f32 %v1825, %v1808
        %v1845 = vmul.f32 %v1825, %v1809
        %v1846 = vmul.f32 %v1825, %v1810
        %v1847 = vmul.f32 %v1825, %v1811
        %v1848 = vmul.f32 %v1825, %v1812
        %v1849 = vmul.f32 %v1825, %v1813
        %v1850 = vmul.f32 %v1825, %v1814
        %v1851 = vmul.f32 %v1825, %v1815
        %v1852 = vmul.f32 %v1825, %v1816
        %v1853 = vmul.f32 %v1825, %v1817
        %v1854 = vmul.f32 %v1825, %v1818
        %v1855 = vmul.f32 %v1825, %v1819
        %v1856 = vmul.f32 %v1825, %v1820
        %v1857 = vmul.f32 %v1825, %v1821
        %v1858 = vadd.f32 %v1757, %v1826
        %v1859 = vadd.f32 %v1758, %v1827
        %v1860 = vadd.f32 %v1759, %v1828
        %v1861 = vadd.f32 %v1760, %v1829
        %v1862 = vadd.f32 %v1761, %v1830
        %v1863 = vadd.f32 %v1762, %v1831
        %v1864 = vadd.f32 %v1763, %v1832
        %v1865 = vadd.f32 %v1764, %v1833
        %v1866 = vadd.f32 %v1765, %v1834
        %v1867 = vadd.f32 %v1766, %v1835
        %v1868 = vadd.f32 %v1767, %v1836
        %v1869 = vadd.f32 %v1768, %v1837
        %v1870 = vadd.f32 %v1769, %v1838
        %v1871 = vadd.f32 %v1770, %v1839
        %v1872 = vadd.f32 %v1771, %v1840
        %v1873 = vadd.f32 %v1772, %v1841
        %v1874 = vadd.f32 %v1773, %v1842
        %v1875 = vadd.f32 %v1774, %v1843
        %v1876 = vadd.f32 %v1775, %v1844
        %v1877 = vadd.f32 %v1776, %v1845
        %v1878 = vadd.f32 %v1777, %v1846
        %v1879 = vadd.f32 %v1778, %v1847
        %v1880 = vadd.f32 %v1779, %v1848
        %v1881 = vadd.f32 %v1780, %v1849
        %v1882 = vadd.f32 %v1781, %v1850
        %v1883 = vadd.f32 %v1782, %v1851
        %v1884 = vadd.f32 %v1783, %v1852
        %v1885 = vadd.f32 %v1784, %v1853
        %v1886 = vadd.f32 %v1785, %v1854
        %v1887 = vadd.f32 %v1786, %v1855
        %v1888 = vadd.f32 %v1787, %v1856
        %v1889 = vadd.f32 %v1788, %v1857
        %v1890 = vld [vmem:[#allocation17 + $0x5] sm:$0x1]
        %v1891 = vld [vmem:[%s1042] sm:$0xff]
        %v1892 = vld [vmem:[%s1042 + $0x8] sm:$0xff]
        %v1893 = vld [vmem:[%s1042 + $0x10] sm:$0xff]
        %v1894 = vld [vmem:[%s1042 + $0x18] sm:$0xff]
        %v1895 = vld [vmem:[%s1042 + $0x28] sm:$0xff]
        %v1896 = vld [vmem:[%s1042 + $0x30] sm:$0xff]
        %v1897 = vld [vmem:[%s1042 + $0x38] sm:$0xff]
        %v1898 = vld [vmem:[%s1042 + $0x40] sm:$0xff]
        %v1899 = vld [vmem:[%s1042 + $0x50] sm:$0xff]
        %v1900 = vld [vmem:[%s1042 + $0x58] sm:$0xff]
        %v1901 = vld [vmem:[%s1042 + $0x60] sm:$0xff]
        %v1902 = vld [vmem:[%s1042 + $0x68] sm:$0xff]
        %v1903 = vld [vmem:[%s1042 + $0x78] sm:$0xff]
        %v1904 = vld [vmem:[%s1042 + $0x80] sm:$0xff]
        %v1905 = vld [vmem:[%s1042 + $0x88] sm:$0xff]
        %v1906 = vld [vmem:[%s1042 + $0x90] sm:$0xff]
        %v1907 = vld [vmem:[%s1042 + $0xa0] sm:$0xff]
        %v1908 = vld [vmem:[%s1042 + $0xa8] sm:$0xff]
        %v1909 = vld [vmem:[%s1042 + $0xb0] sm:$0xff]
        %v1910 = vld [vmem:[%s1042 + $0xb8] sm:$0xff]
        %v1911 = vld [vmem:[%s1042 + $0xc8] sm:$0xff]
        %v1912 = vld [vmem:[%s1042 + $0xd0] sm:$0xff]
        %v1913 = vld [vmem:[%s1042 + $0xd8] sm:$0xff]
        %v1914 = vld [vmem:[%s1042 + $0xe0] sm:$0xff]
        %v1915 = vld [vmem:[%s1042 + $0xf0] sm:$0xff]
        %v1916 = vld [vmem:[%s1042 + $0xf8] sm:$0xff]
        %v1917 = vld [vmem:[%s1042 + $0x100] sm:$0xff]
        %v1918 = vld [vmem:[%s1042 + $0x108] sm:$0xff]
        %v1919 = vld [vmem:[%s1042 + $0x118] sm:$0xff]
        %v1920 = vld [vmem:[%s1042 + $0x120] sm:$0xff]
        %v1921 = vld [vmem:[%s1042 + $0x128] sm:$0xff]
        %v1922 = vld [vmem:[%s1042 + $0x130] sm:$0xff]
        %v1923 = vlaneseq
        %v1924 = vshrl.u32 %v1923, 7
        %v1925 = vsub.s32 0, %v1924
        %v1926 = vrot.slane %v1890, %v1925
        %v1927 = vmul.f32 %v1926, %v1891
        %v1928 = vmul.f32 %v1926, %v1892
        %v1929 = vmul.f32 %v1926, %v1893
        %v1930 = vmul.f32 %v1926, %v1894
        %v1931 = vmul.f32 %v1926, %v1895
        %v1932 = vmul.f32 %v1926, %v1896
        %v1933 = vmul.f32 %v1926, %v1897
        %v1934 = vmul.f32 %v1926, %v1898
        %v1935 = vmul.f32 %v1926, %v1899
        %v1936 = vmul.f32 %v1926, %v1900
        %v1937 = vmul.f32 %v1926, %v1901
        %v1938 = vmul.f32 %v1926, %v1902
        %v1939 = vmul.f32 %v1926, %v1903
        %v1940 = vmul.f32 %v1926, %v1904
        %v1941 = vmul.f32 %v1926, %v1905
        %v1942 = vmul.f32 %v1926, %v1906
        %v1943 = vmul.f32 %v1926, %v1907
        %v1944 = vmul.f32 %v1926, %v1908
        %v1945 = vmul.f32 %v1926, %v1909
        %v1946 = vmul.f32 %v1926, %v1910
        %v1947 = vmul.f32 %v1926, %v1911
        %v1948 = vmul.f32 %v1926, %v1912
        %v1949 = vmul.f32 %v1926, %v1913
        %v1950 = vmul.f32 %v1926, %v1914
        %v1951 = vmul.f32 %v1926, %v1915
        %v1952 = vmul.f32 %v1926, %v1916
        %v1953 = vmul.f32 %v1926, %v1917
        %v1954 = vmul.f32 %v1926, %v1918
        %v1955 = vmul.f32 %v1926, %v1919
        %v1956 = vmul.f32 %v1926, %v1920
        %v1957 = vmul.f32 %v1926, %v1921
        %v1958 = vmul.f32 %v1926, %v1922
        %v1959 = vadd.f32 %v1858, %v1927
        %v1960 = vadd.f32 %v1859, %v1928
        %v1961 = vadd.f32 %v1860, %v1929
        %v1962 = vadd.f32 %v1861, %v1930
        %v1963 = vadd.f32 %v1862, %v1931
        %v1964 = vadd.f32 %v1863, %v1932
        %v1965 = vadd.f32 %v1864, %v1933
        %v1966 = vadd.f32 %v1865, %v1934
        %v1967 = vadd.f32 %v1866, %v1935
        %v1968 = vadd.f32 %v1867, %v1936
        %v1969 = vadd.f32 %v1868, %v1937
        %v1970 = vadd.f32 %v1869, %v1938
        %v1971 = vadd.f32 %v1870, %v1939
        %v1972 = vadd.f32 %v1871, %v1940
        %v1973 = vadd.f32 %v1872, %v1941
        %v1974 = vadd.f32 %v1873, %v1942
        %v1975 = vadd.f32 %v1874, %v1943
        %v1976 = vadd.f32 %v1875, %v1944
        %v1977 = vadd.f32 %v1876, %v1945
        %v1978 = vadd.f32 %v1877, %v1946
        %v1979 = vadd.f32 %v1878, %v1947
        %v1980 = vadd.f32 %v1879, %v1948
        %v1981 = vadd.f32 %v1880, %v1949
        %v1982 = vadd.f32 %v1881, %v1950
        %v1983 = vadd.f32 %v1882, %v1951
        %v1984 = vadd.f32 %v1883, %v1952
        %v1985 = vadd.f32 %v1884, %v1953
        %v1986 = vadd.f32 %v1885, %v1954
        %v1987 = vadd.f32 %v1886, %v1955
        %v1988 = vadd.f32 %v1887, %v1956
        %v1989 = vadd.f32 %v1888, %v1957
        %v1990 = vadd.f32 %v1889, %v1958
        %v1991 = vld [vmem:[#allocation17 + $0x6] sm:$0x1]
        %v1992 = vld [vmem:[%s1042 + $0x1] sm:$0xff]
        %v1993 = vld [vmem:[%s1042 + $0x9] sm:$0xff]
        %v1994 = vld [vmem:[%s1042 + $0x11] sm:$0xff]
        %v1995 = vld [vmem:[%s1042 + $0x19] sm:$0xff]
        %v1996 = vld [vmem:[%s1042 + $0x29] sm:$0xff]
        %v1997 = vld [vmem:[%s1042 + $0x31] sm:$0xff]
        %v1998 = vld [vmem:[%s1042 + $0x39] sm:$0xff]
        %v1999 = vld [vmem:[%s1042 + $0x41] sm:$0xff]
        %v2000 = vld [vmem:[%s1042 + $0x51] sm:$0xff]
        %v2001 = vld [vmem:[%s1042 + $0x59] sm:$0xff]
        %v2002 = vld [vmem:[%s1042 + $0x61] sm:$0xff]
        %v2003 = vld [vmem:[%s1042 + $0x69] sm:$0xff]
        %v2004 = vld [vmem:[%s1042 + $0x79] sm:$0xff]
        %v2005 = vld [vmem:[%s1042 + $0x81] sm:$0xff]
        %v2006 = vld [vmem:[%s1042 + $0x89] sm:$0xff]
        %v2007 = vld [vmem:[%s1042 + $0x91] sm:$0xff]
        %v2008 = vld [vmem:[%s1042 + $0xa1] sm:$0xff]
        %v2009 = vld [vmem:[%s1042 + $0xa9] sm:$0xff]
        %v2010 = vld [vmem:[%s1042 + $0xb1] sm:$0xff]
        %v2011 = vld [vmem:[%s1042 + $0xb9] sm:$0xff]
        %v2012 = vld [vmem:[%s1042 + $0xc9] sm:$0xff]
        %v2013 = vld [vmem:[%s1042 + $0xd1] sm:$0xff]
        %v2014 = vld [vmem:[%s1042 + $0xd9] sm:$0xff]
        %v2015 = vld [vmem:[%s1042 + $0xe1] sm:$0xff]
        %v2016 = vld [vmem:[%s1042 + $0xf1] sm:$0xff]
        %v2017 = vld [vmem:[%s1042 + $0xf9] sm:$0xff]
        %v2018 = vld [vmem:[%s1042 + $0x101] sm:$0xff]
        %v2019 = vld [vmem:[%s1042 + $0x109] sm:$0xff]
        %v2020 = vld [vmem:[%s1042 + $0x119] sm:$0xff]
        %v2021 = vld [vmem:[%s1042 + $0x121] sm:$0xff]
        %v2022 = vld [vmem:[%s1042 + $0x129] sm:$0xff]
        %v2023 = vld [vmem:[%s1042 + $0x131] sm:$0xff]
        %v2024 = vlaneseq
        %v2025 = vshrl.u32 %v2024, 7
        %v2026 = vsub.s32 0, %v2025
        %v2027 = vrot.slane %v1991, %v2026
        %v2028 = vmul.f32 %v2027, %v1992
        %v2029 = vmul.f32 %v2027, %v1993
        %v2030 = vmul.f32 %v2027, %v1994
        %v2031 = vmul.f32 %v2027, %v1995
        %v2032 = vmul.f32 %v2027, %v1996
        %v2033 = vmul.f32 %v2027, %v1997
        %v2034 = vmul.f32 %v2027, %v1998
        %v2035 = vmul.f32 %v2027, %v1999
        %v2036 = vmul.f32 %v2027, %v2000
        %v2037 = vmul.f32 %v2027, %v2001
        %v2038 = vmul.f32 %v2027, %v2002
        %v2039 = vmul.f32 %v2027, %v2003
        %v2040 = vmul.f32 %v2027, %v2004
        %v2041 = vmul.f32 %v2027, %v2005
        %v2042 = vmul.f32 %v2027, %v2006
        %v2043 = vmul.f32 %v2027, %v2007
        %v2044 = vmul.f32 %v2027, %v2008
        %v2045 = vmul.f32 %v2027, %v2009
        %v2046 = vmul.f32 %v2027, %v2010
        %v2047 = vmul.f32 %v2027, %v2011
        %v2048 = vmul.f32 %v2027, %v2012
        %v2049 = vmul.f32 %v2027, %v2013
        %v2050 = vmul.f32 %v2027, %v2014
        %v2051 = vmul.f32 %v2027, %v2015
        %v2052 = vmul.f32 %v2027, %v2016
        %v2053 = vmul.f32 %v2027, %v2017
        %v2054 = vmul.f32 %v2027, %v2018
        %v2055 = vmul.f32 %v2027, %v2019
        %v2056 = vmul.f32 %v2027, %v2020
        %v2057 = vmul.f32 %v2027, %v2021
        %v2058 = vmul.f32 %v2027, %v2022
        %v2059 = vmul.f32 %v2027, %v2023
        %v2060 = vadd.f32 %v1959, %v2028
        %v2061 = vadd.f32 %v1960, %v2029
        %v2062 = vadd.f32 %v1961, %v2030
        %v2063 = vadd.f32 %v1962, %v2031
        %v2064 = vadd.f32 %v1963, %v2032
        %v2065 = vadd.f32 %v1964, %v2033
        %v2066 = vadd.f32 %v1965, %v2034
        %v2067 = vadd.f32 %v1966, %v2035
        %v2068 = vadd.f32 %v1967, %v2036
        %v2069 = vadd.f32 %v1968, %v2037
        %v2070 = vadd.f32 %v1969, %v2038
        %v2071 = vadd.f32 %v1970, %v2039
        %v2072 = vadd.f32 %v1971, %v2040
        %v2073 = vadd.f32 %v1972, %v2041
        %v2074 = vadd.f32 %v1973, %v2042
        %v2075 = vadd.f32 %v1974, %v2043
        %v2076 = vadd.f32 %v1975, %v2044
        %v2077 = vadd.f32 %v1976, %v2045
        %v2078 = vadd.f32 %v1977, %v2046
        %v2079 = vadd.f32 %v1978, %v2047
        %v2080 = vadd.f32 %v1979, %v2048
        %v2081 = vadd.f32 %v1980, %v2049
        %v2082 = vadd.f32 %v1981, %v2050
        %v2083 = vadd.f32 %v1982, %v2051
        %v2084 = vadd.f32 %v1983, %v2052
        %v2085 = vadd.f32 %v1984, %v2053
        %v2086 = vadd.f32 %v1985, %v2054
        %v2087 = vadd.f32 %v1986, %v2055
        %v2088 = vadd.f32 %v1987, %v2056
        %v2089 = vadd.f32 %v1988, %v2057
        %v2090 = vadd.f32 %v1989, %v2058
        %v2091 = vadd.f32 %v1990, %v2059
        %v2092 = vld [vmem:[#allocation17 + $0x7] sm:$0x1]
        %v2093 = vld [vmem:[%s1042 + $0x2] sm:$0xff]
        %v2094 = vld [vmem:[%s1042 + $0xa] sm:$0xff]
        %v2095 = vld [vmem:[%s1042 + $0x12] sm:$0xff]
        %v2096 = vld [vmem:[%s1042 + $0x1a] sm:$0xff]
        %v2097 = vld [vmem:[%s1042 + $0x2a] sm:$0xff]
        %v2098 = vld [vmem:[%s1042 + $0x32] sm:$0xff]
        %v2099 = vld [vmem:[%s1042 + $0x3a] sm:$0xff]
        %v2100 = vld [vmem:[%s1042 + $0x42] sm:$0xff]
        %v2101 = vld [vmem:[%s1042 + $0x52] sm:$0xff]
        %v2102 = vld [vmem:[%s1042 + $0x5a] sm:$0xff]
        %v2103 = vld [vmem:[%s1042 + $0x62] sm:$0xff]
        %v2104 = vld [vmem:[%s1042 + $0x6a] sm:$0xff]
        %v2105 = vld [vmem:[%s1042 + $0x7a] sm:$0xff]
        %v2106 = vld [vmem:[%s1042 + $0x82] sm:$0xff]
        %v2107 = vld [vmem:[%s1042 + $0x8a] sm:$0xff]
        %v2108 = vld [vmem:[%s1042 + $0x92] sm:$0xff]
        %v2109 = vld [vmem:[%s1042 + $0xa2] sm:$0xff]
        %v2110 = vld [vmem:[%s1042 + $0xaa] sm:$0xff]
        %v2111 = vld [vmem:[%s1042 + $0xb2] sm:$0xff]
        %v2112 = vld [vmem:[%s1042 + $0xba] sm:$0xff]
        %v2113 = vld [vmem:[%s1042 + $0xca] sm:$0xff]
        %v2114 = vld [vmem:[%s1042 + $0xd2] sm:$0xff]
        %v2115 = vld [vmem:[%s1042 + $0xda] sm:$0xff]
        %v2116 = vld [vmem:[%s1042 + $0xe2] sm:$0xff]
        %v2117 = vld [vmem:[%s1042 + $0xf2] sm:$0xff]
        %v2118 = vld [vmem:[%s1042 + $0xfa] sm:$0xff]
        %v2119 = vld [vmem:[%s1042 + $0x102] sm:$0xff]
        %v2120 = vld [vmem:[%s1042 + $0x10a] sm:$0xff]
        %v2121 = vld [vmem:[%s1042 + $0x11a] sm:$0xff]
        %v2122 = vld [vmem:[%s1042 + $0x122] sm:$0xff]
        %v2123 = vld [vmem:[%s1042 + $0x12a] sm:$0xff]
        %v2124 = vld [vmem:[%s1042 + $0x132] sm:$0xff]
        %v2125 = vlaneseq
        %v2126 = vshrl.u32 %v2125, 7
        %v2127 = vsub.s32 0, %v2126
        %v2128 = vrot.slane %v2092, %v2127
        %v2129 = vmul.f32 %v2128, %v2093
        %v2130 = vmul.f32 %v2128, %v2094
        %v2131 = vmul.f32 %v2128, %v2095
        %v2132 = vmul.f32 %v2128, %v2096
        %v2133 = vmul.f32 %v2128, %v2097
        %v2134 = vmul.f32 %v2128, %v2098
        %v2135 = vmul.f32 %v2128, %v2099
        %v2136 = vmul.f32 %v2128, %v2100
        %v2137 = vmul.f32 %v2128, %v2101
        %v2138 = vmul.f32 %v2128, %v2102
        %v2139 = vmul.f32 %v2128, %v2103
        %v2140 = vmul.f32 %v2128, %v2104
        %v2141 = vmul.f32 %v2128, %v2105
        %v2142 = vmul.f32 %v2128, %v2106
        %v2143 = vmul.f32 %v2128, %v2107
        %v2144 = vmul.f32 %v2128, %v2108
        %v2145 = vmul.f32 %v2128, %v2109
        %v2146 = vmul.f32 %v2128, %v2110
        %v2147 = vmul.f32 %v2128, %v2111
        %v2148 = vmul.f32 %v2128, %v2112
        %v2149 = vmul.f32 %v2128, %v2113
        %v2150 = vmul.f32 %v2128, %v2114
        %v2151 = vmul.f32 %v2128, %v2115
        %v2152 = vmul.f32 %v2128, %v2116
        %v2153 = vmul.f32 %v2128, %v2117
        %v2154 = vmul.f32 %v2128, %v2118
        %v2155 = vmul.f32 %v2128, %v2119
        %v2156 = vmul.f32 %v2128, %v2120
        %v2157 = vmul.f32 %v2128, %v2121
        %v2158 = vmul.f32 %v2128, %v2122
        %v2159 = vmul.f32 %v2128, %v2123
        %v2160 = vmul.f32 %v2128, %v2124
        %v2161 = vadd.f32 %v2060, %v2129
        %v2162 = vadd.f32 %v2061, %v2130
        %v2163 = vadd.f32 %v2062, %v2131
        %v2164 = vadd.f32 %v2063, %v2132
        %v2165 = vadd.f32 %v2064, %v2133
        %v2166 = vadd.f32 %v2065, %v2134
        %v2167 = vadd.f32 %v2066, %v2135
        %v2168 = vadd.f32 %v2067, %v2136
        %v2169 = vadd.f32 %v2068, %v2137
        %v2170 = vadd.f32 %v2069, %v2138
        %v2171 = vadd.f32 %v2070, %v2139
        %v2172 = vadd.f32 %v2071, %v2140
        %v2173 = vadd.f32 %v2072, %v2141
        %v2174 = vadd.f32 %v2073, %v2142
        %v2175 = vadd.f32 %v2074, %v2143
        %v2176 = vadd.f32 %v2075, %v2144
        %v2177 = vadd.f32 %v2076, %v2145
        %v2178 = vadd.f32 %v2077, %v2146
        %v2179 = vadd.f32 %v2078, %v2147
        %v2180 = vadd.f32 %v2079, %v2148
        %v2181 = vadd.f32 %v2080, %v2149
        %v2182 = vadd.f32 %v2081, %v2150
        %v2183 = vadd.f32 %v2082, %v2151
        %v2184 = vadd.f32 %v2083, %v2152
        %v2185 = vadd.f32 %v2084, %v2153
        %v2186 = vadd.f32 %v2085, %v2154
        %v2187 = vadd.f32 %v2086, %v2155
        %v2188 = vadd.f32 %v2087, %v2156
        %v2189 = vadd.f32 %v2088, %v2157
        %v2190 = vadd.f32 %v2089, %v2158
        %v2191 = vadd.f32 %v2090, %v2159
        %v2192 = vadd.f32 %v2091, %v2160
        %v2193 = vld [vmem:[#allocation17 + $0x8] sm:$0x1]
        %v2194 = vld [vmem:[%s1042 + $0x3] sm:$0xff]
        %v2195 = vld [vmem:[%s1042 + $0xb] sm:$0xff]
        %v2196 = vld [vmem:[%s1042 + $0x13] sm:$0xff]
        %v2197 = vld [vmem:[%s1042 + $0x1b] sm:$0xff]
        %v2198 = vld [vmem:[%s1042 + $0x2b] sm:$0xff]
        %v2199 = vld [vmem:[%s1042 + $0x33] sm:$0xff]
        %v2200 = vld [vmem:[%s1042 + $0x3b] sm:$0xff]
        %v2201 = vld [vmem:[%s1042 + $0x43] sm:$0xff]
        %v2202 = vld [vmem:[%s1042 + $0x53] sm:$0xff]
        %v2203 = vld [vmem:[%s1042 + $0x5b] sm:$0xff]
        %v2204 = vld [vmem:[%s1042 + $0x63] sm:$0xff]
        %v2205 = vld [vmem:[%s1042 + $0x6b] sm:$0xff]
        %v2206 = vld [vmem:[%s1042 + $0x7b] sm:$0xff]
        %v2207 = vld [vmem:[%s1042 + $0x83] sm:$0xff]
        %v2208 = vld [vmem:[%s1042 + $0x8b] sm:$0xff]
        %v2209 = vld [vmem:[%s1042 + $0x93] sm:$0xff]
        %v2210 = vld [vmem:[%s1042 + $0xa3] sm:$0xff]
        %v2211 = vld [vmem:[%s1042 + $0xab] sm:$0xff]
        %v2212 = vld [vmem:[%s1042 + $0xb3] sm:$0xff]
        %v2213 = vld [vmem:[%s1042 + $0xbb] sm:$0xff]
        %v2214 = vld [vmem:[%s1042 + $0xcb] sm:$0xff]
        %v2215 = vld [vmem:[%s1042 + $0xd3] sm:$0xff]
        %v2216 = vld [vmem:[%s1042 + $0xdb] sm:$0xff]
        %v2217 = vld [vmem:[%s1042 + $0xe3] sm:$0xff]
        %v2218 = vld [vmem:[%s1042 + $0xf3] sm:$0xff]
        %v2219 = vld [vmem:[%s1042 + $0xfb] sm:$0xff]
        %v2220 = vld [vmem:[%s1042 + $0x103] sm:$0xff]
        %v2221 = vld [vmem:[%s1042 + $0x10b] sm:$0xff]
        %v2222 = vld [vmem:[%s1042 + $0x11b] sm:$0xff]
        %v2223 = vld [vmem:[%s1042 + $0x123] sm:$0xff]
        %v2224 = vld [vmem:[%s1042 + $0x12b] sm:$0xff]
        %v2225 = vld [vmem:[%s1042 + $0x133] sm:$0xff]
        %v2226 = vlaneseq
        %v2227 = vshrl.u32 %v2226, 7
        %v2228 = vsub.s32 0, %v2227
        %v2229 = vrot.slane %v2193, %v2228
        %v2230 = vmul.f32 %v2229, %v2194
        %v2231 = vmul.f32 %v2229, %v2195
        %v2232 = vmul.f32 %v2229, %v2196
        %v2233 = vmul.f32 %v2229, %v2197
        %v2234 = vmul.f32 %v2229, %v2198
        %v2235 = vmul.f32 %v2229, %v2199
        %v2236 = vmul.f32 %v2229, %v2200
        %v2237 = vmul.f32 %v2229, %v2201
        %v2238 = vmul.f32 %v2229, %v2202
        %v2239 = vmul.f32 %v2229, %v2203
        %v2240 = vmul.f32 %v2229, %v2204
        %v2241 = vmul.f32 %v2229, %v2205
        %v2242 = vmul.f32 %v2229, %v2206
        %v2243 = vmul.f32 %v2229, %v2207
        %v2244 = vmul.f32 %v2229, %v2208
        %v2245 = vmul.f32 %v2229, %v2209
        %v2246 = vmul.f32 %v2229, %v2210
        %v2247 = vmul.f32 %v2229, %v2211
        %v2248 = vmul.f32 %v2229, %v2212
        %v2249 = vmul.f32 %v2229, %v2213
        %v2250 = vmul.f32 %v2229, %v2214
        %v2251 = vmul.f32 %v2229, %v2215
        %v2252 = vmul.f32 %v2229, %v2216
        %v2253 = vmul.f32 %v2229, %v2217
        %v2254 = vmul.f32 %v2229, %v2218
        %v2255 = vmul.f32 %v2229, %v2219
        %v2256 = vmul.f32 %v2229, %v2220
        %v2257 = vmul.f32 %v2229, %v2221
        %v2258 = vmul.f32 %v2229, %v2222
        %v2259 = vmul.f32 %v2229, %v2223
        %v2260 = vmul.f32 %v2229, %v2224
        %v2261 = vmul.f32 %v2229, %v2225
        %v2262 = vadd.f32 %v2161, %v2230
        %v2263 = vadd.f32 %v2162, %v2231
        %v2264 = vadd.f32 %v2163, %v2232
        %v2265 = vadd.f32 %v2164, %v2233
        %v2266 = vadd.f32 %v2165, %v2234
        %v2267 = vadd.f32 %v2166, %v2235
        %v2268 = vadd.f32 %v2167, %v2236
        %v2269 = vadd.f32 %v2168, %v2237
        %v2270 = vadd.f32 %v2169, %v2238
        %v2271 = vadd.f32 %v2170, %v2239
        %v2272 = vadd.f32 %v2171, %v2240
        %v2273 = vadd.f32 %v2172, %v2241
        %v2274 = vadd.f32 %v2173, %v2242
        %v2275 = vadd.f32 %v2174, %v2243
        %v2276 = vadd.f32 %v2175, %v2244
        %v2277 = vadd.f32 %v2176, %v2245
        %v2278 = vadd.f32 %v2177, %v2246
        %v2279 = vadd.f32 %v2178, %v2247
        %v2280 = vadd.f32 %v2179, %v2248
        %v2281 = vadd.f32 %v2180, %v2249
        %v2282 = vadd.f32 %v2181, %v2250
        %v2283 = vadd.f32 %v2182, %v2251
        %v2284 = vadd.f32 %v2183, %v2252
        %v2285 = vadd.f32 %v2184, %v2253
        %v2286 = vadd.f32 %v2185, %v2254
        %v2287 = vadd.f32 %v2186, %v2255
        %v2288 = vadd.f32 %v2187, %v2256
        %v2289 = vadd.f32 %v2188, %v2257
        %v2290 = vadd.f32 %v2189, %v2258
        %v2291 = vadd.f32 %v2190, %v2259
        %v2292 = vadd.f32 %v2191, %v2260
        %v2293 = vadd.f32 %v2192, %v2261
        %v2294 = vld [vmem:[#allocation17 + $0x9] sm:$0x1]
        %v2295 = vld [vmem:[%s1042 + $0x4] sm:$0xff]
        %v2296 = vld [vmem:[%s1042 + $0xc] sm:$0xff]
        %v2297 = vld [vmem:[%s1042 + $0x14] sm:$0xff]
        %v2298 = vld [vmem:[%s1042 + $0x1c] sm:$0xff]
        %v2299 = vld [vmem:[%s1042 + $0x2c] sm:$0xff]
        %v2300 = vld [vmem:[%s1042 + $0x34] sm:$0xff]
        %v2301 = vld [vmem:[%s1042 + $0x3c] sm:$0xff]
        %v2302 = vld [vmem:[%s1042 + $0x44] sm:$0xff]
        %v2303 = vld [vmem:[%s1042 + $0x54] sm:$0xff]
        %v2304 = vld [vmem:[%s1042 + $0x5c] sm:$0xff]
        %v2305 = vld [vmem:[%s1042 + $0x64] sm:$0xff]
        %v2306 = vld [vmem:[%s1042 + $0x6c] sm:$0xff]
        %v2307 = vld [vmem:[%s1042 + $0x7c] sm:$0xff]
        %v2308 = vld [vmem:[%s1042 + $0x84] sm:$0xff]
        %v2309 = vld [vmem:[%s1042 + $0x8c] sm:$0xff]
        %v2310 = vld [vmem:[%s1042 + $0x94] sm:$0xff]
        %v2311 = vld [vmem:[%s1042 + $0xa4] sm:$0xff]
        %v2312 = vld [vmem:[%s1042 + $0xac] sm:$0xff]
        %v2313 = vld [vmem:[%s1042 + $0xb4] sm:$0xff]
        %v2314 = vld [vmem:[%s1042 + $0xbc] sm:$0xff]
        %v2315 = vld [vmem:[%s1042 + $0xcc] sm:$0xff]
        %v2316 = vld [vmem:[%s1042 + $0xd4] sm:$0xff]
        %v2317 = vld [vmem:[%s1042 + $0xdc] sm:$0xff]
        %v2318 = vld [vmem:[%s1042 + $0xe4] sm:$0xff]
        %v2319 = vld [vmem:[%s1042 + $0xf4] sm:$0xff]
        %v2320 = vld [vmem:[%s1042 + $0xfc] sm:$0xff]
        %v2321 = vld [vmem:[%s1042 + $0x104] sm:$0xff]
        %v2322 = vld [vmem:[%s1042 + $0x10c] sm:$0xff]
        %v2323 = vld [vmem:[%s1042 + $0x11c] sm:$0xff]
        %v2324 = vld [vmem:[%s1042 + $0x124] sm:$0xff]
        %v2325 = vld [vmem:[%s1042 + $0x12c] sm:$0xff]
        %v2326 = vld [vmem:[%s1042 + $0x134] sm:$0xff]
        %v2327 = vlaneseq
        %v2328 = vshrl.u32 %v2327, 7
        %v2329 = vsub.s32 0, %v2328
        %v2330 = vrot.slane %v2294, %v2329
        %v2331 = vmul.f32 %v2330, %v2295
        %v2332 = vmul.f32 %v2330, %v2296
        %v2333 = vmul.f32 %v2330, %v2297
        %v2334 = vmul.f32 %v2330, %v2298
        %v2335 = vmul.f32 %v2330, %v2299
        %v2336 = vmul.f32 %v2330, %v2300
        %v2337 = vmul.f32 %v2330, %v2301
        %v2338 = vmul.f32 %v2330, %v2302
        %v2339 = vmul.f32 %v2330, %v2303
        %v2340 = vmul.f32 %v2330, %v2304
        %v2341 = vmul.f32 %v2330, %v2305
        %v2342 = vmul.f32 %v2330, %v2306
        %v2343 = vmul.f32 %v2330, %v2307
        %v2344 = vmul.f32 %v2330, %v2308
        %v2345 = vmul.f32 %v2330, %v2309
        %v2346 = vmul.f32 %v2330, %v2310
        %v2347 = vmul.f32 %v2330, %v2311
        %v2348 = vmul.f32 %v2330, %v2312
        %v2349 = vmul.f32 %v2330, %v2313
        %v2350 = vmul.f32 %v2330, %v2314
        %v2351 = vmul.f32 %v2330, %v2315
        %v2352 = vmul.f32 %v2330, %v2316
        %v2353 = vmul.f32 %v2330, %v2317
        %v2354 = vmul.f32 %v2330, %v2318
        %v2355 = vmul.f32 %v2330, %v2319
        %v2356 = vmul.f32 %v2330, %v2320
        %v2357 = vmul.f32 %v2330, %v2321
        %v2358 = vmul.f32 %v2330, %v2322
        %v2359 = vmul.f32 %v2330, %v2323
        %v2360 = vmul.f32 %v2330, %v2324
        %v2361 = vmul.f32 %v2330, %v2325
        %v2362 = vmul.f32 %v2330, %v2326
        %v2363 = vadd.f32 %v2262, %v2331
        %v2364 = vadd.f32 %v2263, %v2332
        %v2365 = vadd.f32 %v2264, %v2333
        %v2366 = vadd.f32 %v2265, %v2334
        %v2367 = vadd.f32 %v2266, %v2335
        %v2368 = vadd.f32 %v2267, %v2336
        %v2369 = vadd.f32 %v2268, %v2337
        %v2370 = vadd.f32 %v2269, %v2338
        %v2371 = vadd.f32 %v2270, %v2339
        %v2372 = vadd.f32 %v2271, %v2340
        %v2373 = vadd.f32 %v2272, %v2341
        %v2374 = vadd.f32 %v2273, %v2342
        %v2375 = vadd.f32 %v2274, %v2343
        %v2376 = vadd.f32 %v2275, %v2344
        %v2377 = vadd.f32 %v2276, %v2345
        %v2378 = vadd.f32 %v2277, %v2346
        %v2379 = vadd.f32 %v2278, %v2347
        %v2380 = vadd.f32 %v2279, %v2348
        %v2381 = vadd.f32 %v2280, %v2349
        %v2382 = vadd.f32 %v2281, %v2350
        %v2383 = vadd.f32 %v2282, %v2351
        %v2384 = vadd.f32 %v2283, %v2352
        %v2385 = vadd.f32 %v2284, %v2353
        %v2386 = vadd.f32 %v2285, %v2354
        %v2387 = vadd.f32 %v2286, %v2355
        %v2388 = vadd.f32 %v2287, %v2356
        %v2389 = vadd.f32 %v2288, %v2357
        %v2390 = vadd.f32 %v2289, %v2358
        %v2391 = vadd.f32 %v2290, %v2359
        %v2392 = vadd.f32 %v2291, %v2360
        %v2393 = vadd.f32 %v2292, %v2361
        %v2394 = vadd.f32 %v2293, %v2362
        %v2395 = vld [vmem:[#allocation17 + $0xa] sm:$0x1]
        %v2396 = vld [vmem:[%s934] sm:$0xff]
        %v2397 = vld [vmem:[%s934 + $0x8] sm:$0xff]
        %v2398 = vld [vmem:[%s934 + $0x10] sm:$0xff]
        %v2399 = vld [vmem:[%s934 + $0x18] sm:$0xff]
        %v2400 = vld [vmem:[%s934 + $0x28] sm:$0xff]
        %v2401 = vld [vmem:[%s934 + $0x30] sm:$0xff]
        %v2402 = vld [vmem:[%s934 + $0x38] sm:$0xff]
        %v2403 = vld [vmem:[%s934 + $0x40] sm:$0xff]
        %v2404 = vld [vmem:[%s934 + $0x50] sm:$0xff]
        %v2405 = vld [vmem:[%s934 + $0x58] sm:$0xff]
        %v2406 = vld [vmem:[%s934 + $0x60] sm:$0xff]
        %v2407 = vld [vmem:[%s934 + $0x68] sm:$0xff]
        %v2408 = vld [vmem:[%s934 + $0x78] sm:$0xff]
        %v2409 = vld [vmem:[%s934 + $0x80] sm:$0xff]
        %v2410 = vld [vmem:[%s934 + $0x88] sm:$0xff]
        %v2411 = vld [vmem:[%s934 + $0x90] sm:$0xff]
        %v2412 = vld [vmem:[%s934 + $0xa0] sm:$0xff]
        %v2413 = vld [vmem:[%s934 + $0xa8] sm:$0xff]
        %v2414 = vld [vmem:[%s934 + $0xb0] sm:$0xff]
        %v2415 = vld [vmem:[%s934 + $0xb8] sm:$0xff]
        %v2416 = vld [vmem:[%s934 + $0xc8] sm:$0xff]
        %v2417 = vld [vmem:[%s934 + $0xd0] sm:$0xff]
        %v2418 = vld [vmem:[%s934 + $0xd8] sm:$0xff]
        %v2419 = vld [vmem:[%s934 + $0xe0] sm:$0xff]
        %v2420 = vld [vmem:[%s934 + $0xf0] sm:$0xff]
        %v2421 = vld [vmem:[%s934 + $0xf8] sm:$0xff]
        %v2422 = vld [vmem:[%s934 + $0x100] sm:$0xff]
        %v2423 = vld [vmem:[%s934 + $0x108] sm:$0xff]
        %v2424 = vld [vmem:[%s934 + $0x118] sm:$0xff]
        %v2425 = vld [vmem:[%s934 + $0x120] sm:$0xff]
        %v2426 = vld [vmem:[%s934 + $0x128] sm:$0xff]
        %v2427 = vld [vmem:[%s934 + $0x130] sm:$0xff]
        %v2428 = vlaneseq
        %v2429 = vshrl.u32 %v2428, 7
        %v2430 = vsub.s32 0, %v2429
        %v2431 = vrot.slane %v2395, %v2430
        %v2432 = vmul.f32 %v2431, %v2396
        %v2433 = vmul.f32 %v2431, %v2397
        %v2434 = vmul.f32 %v2431, %v2398
        %v2435 = vmul.f32 %v2431, %v2399
        %v2436 = vmul.f32 %v2431, %v2400
        %v2437 = vmul.f32 %v2431, %v2401
        %v2438 = vmul.f32 %v2431, %v2402
        %v2439 = vmul.f32 %v2431, %v2403
        %v2440 = vmul.f32 %v2431, %v2404
        %v2441 = vmul.f32 %v2431, %v2405
        %v2442 = vmul.f32 %v2431, %v2406
        %v2443 = vmul.f32 %v2431, %v2407
        %v2444 = vmul.f32 %v2431, %v2408
        %v2445 = vmul.f32 %v2431, %v2409
        %v2446 = vmul.f32 %v2431, %v2410
        %v2447 = vmul.f32 %v2431, %v2411
        %v2448 = vmul.f32 %v2431, %v2412
        %v2449 = vmul.f32 %v2431, %v2413
        %v2450 = vmul.f32 %v2431, %v2414
        %v2451 = vmul.f32 %v2431, %v2415
        %v2452 = vmul.f32 %v2431, %v2416
        %v2453 = vmul.f32 %v2431, %v2417
        %v2454 = vmul.f32 %v2431, %v2418
        %v2455 = vmul.f32 %v2431, %v2419
        %v2456 = vmul.f32 %v2431, %v2420
        %v2457 = vmul.f32 %v2431, %v2421
        %v2458 = vmul.f32 %v2431, %v2422
        %v2459 = vmul.f32 %v2431, %v2423
        %v2460 = vmul.f32 %v2431, %v2424
        %v2461 = vmul.f32 %v2431, %v2425
        %v2462 = vmul.f32 %v2431, %v2426
        %v2463 = vmul.f32 %v2431, %v2427
        %v2464 = vadd.f32 %v2363, %v2432
        %v2465 = vadd.f32 %v2364, %v2433
        %v2466 = vadd.f32 %v2365, %v2434
        %v2467 = vadd.f32 %v2366, %v2435
        %v2468 = vadd.f32 %v2367, %v2436
        %v2469 = vadd.f32 %v2368, %v2437
        %v2470 = vadd.f32 %v2369, %v2438
        %v2471 = vadd.f32 %v2370, %v2439
        %v2472 = vadd.f32 %v2371, %v2440
        %v2473 = vadd.f32 %v2372, %v2441
        %v2474 = vadd.f32 %v2373, %v2442
        %v2475 = vadd.f32 %v2374, %v2443
        %v2476 = vadd.f32 %v2375, %v2444
        %v2477 = vadd.f32 %v2376, %v2445
        %v2478 = vadd.f32 %v2377, %v2446
        %v2479 = vadd.f32 %v2378, %v2447
        %v2480 = vadd.f32 %v2379, %v2448
        %v2481 = vadd.f32 %v2380, %v2449
        %v2482 = vadd.f32 %v2381, %v2450
        %v2483 = vadd.f32 %v2382, %v2451
        %v2484 = vadd.f32 %v2383, %v2452
        %v2485 = vadd.f32 %v2384, %v2453
        %v2486 = vadd.f32 %v2385, %v2454
        %v2487 = vadd.f32 %v2386, %v2455
        %v2488 = vadd.f32 %v2387, %v2456
        %v2489 = vadd.f32 %v2388, %v2457
        %v2490 = vadd.f32 %v2389, %v2458
        %v2491 = vadd.f32 %v2390, %v2459
        %v2492 = vadd.f32 %v2391, %v2460
        %v2493 = vadd.f32 %v2392, %v2461
        %v2494 = vadd.f32 %v2393, %v2462
        %v2495 = vadd.f32 %v2394, %v2463
        %v2496 = vld [vmem:[#allocation17 + $0xb] sm:$0x1]
        %v2497 = vld [vmem:[%s934 + $0x1] sm:$0xff]
        %v2498 = vld [vmem:[%s934 + $0x9] sm:$0xff]
        %v2499 = vld [vmem:[%s934 + $0x11] sm:$0xff]
        %v2500 = vld [vmem:[%s934 + $0x19] sm:$0xff]
        %v2501 = vld [vmem:[%s934 + $0x29] sm:$0xff]
        %v2502 = vld [vmem:[%s934 + $0x31] sm:$0xff]
        %v2503 = vld [vmem:[%s934 + $0x39] sm:$0xff]
        %v2504 = vld [vmem:[%s934 + $0x41] sm:$0xff]
        %v2505 = vld [vmem:[%s934 + $0x51] sm:$0xff]
        %v2506 = vld [vmem:[%s934 + $0x59] sm:$0xff]
        %v2507 = vld [vmem:[%s934 + $0x61] sm:$0xff]
        %v2508 = vld [vmem:[%s934 + $0x69] sm:$0xff]
        %v2509 = vld [vmem:[%s934 + $0x79] sm:$0xff]
        %v2510 = vld [vmem:[%s934 + $0x81] sm:$0xff]
        %v2511 = vld [vmem:[%s934 + $0x89] sm:$0xff]
        %v2512 = vld [vmem:[%s934 + $0x91] sm:$0xff]
        %v2513 = vld [vmem:[%s934 + $0xa1] sm:$0xff]
        %v2514 = vld [vmem:[%s934 + $0xa9] sm:$0xff]
        %v2515 = vld [vmem:[%s934 + $0xb1] sm:$0xff]
        %v2516 = vld [vmem:[%s934 + $0xb9] sm:$0xff]
        %v2517 = vld [vmem:[%s934 + $0xc9] sm:$0xff]
        %v2518 = vld [vmem:[%s934 + $0xd1] sm:$0xff]
        %v2519 = vld [vmem:[%s934 + $0xd9] sm:$0xff]
        %v2520 = vld [vmem:[%s934 + $0xe1] sm:$0xff]
        %v2521 = vld [vmem:[%s934 + $0xf1] sm:$0xff]
        %v2522 = vld [vmem:[%s934 + $0xf9] sm:$0xff]
        %v2523 = vld [vmem:[%s934 + $0x101] sm:$0xff]
        %v2524 = vld [vmem:[%s934 + $0x109] sm:$0xff]
        %v2525 = vld [vmem:[%s934 + $0x119] sm:$0xff]
        %v2526 = vld [vmem:[%s934 + $0x121] sm:$0xff]
        %v2527 = vld [vmem:[%s934 + $0x129] sm:$0xff]
        %v2528 = vld [vmem:[%s934 + $0x131] sm:$0xff]
        %v2529 = vlaneseq
        %v2530 = vshrl.u32 %v2529, 7
        %v2531 = vsub.s32 0, %v2530
        %v2532 = vrot.slane %v2496, %v2531
        %v2533 = vmul.f32 %v2532, %v2497
        %v2534 = vmul.f32 %v2532, %v2498
        %v2535 = vmul.f32 %v2532, %v2499
        %v2536 = vmul.f32 %v2532, %v2500
        %v2537 = vmul.f32 %v2532, %v2501
        %v2538 = vmul.f32 %v2532, %v2502
        %v2539 = vmul.f32 %v2532, %v2503
        %v2540 = vmul.f32 %v2532, %v2504
        %v2541 = vmul.f32 %v2532, %v2505
        %v2542 = vmul.f32 %v2532, %v2506
        %v2543 = vmul.f32 %v2532, %v2507
        %v2544 = vmul.f32 %v2532, %v2508
        %v2545 = vmul.f32 %v2532, %v2509
        %v2546 = vmul.f32 %v2532, %v2510
        %v2547 = vmul.f32 %v2532, %v2511
        %v2548 = vmul.f32 %v2532, %v2512
        %v2549 = vmul.f32 %v2532, %v2513
        %v2550 = vmul.f32 %v2532, %v2514
        %v2551 = vmul.f32 %v2532, %v2515
        %v2552 = vmul.f32 %v2532, %v2516
        %v2553 = vmul.f32 %v2532, %v2517
        %v2554 = vmul.f32 %v2532, %v2518
        %v2555 = vmul.f32 %v2532, %v2519
        %v2556 = vmul.f32 %v2532, %v2520
        %v2557 = vmul.f32 %v2532, %v2521
        %v2558 = vmul.f32 %v2532, %v2522
        %v2559 = vmul.f32 %v2532, %v2523
        %v2560 = vmul.f32 %v2532, %v2524
        %v2561 = vmul.f32 %v2532, %v2525
        %v2562 = vmul.f32 %v2532, %v2526
        %v2563 = vmul.f32 %v2532, %v2527
        %v2564 = vmul.f32 %v2532, %v2528
        %v2565 = vadd.f32 %v2464, %v2533
        %v2566 = vadd.f32 %v2465, %v2534
        %v2567 = vadd.f32 %v2466, %v2535
        %v2568 = vadd.f32 %v2467, %v2536
        %v2569 = vadd.f32 %v2468, %v2537
        %v2570 = vadd.f32 %v2469, %v2538
        %v2571 = vadd.f32 %v2470, %v2539
        %v2572 = vadd.f32 %v2471, %v2540
        %v2573 = vadd.f32 %v2472, %v2541
        %v2574 = vadd.f32 %v2473, %v2542
        %v2575 = vadd.f32 %v2474, %v2543
        %v2576 = vadd.f32 %v2475, %v2544
        %v2577 = vadd.f32 %v2476, %v2545
        %v2578 = vadd.f32 %v2477, %v2546
        %v2579 = vadd.f32 %v2478, %v2547
        %v2580 = vadd.f32 %v2479, %v2548
        %v2581 = vadd.f32 %v2480, %v2549
        %v2582 = vadd.f32 %v2481, %v2550
        %v2583 = vadd.f32 %v2482, %v2551
        %v2584 = vadd.f32 %v2483, %v2552
        %v2585 = vadd.f32 %v2484, %v2553
        %v2586 = vadd.f32 %v2485, %v2554
        %v2587 = vadd.f32 %v2486, %v2555
        %v2588 = vadd.f32 %v2487, %v2556
        %v2589 = vadd.f32 %v2488, %v2557
        %v2590 = vadd.f32 %v2489, %v2558
        %v2591 = vadd.f32 %v2490, %v2559
        %v2592 = vadd.f32 %v2491, %v2560
        %v2593 = vadd.f32 %v2492, %v2561
        %v2594 = vadd.f32 %v2493, %v2562
        %v2595 = vadd.f32 %v2494, %v2563
        %v2596 = vadd.f32 %v2495, %v2564
        %v2597 = vld [vmem:[#allocation17 + $0xc] sm:$0x1]
        %v2598 = vld [vmem:[%s934 + $0x2] sm:$0xff]
        %v2599 = vld [vmem:[%s934 + $0xa] sm:$0xff]
        %v2600 = vld [vmem:[%s934 + $0x12] sm:$0xff]
        %v2601 = vld [vmem:[%s934 + $0x1a] sm:$0xff]
        %v2602 = vld [vmem:[%s934 + $0x2a] sm:$0xff]
        %v2603 = vld [vmem:[%s934 + $0x32] sm:$0xff]
        %v2604 = vld [vmem:[%s934 + $0x3a] sm:$0xff]
        %v2605 = vld [vmem:[%s934 + $0x42] sm:$0xff]
        %v2606 = vld [vmem:[%s934 + $0x52] sm:$0xff]
        %v2607 = vld [vmem:[%s934 + $0x5a] sm:$0xff]
        %v2608 = vld [vmem:[%s934 + $0x62] sm:$0xff]
        %v2609 = vld [vmem:[%s934 + $0x6a] sm:$0xff]
        %v2610 = vld [vmem:[%s934 + $0x7a] sm:$0xff]
        %v2611 = vld [vmem:[%s934 + $0x82] sm:$0xff]
        %v2612 = vld [vmem:[%s934 + $0x8a] sm:$0xff]
        %v2613 = vld [vmem:[%s934 + $0x92] sm:$0xff]
        %v2614 = vld [vmem:[%s934 + $0xa2] sm:$0xff]
        %v2615 = vld [vmem:[%s934 + $0xaa] sm:$0xff]
        %v2616 = vld [vmem:[%s934 + $0xb2] sm:$0xff]
        %v2617 = vld [vmem:[%s934 + $0xba] sm:$0xff]
        %v2618 = vld [vmem:[%s934 + $0xca] sm:$0xff]
        %v2619 = vld [vmem:[%s934 + $0xd2] sm:$0xff]
        %v2620 = vld [vmem:[%s934 + $0xda] sm:$0xff]
        %v2621 = vld [vmem:[%s934 + $0xe2] sm:$0xff]
        %v2622 = vld [vmem:[%s934 + $0xf2] sm:$0xff]
        %v2623 = vld [vmem:[%s934 + $0xfa] sm:$0xff]
        %v2624 = vld [vmem:[%s934 + $0x102] sm:$0xff]
        %v2625 = vld [vmem:[%s934 + $0x10a] sm:$0xff]
        %v2626 = vld [vmem:[%s934 + $0x11a] sm:$0xff]
        %v2627 = vld [vmem:[%s934 + $0x122] sm:$0xff]
        %v2628 = vld [vmem:[%s934 + $0x12a] sm:$0xff]
        %v2629 = vld [vmem:[%s934 + $0x132] sm:$0xff]
        %v2630 = vlaneseq
        %v2631 = vshrl.u32 %v2630, 7
        %v2632 = vsub.s32 0, %v2631
        %v2633 = vrot.slane %v2597, %v2632
        %v2634 = vmul.f32 %v2633, %v2598
        %v2635 = vmul.f32 %v2633, %v2599
        %v2636 = vmul.f32 %v2633, %v2600
        %v2637 = vmul.f32 %v2633, %v2601
        %v2638 = vmul.f32 %v2633, %v2602
        %v2639 = vmul.f32 %v2633, %v2603
        %v2640 = vmul.f32 %v2633, %v2604
        %v2641 = vmul.f32 %v2633, %v2605
        %v2642 = vmul.f32 %v2633, %v2606
        %v2643 = vmul.f32 %v2633, %v2607
        %v2644 = vmul.f32 %v2633, %v2608
        %v2645 = vmul.f32 %v2633, %v2609
        %v2646 = vmul.f32 %v2633, %v2610
        %v2647 = vmul.f32 %v2633, %v2611
        %v2648 = vmul.f32 %v2633, %v2612
        %v2649 = vmul.f32 %v2633, %v2613
        %v2650 = vmul.f32 %v2633, %v2614
        %v2651 = vmul.f32 %v2633, %v2615
        %v2652 = vmul.f32 %v2633, %v2616
        %v2653 = vmul.f32 %v2633, %v2617
        %v2654 = vmul.f32 %v2633, %v2618
        %v2655 = vmul.f32 %v2633, %v2619
        %v2656 = vmul.f32 %v2633, %v2620
        %v2657 = vmul.f32 %v2633, %v2621
        %v2658 = vmul.f32 %v2633, %v2622
        %v2659 = vmul.f32 %v2633, %v2623
        %v2660 = vmul.f32 %v2633, %v2624
        %v2661 = vmul.f32 %v2633, %v2625
        %v2662 = vmul.f32 %v2633, %v2626
        %v2663 = vmul.f32 %v2633, %v2627
        %v2664 = vmul.f32 %v2633, %v2628
        %v2665 = vmul.f32 %v2633, %v2629
        %v2666 = vadd.f32 %v2565, %v2634
        %v2667 = vadd.f32 %v2566, %v2635
        %v2668 = vadd.f32 %v2567, %v2636
        %v2669 = vadd.f32 %v2568, %v2637
        %v2670 = vadd.f32 %v2569, %v2638
        %v2671 = vadd.f32 %v2570, %v2639
        %v2672 = vadd.f32 %v2571, %v2640
        %v2673 = vadd.f32 %v2572, %v2641
        %v2674 = vadd.f32 %v2573, %v2642
        %v2675 = vadd.f32 %v2574, %v2643
        %v2676 = vadd.f32 %v2575, %v2644
        %v2677 = vadd.f32 %v2576, %v2645
        %v2678 = vadd.f32 %v2577, %v2646
        %v2679 = vadd.f32 %v2578, %v2647
        %v2680 = vadd.f32 %v2579, %v2648
        %v2681 = vadd.f32 %v2580, %v2649
        %v2682 = vadd.f32 %v2581, %v2650
        %v2683 = vadd.f32 %v2582, %v2651
        %v2684 = vadd.f32 %v2583, %v2652
        %v2685 = vadd.f32 %v2584, %v2653
        %v2686 = vadd.f32 %v2585, %v2654
        %v2687 = vadd.f32 %v2586, %v2655
        %v2688 = vadd.f32 %v2587, %v2656
        %v2689 = vadd.f32 %v2588, %v2657
        %v2690 = vadd.f32 %v2589, %v2658
        %v2691 = vadd.f32 %v2590, %v2659
        %v2692 = vadd.f32 %v2591, %v2660
        %v2693 = vadd.f32 %v2592, %v2661
        %v2694 = vadd.f32 %v2593, %v2662
        %v2695 = vadd.f32 %v2594, %v2663
        %v2696 = vadd.f32 %v2595, %v2664
        %v2697 = vadd.f32 %v2596, %v2665
        %v2698 = vld [vmem:[#allocation17 + $0xd] sm:$0x1]
        %v2699 = vld [vmem:[%s934 + $0x3] sm:$0xff]
        %v2700 = vld [vmem:[%s934 + $0xb] sm:$0xff]
        %v2701 = vld [vmem:[%s934 + $0x13] sm:$0xff]
        %v2702 = vld [vmem:[%s934 + $0x1b] sm:$0xff]
        %v2703 = vld [vmem:[%s934 + $0x2b] sm:$0xff]
        %v2704 = vld [vmem:[%s934 + $0x33] sm:$0xff]
        %v2705 = vld [vmem:[%s934 + $0x3b] sm:$0xff]
        %v2706 = vld [vmem:[%s934 + $0x43] sm:$0xff]
        %v2707 = vld [vmem:[%s934 + $0x53] sm:$0xff]
        %v2708 = vld [vmem:[%s934 + $0x5b] sm:$0xff]
        %v2709 = vld [vmem:[%s934 + $0x63] sm:$0xff]
        %v2710 = vld [vmem:[%s934 + $0x6b] sm:$0xff]
        %v2711 = vld [vmem:[%s934 + $0x7b] sm:$0xff]
        %v2712 = vld [vmem:[%s934 + $0x83] sm:$0xff]
        %v2713 = vld [vmem:[%s934 + $0x8b] sm:$0xff]
        %v2714 = vld [vmem:[%s934 + $0x93] sm:$0xff]
        %v2715 = vld [vmem:[%s934 + $0xa3] sm:$0xff]
        %v2716 = vld [vmem:[%s934 + $0xab] sm:$0xff]
        %v2717 = vld [vmem:[%s934 + $0xb3] sm:$0xff]
        %v2718 = vld [vmem:[%s934 + $0xbb] sm:$0xff]
        %v2719 = vld [vmem:[%s934 + $0xcb] sm:$0xff]
        %v2720 = vld [vmem:[%s934 + $0xd3] sm:$0xff]
        %v2721 = vld [vmem:[%s934 + $0xdb] sm:$0xff]
        %v2722 = vld [vmem:[%s934 + $0xe3] sm:$0xff]
        %v2723 = vld [vmem:[%s934 + $0xf3] sm:$0xff]
        %v2724 = vld [vmem:[%s934 + $0xfb] sm:$0xff]
        %v2725 = vld [vmem:[%s934 + $0x103] sm:$0xff]
        %v2726 = vld [vmem:[%s934 + $0x10b] sm:$0xff]
        %v2727 = vld [vmem:[%s934 + $0x11b] sm:$0xff]
        %v2728 = vld [vmem:[%s934 + $0x123] sm:$0xff]
        %v2729 = vld [vmem:[%s934 + $0x12b] sm:$0xff]
        %v2730 = vld [vmem:[%s934 + $0x133] sm:$0xff]
        %v2731 = vlaneseq
        %v2732 = vshrl.u32 %v2731, 7
        %v2733 = vsub.s32 0, %v2732
        %v2734 = vrot.slane %v2698, %v2733
        %v2735 = vmul.f32 %v2734, %v2699
        %v2736 = vmul.f32 %v2734, %v2700
        %v2737 = vmul.f32 %v2734, %v2701
        %v2738 = vmul.f32 %v2734, %v2702
        %v2739 = vmul.f32 %v2734, %v2703
        %v2740 = vmul.f32 %v2734, %v2704
        %v2741 = vmul.f32 %v2734, %v2705
        %v2742 = vmul.f32 %v2734, %v2706
        %v2743 = vmul.f32 %v2734, %v2707
        %v2744 = vmul.f32 %v2734, %v2708
        %v2745 = vmul.f32 %v2734, %v2709
        %v2746 = vmul.f32 %v2734, %v2710
        %v2747 = vmul.f32 %v2734, %v2711
        %v2748 = vmul.f32 %v2734, %v2712
        %v2749 = vmul.f32 %v2734, %v2713
        %v2750 = vmul.f32 %v2734, %v2714
        %v2751 = vmul.f32 %v2734, %v2715
        %v2752 = vmul.f32 %v2734, %v2716
        %v2753 = vmul.f32 %v2734, %v2717
        %v2754 = vmul.f32 %v2734, %v2718
        %v2755 = vmul.f32 %v2734, %v2719
        %v2756 = vmul.f32 %v2734, %v2720
        %v2757 = vmul.f32 %v2734, %v2721
        %v2758 = vmul.f32 %v2734, %v2722
        %v2759 = vmul.f32 %v2734, %v2723
        %v2760 = vmul.f32 %v2734, %v2724
        %v2761 = vmul.f32 %v2734, %v2725
        %v2762 = vmul.f32 %v2734, %v2726
        %v2763 = vmul.f32 %v2734, %v2727
        %v2764 = vmul.f32 %v2734, %v2728
        %v2765 = vmul.f32 %v2734, %v2729
        %v2766 = vmul.f32 %v2734, %v2730
        %v2767 = vadd.f32 %v2666, %v2735
        %v2768 = vadd.f32 %v2667, %v2736
        %v2769 = vadd.f32 %v2668, %v2737
        %v2770 = vadd.f32 %v2669, %v2738
        %v2771 = vadd.f32 %v2670, %v2739
        %v2772 = vadd.f32 %v2671, %v2740
        %v2773 = vadd.f32 %v2672, %v2741
        %v2774 = vadd.f32 %v2673, %v2742
        %v2775 = vadd.f32 %v2674, %v2743
        %v2776 = vadd.f32 %v2675, %v2744
        %v2777 = vadd.f32 %v2676, %v2745
        %v2778 = vadd.f32 %v2677, %v2746
        %v2779 = vadd.f32 %v2678, %v2747
        %v2780 = vadd.f32 %v2679, %v2748
        %v2781 = vadd.f32 %v2680, %v2749
        %v2782 = vadd.f32 %v2681, %v2750
        %v2783 = vadd.f32 %v2682, %v2751
        %v2784 = vadd.f32 %v2683, %v2752
        %v2785 = vadd.f32 %v2684, %v2753
        %v2786 = vadd.f32 %v2685, %v2754
        %v2787 = vadd.f32 %v2686, %v2755
        %v2788 = vadd.f32 %v2687, %v2756
        %v2789 = vadd.f32 %v2688, %v2757
        %v2790 = vadd.f32 %v2689, %v2758
        %v2791 = vadd.f32 %v2690, %v2759
        %v2792 = vadd.f32 %v2691, %v2760
        %v2793 = vadd.f32 %v2692, %v2761
        %v2794 = vadd.f32 %v2693, %v2762
        %v2795 = vadd.f32 %v2694, %v2763
        %v2796 = vadd.f32 %v2695, %v2764
        %v2797 = vadd.f32 %v2696, %v2765
        %v2798 = vadd.f32 %v2697, %v2766
        %v2799 = vld [vmem:[#allocation17 + $0xe] sm:$0x1]
        %v2800 = vld [vmem:[%s934 + $0x4] sm:$0xff]
        %v2801 = vld [vmem:[%s934 + $0xc] sm:$0xff]
        %v2802 = vld [vmem:[%s934 + $0x14] sm:$0xff]
        %v2803 = vld [vmem:[%s934 + $0x1c] sm:$0xff]
        %v2804 = vld [vmem:[%s934 + $0x2c] sm:$0xff]
        %v2805 = vld [vmem:[%s934 + $0x34] sm:$0xff]
        %v2806 = vld [vmem:[%s934 + $0x3c] sm:$0xff]
        %v2807 = vld [vmem:[%s934 + $0x44] sm:$0xff]
        %v2808 = vld [vmem:[%s934 + $0x54] sm:$0xff]
        %v2809 = vld [vmem:[%s934 + $0x5c] sm:$0xff]
        %v2810 = vld [vmem:[%s934 + $0x64] sm:$0xff]
        %v2811 = vld [vmem:[%s934 + $0x6c] sm:$0xff]
        %v2812 = vld [vmem:[%s934 + $0x7c] sm:$0xff]
        %v2813 = vld [vmem:[%s934 + $0x84] sm:$0xff]
        %v2814 = vld [vmem:[%s934 + $0x8c] sm:$0xff]
        %v2815 = vld [vmem:[%s934 + $0x94] sm:$0xff]
        %v2816 = vld [vmem:[%s934 + $0xa4] sm:$0xff]
        %v2817 = vld [vmem:[%s934 + $0xac] sm:$0xff]
        %v2818 = vld [vmem:[%s934 + $0xb4] sm:$0xff]
        %v2819 = vld [vmem:[%s934 + $0xbc] sm:$0xff]
        %v2820 = vld [vmem:[%s934 + $0xcc] sm:$0xff]
        %v2821 = vld [vmem:[%s934 + $0xd4] sm:$0xff]
        %v2822 = vld [vmem:[%s934 + $0xdc] sm:$0xff]
        %v2823 = vld [vmem:[%s934 + $0xe4] sm:$0xff]
        %v2824 = vld [vmem:[%s934 + $0xf4] sm:$0xff]
        %v2825 = vld [vmem:[%s934 + $0xfc] sm:$0xff]
        %v2826 = vld [vmem:[%s934 + $0x104] sm:$0xff]
        %v2827 = vld [vmem:[%s934 + $0x10c] sm:$0xff]
        %v2828 = vld [vmem:[%s934 + $0x11c] sm:$0xff]
        %v2829 = vld [vmem:[%s934 + $0x124] sm:$0xff]
        %v2830 = vld [vmem:[%s934 + $0x12c] sm:$0xff]
        %v2831 = vld [vmem:[%s934 + $0x134] sm:$0xff]
        %v2832 = vlaneseq
        %v2833 = vshrl.u32 %v2832, 7
        %v2834 = vsub.s32 0, %v2833
        %v2835 = vrot.slane %v2799, %v2834
        %v2836 = vmul.f32 %v2835, %v2800
        %v2837 = vmul.f32 %v2835, %v2801
        %v2838 = vmul.f32 %v2835, %v2802
        %v2839 = vmul.f32 %v2835, %v2803
        %v2840 = vmul.f32 %v2835, %v2804
        %v2841 = vmul.f32 %v2835, %v2805
        %v2842 = vmul.f32 %v2835, %v2806
        %v2843 = vmul.f32 %v2835, %v2807
        %v2844 = vmul.f32 %v2835, %v2808
        %v2845 = vmul.f32 %v2835, %v2809
        %v2846 = vmul.f32 %v2835, %v2810
        %v2847 = vmul.f32 %v2835, %v2811
        %v2848 = vmul.f32 %v2835, %v2812
        %v2849 = vmul.f32 %v2835, %v2813
        %v2850 = vmul.f32 %v2835, %v2814
        %v2851 = vmul.f32 %v2835, %v2815
        %v2852 = vmul.f32 %v2835, %v2816
        %v2853 = vmul.f32 %v2835, %v2817
        %v2854 = vmul.f32 %v2835, %v2818
        %v2855 = vmul.f32 %v2835, %v2819
        %v2856 = vmul.f32 %v2835, %v2820
        %v2857 = vmul.f32 %v2835, %v2821
        %v2858 = vmul.f32 %v2835, %v2822
        %v2859 = vmul.f32 %v2835, %v2823
        %v2860 = vmul.f32 %v2835, %v2824
        %v2861 = vmul.f32 %v2835, %v2825
        %v2862 = vmul.f32 %v2835, %v2826
        %v2863 = vmul.f32 %v2835, %v2827
        %v2864 = vmul.f32 %v2835, %v2828
        %v2865 = vmul.f32 %v2835, %v2829
        %v2866 = vmul.f32 %v2835, %v2830
        %v2867 = vmul.f32 %v2835, %v2831
        %v2868 = vadd.f32 %v2767, %v2836
        %v2869 = vadd.f32 %v2768, %v2837
        %v2870 = vadd.f32 %v2769, %v2838
        %v2871 = vadd.f32 %v2770, %v2839
        %v2872 = vadd.f32 %v2771, %v2840
        %v2873 = vadd.f32 %v2772, %v2841
        %v2874 = vadd.f32 %v2773, %v2842
        %v2875 = vadd.f32 %v2774, %v2843
        %v2876 = vadd.f32 %v2775, %v2844
        %v2877 = vadd.f32 %v2776, %v2845
        %v2878 = vadd.f32 %v2777, %v2846
        %v2879 = vadd.f32 %v2778, %v2847
        %v2880 = vadd.f32 %v2779, %v2848
        %v2881 = vadd.f32 %v2780, %v2849
        %v2882 = vadd.f32 %v2781, %v2850
        %v2883 = vadd.f32 %v2782, %v2851
        %v2884 = vadd.f32 %v2783, %v2852
        %v2885 = vadd.f32 %v2784, %v2853
        %v2886 = vadd.f32 %v2785, %v2854
        %v2887 = vadd.f32 %v2786, %v2855
        %v2888 = vadd.f32 %v2787, %v2856
        %v2889 = vadd.f32 %v2788, %v2857
        %v2890 = vadd.f32 %v2789, %v2858
        %v2891 = vadd.f32 %v2790, %v2859
        %v2892 = vadd.f32 %v2791, %v2860
        %v2893 = vadd.f32 %v2792, %v2861
        %v2894 = vadd.f32 %v2793, %v2862
        %v2895 = vadd.f32 %v2794, %v2863
        %v2896 = vadd.f32 %v2795, %v2864
        %v2897 = vadd.f32 %v2796, %v2865
        %v2898 = vadd.f32 %v2797, %v2866
        %v2899 = vadd.f32 %v2798, %v2867
        %v2900 = vld [vmem:[#allocation17 + $0xf] sm:$0x1]
        %v2901 = vld [vmem:[%s1100] sm:$0xff]
        %v2902 = vld [vmem:[%s1100 + $0x8] sm:$0xff]
        %v2903 = vld [vmem:[%s1100 + $0x10] sm:$0xff]
        %v2904 = vld [vmem:[%s1100 + $0x18] sm:$0xff]
        %v2905 = vld [vmem:[%s1100 + $0x28] sm:$0xff]
        %v2906 = vld [vmem:[%s1100 + $0x30] sm:$0xff]
        %v2907 = vld [vmem:[%s1100 + $0x38] sm:$0xff]
        %v2908 = vld [vmem:[%s1100 + $0x40] sm:$0xff]
        %v2909 = vld [vmem:[%s1100 + $0x50] sm:$0xff]
        %v2910 = vld [vmem:[%s1100 + $0x58] sm:$0xff]
        %v2911 = vld [vmem:[%s1100 + $0x60] sm:$0xff]
        %v2912 = vld [vmem:[%s1100 + $0x68] sm:$0xff]
        %v2913 = vld [vmem:[%s1100 + $0x78] sm:$0xff]
        %v2914 = vld [vmem:[%s1100 + $0x80] sm:$0xff]
        %v2915 = vld [vmem:[%s1100 + $0x88] sm:$0xff]
        %v2916 = vld [vmem:[%s1100 + $0x90] sm:$0xff]
        %v2917 = vld [vmem:[%s1100 + $0xa0] sm:$0xff]
        %v2918 = vld [vmem:[%s1100 + $0xa8] sm:$0xff]
        %v2919 = vld [vmem:[%s1100 + $0xb0] sm:$0xff]
        %v2920 = vld [vmem:[%s1100 + $0xb8] sm:$0xff]
        %v2921 = vld [vmem:[%s1100 + $0xc8] sm:$0xff]
        %v2922 = vld [vmem:[%s1100 + $0xd0] sm:$0xff]
        %v2923 = vld [vmem:[%s1100 + $0xd8] sm:$0xff]
        %v2924 = vld [vmem:[%s1100 + $0xe0] sm:$0xff]
        %v2925 = vld [vmem:[%s1100 + $0xf0] sm:$0xff]
        %v2926 = vld [vmem:[%s1100 + $0xf8] sm:$0xff]
        %v2927 = vld [vmem:[%s1100 + $0x100] sm:$0xff]
        %v2928 = vld [vmem:[%s1100 + $0x108] sm:$0xff]
        %v2929 = vld [vmem:[%s1100 + $0x118] sm:$0xff]
        %v2930 = vld [vmem:[%s1100 + $0x120] sm:$0xff]
        %v2931 = vld [vmem:[%s1100 + $0x128] sm:$0xff]
        %v2932 = vld [vmem:[%s1100 + $0x130] sm:$0xff]
        %v2933 = vlaneseq
        %v2934 = vshrl.u32 %v2933, 7
        %v2935 = vsub.s32 0, %v2934
        %v2936 = vrot.slane %v2900, %v2935
        %v2937 = vmul.f32 %v2936, %v2901
        %v2938 = vmul.f32 %v2936, %v2902
        %v2939 = vmul.f32 %v2936, %v2903
        %v2940 = vmul.f32 %v2936, %v2904
        %v2941 = vmul.f32 %v2936, %v2905
        %v2942 = vmul.f32 %v2936, %v2906
        %v2943 = vmul.f32 %v2936, %v2907
        %v2944 = vmul.f32 %v2936, %v2908
        %v2945 = vmul.f32 %v2936, %v2909
        %v2946 = vmul.f32 %v2936, %v2910
        %v2947 = vmul.f32 %v2936, %v2911
        %v2948 = vmul.f32 %v2936, %v2912
        %v2949 = vmul.f32 %v2936, %v2913
        %v2950 = vmul.f32 %v2936, %v2914
        %v2951 = vmul.f32 %v2936, %v2915
        %v2952 = vmul.f32 %v2936, %v2916
        %v2953 = vmul.f32 %v2936, %v2917
        %v2954 = vmul.f32 %v2936, %v2918
        %v2955 = vmul.f32 %v2936, %v2919
        %v2956 = vmul.f32 %v2936, %v2920
        %v2957 = vmul.f32 %v2936, %v2921
        %v2958 = vmul.f32 %v2936, %v2922
        %v2959 = vmul.f32 %v2936, %v2923
        %v2960 = vmul.f32 %v2936, %v2924
        %v2961 = vmul.f32 %v2936, %v2925
        %v2962 = vmul.f32 %v2936, %v2926
        %v2963 = vmul.f32 %v2936, %v2927
        %v2964 = vmul.f32 %v2936, %v2928
        %v2965 = vmul.f32 %v2936, %v2929
        %v2966 = vmul.f32 %v2936, %v2930
        %v2967 = vmul.f32 %v2936, %v2931
        %v2968 = vmul.f32 %v2936, %v2932
        %v2969 = vadd.f32 %v2868, %v2937
        %v2970 = vadd.f32 %v2869, %v2938
        %v2971 = vadd.f32 %v2870, %v2939
        %v2972 = vadd.f32 %v2871, %v2940
        %v2973 = vadd.f32 %v2872, %v2941
        %v2974 = vadd.f32 %v2873, %v2942
        %v2975 = vadd.f32 %v2874, %v2943
        %v2976 = vadd.f32 %v2875, %v2944
        %v2977 = vadd.f32 %v2876, %v2945
        %v2978 = vadd.f32 %v2877, %v2946
        %v2979 = vadd.f32 %v2878, %v2947
        %v2980 = vadd.f32 %v2879, %v2948
        %v2981 = vadd.f32 %v2880, %v2949
        %v2982 = vadd.f32 %v2881, %v2950
        %v2983 = vadd.f32 %v2882, %v2951
        %v2984 = vadd.f32 %v2883, %v2952
        %v2985 = vadd.f32 %v2884, %v2953
        %v2986 = vadd.f32 %v2885, %v2954
        %v2987 = vadd.f32 %v2886, %v2955
        %v2988 = vadd.f32 %v2887, %v2956
        %v2989 = vadd.f32 %v2888, %v2957
        %v2990 = vadd.f32 %v2889, %v2958
        %v2991 = vadd.f32 %v2890, %v2959
        %v2992 = vadd.f32 %v2891, %v2960
        %v2993 = vadd.f32 %v2892, %v2961
        %v2994 = vadd.f32 %v2893, %v2962
        %v2995 = vadd.f32 %v2894, %v2963
        %v2996 = vadd.f32 %v2895, %v2964
        %v2997 = vadd.f32 %v2896, %v2965
        %v2998 = vadd.f32 %v2897, %v2966
        %v2999 = vadd.f32 %v2898, %v2967
        %v3000 = vadd.f32 %v2899, %v2968
        %v3001 = vld [vmem:[#allocation17 + $0x10] sm:$0x1]
        %v3002 = vld [vmem:[%s1100 + $0x1] sm:$0xff]
        %v3003 = vld [vmem:[%s1100 + $0x9] sm:$0xff]
        %v3004 = vld [vmem:[%s1100 + $0x11] sm:$0xff]
        %v3005 = vld [vmem:[%s1100 + $0x19] sm:$0xff]
        %v3006 = vld [vmem:[%s1100 + $0x29] sm:$0xff]
        %v3007 = vld [vmem:[%s1100 + $0x31] sm:$0xff]
        %v3008 = vld [vmem:[%s1100 + $0x39] sm:$0xff]
        %v3009 = vld [vmem:[%s1100 + $0x41] sm:$0xff]
        %v3010 = vld [vmem:[%s1100 + $0x51] sm:$0xff]
        %v3011 = vld [vmem:[%s1100 + $0x59] sm:$0xff]
        %v3012 = vld [vmem:[%s1100 + $0x61] sm:$0xff]
        %v3013 = vld [vmem:[%s1100 + $0x69] sm:$0xff]
        %v3014 = vld [vmem:[%s1100 + $0x79] sm:$0xff]
        %v3015 = vld [vmem:[%s1100 + $0x81] sm:$0xff]
        %v3016 = vld [vmem:[%s1100 + $0x89] sm:$0xff]
        %v3017 = vld [vmem:[%s1100 + $0x91] sm:$0xff]
        %v3018 = vld [vmem:[%s1100 + $0xa1] sm:$0xff]
        %v3019 = vld [vmem:[%s1100 + $0xa9] sm:$0xff]
        %v3020 = vld [vmem:[%s1100 + $0xb1] sm:$0xff]
        %v3021 = vld [vmem:[%s1100 + $0xb9] sm:$0xff]
        %v3022 = vld [vmem:[%s1100 + $0xc9] sm:$0xff]
        %v3023 = vld [vmem:[%s1100 + $0xd1] sm:$0xff]
        %v3024 = vld [vmem:[%s1100 + $0xd9] sm:$0xff]
        %v3025 = vld [vmem:[%s1100 + $0xe1] sm:$0xff]
        %v3026 = vld [vmem:[%s1100 + $0xf1] sm:$0xff]
        %v3027 = vld [vmem:[%s1100 + $0xf9] sm:$0xff]
        %v3028 = vld [vmem:[%s1100 + $0x101] sm:$0xff]
        %v3029 = vld [vmem:[%s1100 + $0x109] sm:$0xff]
        %v3030 = vld [vmem:[%s1100 + $0x119] sm:$0xff]
        %v3031 = vld [vmem:[%s1100 + $0x121] sm:$0xff]
        %v3032 = vld [vmem:[%s1100 + $0x129] sm:$0xff]
        %v3033 = vld [vmem:[%s1100 + $0x131] sm:$0xff]
        %v3034 = vlaneseq
        %v3035 = vshrl.u32 %v3034, 7
        %v3036 = vsub.s32 0, %v3035
        %v3037 = vrot.slane %v3001, %v3036
        %v3038 = vmul.f32 %v3037, %v3002
        %v3039 = vmul.f32 %v3037, %v3003
        %v3040 = vmul.f32 %v3037, %v3004
        %v3041 = vmul.f32 %v3037, %v3005
        %v3042 = vmul.f32 %v3037, %v3006
        %v3043 = vmul.f32 %v3037, %v3007
        %v3044 = vmul.f32 %v3037, %v3008
        %v3045 = vmul.f32 %v3037, %v3009
        %v3046 = vmul.f32 %v3037, %v3010
        %v3047 = vmul.f32 %v3037, %v3011
        %v3048 = vmul.f32 %v3037, %v3012
        %v3049 = vmul.f32 %v3037, %v3013
        %v3050 = vmul.f32 %v3037, %v3014
        %v3051 = vmul.f32 %v3037, %v3015
        %v3052 = vmul.f32 %v3037, %v3016
        %v3053 = vmul.f32 %v3037, %v3017
        %v3054 = vmul.f32 %v3037, %v3018
        %v3055 = vmul.f32 %v3037, %v3019
        %v3056 = vmul.f32 %v3037, %v3020
        %v3057 = vmul.f32 %v3037, %v3021
        %v3058 = vmul.f32 %v3037, %v3022
        %v3059 = vmul.f32 %v3037, %v3023
        %v3060 = vmul.f32 %v3037, %v3024
        %v3061 = vmul.f32 %v3037, %v3025
        %v3062 = vmul.f32 %v3037, %v3026
        %v3063 = vmul.f32 %v3037, %v3027
        %v3064 = vmul.f32 %v3037, %v3028
        %v3065 = vmul.f32 %v3037, %v3029
        %v3066 = vmul.f32 %v3037, %v3030
        %v3067 = vmul.f32 %v3037, %v3031
        %v3068 = vmul.f32 %v3037, %v3032
        %v3069 = vmul.f32 %v3037, %v3033
        %v3070 = vadd.f32 %v2969, %v3038
        %v3071 = vadd.f32 %v2970, %v3039
        %v3072 = vadd.f32 %v2971, %v3040
        %v3073 = vadd.f32 %v2972, %v3041
        %v3074 = vadd.f32 %v2973, %v3042
        %v3075 = vadd.f32 %v2974, %v3043
        %v3076 = vadd.f32 %v2975, %v3044
        %v3077 = vadd.f32 %v2976, %v3045
        %v3078 = vadd.f32 %v2977, %v3046
        %v3079 = vadd.f32 %v2978, %v3047
        %v3080 = vadd.f32 %v2979, %v3048
        %v3081 = vadd.f32 %v2980, %v3049
        %v3082 = vadd.f32 %v2981, %v3050
        %v3083 = vadd.f32 %v2982, %v3051
        %v3084 = vadd.f32 %v2983, %v3052
        %v3085 = vadd.f32 %v2984, %v3053
        %v3086 = vadd.f32 %v2985, %v3054
        %v3087 = vadd.f32 %v2986, %v3055
        %v3088 = vadd.f32 %v2987, %v3056
        %v3089 = vadd.f32 %v2988, %v3057
        %v3090 = vadd.f32 %v2989, %v3058
        %v3091 = vadd.f32 %v2990, %v3059
        %v3092 = vadd.f32 %v2991, %v3060
        %v3093 = vadd.f32 %v2992, %v3061
        %v3094 = vadd.f32 %v2993, %v3062
        %v3095 = vadd.f32 %v2994, %v3063
        %v3096 = vadd.f32 %v2995, %v3064
        %v3097 = vadd.f32 %v2996, %v3065
        %v3098 = vadd.f32 %v2997, %v3066
        %v3099 = vadd.f32 %v2998, %v3067
        %v3100 = vadd.f32 %v2999, %v3068
        %v3101 = vadd.f32 %v3000, %v3069
        %v3102 = vld [vmem:[#allocation17 + $0x11] sm:$0x1]
        %v3103 = vld [vmem:[%s1100 + $0x2] sm:$0xff]
        %v3104 = vld [vmem:[%s1100 + $0xa] sm:$0xff]
        %v3105 = vld [vmem:[%s1100 + $0x12] sm:$0xff]
        %v3106 = vld [vmem:[%s1100 + $0x1a] sm:$0xff]
        %v3107 = vld [vmem:[%s1100 + $0x2a] sm:$0xff]
        %v3108 = vld [vmem:[%s1100 + $0x32] sm:$0xff]
        %v3109 = vld [vmem:[%s1100 + $0x3a] sm:$0xff]
        %v3110 = vld [vmem:[%s1100 + $0x42] sm:$0xff]
        %v3111 = vld [vmem:[%s1100 + $0x52] sm:$0xff]
        %v3112 = vld [vmem:[%s1100 + $0x5a] sm:$0xff]
        %v3113 = vld [vmem:[%s1100 + $0x62] sm:$0xff]
        %v3114 = vld [vmem:[%s1100 + $0x6a] sm:$0xff]
        %v3115 = vld [vmem:[%s1100 + $0x7a] sm:$0xff]
        %v3116 = vld [vmem:[%s1100 + $0x82] sm:$0xff]
        %v3117 = vld [vmem:[%s1100 + $0x8a] sm:$0xff]
        %v3118 = vld [vmem:[%s1100 + $0x92] sm:$0xff]
        %v3119 = vld [vmem:[%s1100 + $0xa2] sm:$0xff]
        %v3120 = vld [vmem:[%s1100 + $0xaa] sm:$0xff]
        %v3121 = vld [vmem:[%s1100 + $0xb2] sm:$0xff]
        %v3122 = vld [vmem:[%s1100 + $0xba] sm:$0xff]
        %v3123 = vld [vmem:[%s1100 + $0xca] sm:$0xff]
        %v3124 = vld [vmem:[%s1100 + $0xd2] sm:$0xff]
        %v3125 = vld [vmem:[%s1100 + $0xda] sm:$0xff]
        %v3126 = vld [vmem:[%s1100 + $0xe2] sm:$0xff]
        %v3127 = vld [vmem:[%s1100 + $0xf2] sm:$0xff]
        %v3128 = vld [vmem:[%s1100 + $0xfa] sm:$0xff]
        %v3129 = vld [vmem:[%s1100 + $0x102] sm:$0xff]
        %v3130 = vld [vmem:[%s1100 + $0x10a] sm:$0xff]
        %v3131 = vld [vmem:[%s1100 + $0x11a] sm:$0xff]
        %v3132 = vld [vmem:[%s1100 + $0x122] sm:$0xff]
        %v3133 = vld [vmem:[%s1100 + $0x12a] sm:$0xff]
        %v3134 = vld [vmem:[%s1100 + $0x132] sm:$0xff]
        %v3135 = vlaneseq
        %v3136 = vshrl.u32 %v3135, 7
        %v3137 = vsub.s32 0, %v3136
        %v3138 = vrot.slane %v3102, %v3137
        %v3139 = vmul.f32 %v3138, %v3103
        %v3140 = vmul.f32 %v3138, %v3104
        %v3141 = vmul.f32 %v3138, %v3105
        %v3142 = vmul.f32 %v3138, %v3106
        %v3143 = vmul.f32 %v3138, %v3107
        %v3144 = vmul.f32 %v3138, %v3108
        %v3145 = vmul.f32 %v3138, %v3109
        %v3146 = vmul.f32 %v3138, %v3110
        %v3147 = vmul.f32 %v3138, %v3111
        %v3148 = vmul.f32 %v3138, %v3112
        %v3149 = vmul.f32 %v3138, %v3113
        %v3150 = vmul.f32 %v3138, %v3114
        %v3151 = vmul.f32 %v3138, %v3115
        %v3152 = vmul.f32 %v3138, %v3116
        %v3153 = vmul.f32 %v3138, %v3117
        %v3154 = vmul.f32 %v3138, %v3118
        %v3155 = vmul.f32 %v3138, %v3119
        %v3156 = vmul.f32 %v3138, %v3120
        %v3157 = vmul.f32 %v3138, %v3121
        %v3158 = vmul.f32 %v3138, %v3122
        %v3159 = vmul.f32 %v3138, %v3123
        %v3160 = vmul.f32 %v3138, %v3124
        %v3161 = vmul.f32 %v3138, %v3125
        %v3162 = vmul.f32 %v3138, %v3126
        %v3163 = vmul.f32 %v3138, %v3127
        %v3164 = vmul.f32 %v3138, %v3128
        %v3165 = vmul.f32 %v3138, %v3129
        %v3166 = vmul.f32 %v3138, %v3130
        %v3167 = vmul.f32 %v3138, %v3131
        %v3168 = vmul.f32 %v3138, %v3132
        %v3169 = vmul.f32 %v3138, %v3133
        %v3170 = vmul.f32 %v3138, %v3134
        %v3171 = vadd.f32 %v3070, %v3139
        %v3172 = vadd.f32 %v3071, %v3140
        %v3173 = vadd.f32 %v3072, %v3141
        %v3174 = vadd.f32 %v3073, %v3142
        %v3175 = vadd.f32 %v3074, %v3143
        %v3176 = vadd.f32 %v3075, %v3144
        %v3177 = vadd.f32 %v3076, %v3145
        %v3178 = vadd.f32 %v3077, %v3146
        %v3179 = vadd.f32 %v3078, %v3147
        %v3180 = vadd.f32 %v3079, %v3148
        %v3181 = vadd.f32 %v3080, %v3149
        %v3182 = vadd.f32 %v3081, %v3150
        %v3183 = vadd.f32 %v3082, %v3151
        %v3184 = vadd.f32 %v3083, %v3152
        %v3185 = vadd.f32 %v3084, %v3153
        %v3186 = vadd.f32 %v3085, %v3154
        %v3187 = vadd.f32 %v3086, %v3155
        %v3188 = vadd.f32 %v3087, %v3156
        %v3189 = vadd.f32 %v3088, %v3157
        %v3190 = vadd.f32 %v3089, %v3158
        %v3191 = vadd.f32 %v3090, %v3159
        %v3192 = vadd.f32 %v3091, %v3160
        %v3193 = vadd.f32 %v3092, %v3161
        %v3194 = vadd.f32 %v3093, %v3162
        %v3195 = vadd.f32 %v3094, %v3163
        %v3196 = vadd.f32 %v3095, %v3164
        %v3197 = vadd.f32 %v3096, %v3165
        %v3198 = vadd.f32 %v3097, %v3166
        %v3199 = vadd.f32 %v3098, %v3167
        %v3200 = vadd.f32 %v3099, %v3168
        %v3201 = vadd.f32 %v3100, %v3169
        %v3202 = vadd.f32 %v3101, %v3170
        %v3203 = vld [vmem:[#allocation17 + $0x12] sm:$0x1]
        %v3204 = vld [vmem:[%s1100 + $0x3] sm:$0xff]
        %v3205 = vld [vmem:[%s1100 + $0xb] sm:$0xff]
        %v3206 = vld [vmem:[%s1100 + $0x13] sm:$0xff]
        %v3207 = vld [vmem:[%s1100 + $0x1b] sm:$0xff]
        %v3208 = vld [vmem:[%s1100 + $0x2b] sm:$0xff]
        %v3209 = vld [vmem:[%s1100 + $0x33] sm:$0xff]
        %v3210 = vld [vmem:[%s1100 + $0x3b] sm:$0xff]
        %v3211 = vld [vmem:[%s1100 + $0x43] sm:$0xff]
        %v3212 = vld [vmem:[%s1100 + $0x53] sm:$0xff]
        %v3213 = vld [vmem:[%s1100 + $0x5b] sm:$0xff]
        %v3214 = vld [vmem:[%s1100 + $0x63] sm:$0xff]
        %v3215 = vld [vmem:[%s1100 + $0x6b] sm:$0xff]
        %v3216 = vld [vmem:[%s1100 + $0x7b] sm:$0xff]
        %v3217 = vld [vmem:[%s1100 + $0x83] sm:$0xff]
        %v3218 = vld [vmem:[%s1100 + $0x8b] sm:$0xff]
        %v3219 = vld [vmem:[%s1100 + $0x93] sm:$0xff]
        %v3220 = vld [vmem:[%s1100 + $0xa3] sm:$0xff]
        %v3221 = vld [vmem:[%s1100 + $0xab] sm:$0xff]
        %v3222 = vld [vmem:[%s1100 + $0xb3] sm:$0xff]
        %v3223 = vld [vmem:[%s1100 + $0xbb] sm:$0xff]
        %v3224 = vld [vmem:[%s1100 + $0xcb] sm:$0xff]
        %v3225 = vld [vmem:[%s1100 + $0xd3] sm:$0xff]
        %v3226 = vld [vmem:[%s1100 + $0xdb] sm:$0xff]
        %v3227 = vld [vmem:[%s1100 + $0xe3] sm:$0xff]
        %v3228 = vld [vmem:[%s1100 + $0xf3] sm:$0xff]
        %v3229 = vld [vmem:[%s1100 + $0xfb] sm:$0xff]
        %v3230 = vld [vmem:[%s1100 + $0x103] sm:$0xff]
        %v3231 = vld [vmem:[%s1100 + $0x10b] sm:$0xff]
        %v3232 = vld [vmem:[%s1100 + $0x11b] sm:$0xff]
        %v3233 = vld [vmem:[%s1100 + $0x123] sm:$0xff]
        %v3234 = vld [vmem:[%s1100 + $0x12b] sm:$0xff]
        %v3235 = vld [vmem:[%s1100 + $0x133] sm:$0xff]
        %v3236 = vlaneseq
        %v3237 = vshrl.u32 %v3236, 7
        %v3238 = vsub.s32 0, %v3237
        %v3239 = vrot.slane %v3203, %v3238
        %v3240 = vmul.f32 %v3239, %v3204
        %v3241 = vmul.f32 %v3239, %v3205
        %v3242 = vmul.f32 %v3239, %v3206
        %v3243 = vmul.f32 %v3239, %v3207
        %v3244 = vmul.f32 %v3239, %v3208
        %v3245 = vmul.f32 %v3239, %v3209
        %v3246 = vmul.f32 %v3239, %v3210
        %v3247 = vmul.f32 %v3239, %v3211
        %v3248 = vmul.f32 %v3239, %v3212
        %v3249 = vmul.f32 %v3239, %v3213
        %v3250 = vmul.f32 %v3239, %v3214
        %v3251 = vmul.f32 %v3239, %v3215
        %v3252 = vmul.f32 %v3239, %v3216
        %v3253 = vmul.f32 %v3239, %v3217
        %v3254 = vmul.f32 %v3239, %v3218
        %v3255 = vmul.f32 %v3239, %v3219
        %v3256 = vmul.f32 %v3239, %v3220
        %v3257 = vmul.f32 %v3239, %v3221
        %v3258 = vmul.f32 %v3239, %v3222
        %v3259 = vmul.f32 %v3239, %v3223
        %v3260 = vmul.f32 %v3239, %v3224
        %v3261 = vmul.f32 %v3239, %v3225
        %v3262 = vmul.f32 %v3239, %v3226
        %v3263 = vmul.f32 %v3239, %v3227
        %v3264 = vmul.f32 %v3239, %v3228
        %v3265 = vmul.f32 %v3239, %v3229
        %v3266 = vmul.f32 %v3239, %v3230
        %v3267 = vmul.f32 %v3239, %v3231
        %v3268 = vmul.f32 %v3239, %v3232
        %v3269 = vmul.f32 %v3239, %v3233
        %v3270 = vmul.f32 %v3239, %v3234
        %v3271 = vmul.f32 %v3239, %v3235
        %v3272 = vadd.f32 %v3171, %v3240
        %v3273 = vadd.f32 %v3172, %v3241
        %v3274 = vadd.f32 %v3173, %v3242
        %v3275 = vadd.f32 %v3174, %v3243
        %v3276 = vadd.f32 %v3175, %v3244
        %v3277 = vadd.f32 %v3176, %v3245
        %v3278 = vadd.f32 %v3177, %v3246
        %v3279 = vadd.f32 %v3178, %v3247
        %v3280 = vadd.f32 %v3179, %v3248
        %v3281 = vadd.f32 %v3180, %v3249
        %v3282 = vadd.f32 %v3181, %v3250
        %v3283 = vadd.f32 %v3182, %v3251
        %v3284 = vadd.f32 %v3183, %v3252
        %v3285 = vadd.f32 %v3184, %v3253
        %v3286 = vadd.f32 %v3185, %v3254
        %v3287 = vadd.f32 %v3186, %v3255
        %v3288 = vadd.f32 %v3187, %v3256
        %v3289 = vadd.f32 %v3188, %v3257
        %v3290 = vadd.f32 %v3189, %v3258
        %v3291 = vadd.f32 %v3190, %v3259
        %v3292 = vadd.f32 %v3191, %v3260
        %v3293 = vadd.f32 %v3192, %v3261
        %v3294 = vadd.f32 %v3193, %v3262
        %v3295 = vadd.f32 %v3194, %v3263
        %v3296 = vadd.f32 %v3195, %v3264
        %v3297 = vadd.f32 %v3196, %v3265
        %v3298 = vadd.f32 %v3197, %v3266
        %v3299 = vadd.f32 %v3198, %v3267
        %v3300 = vadd.f32 %v3199, %v3268
        %v3301 = vadd.f32 %v3200, %v3269
        %v3302 = vadd.f32 %v3201, %v3270
        %v3303 = vadd.f32 %v3202, %v3271
        %v3304 = vld [vmem:[#allocation17 + $0x13] sm:$0x1]
        %v3305 = vld [vmem:[%s1100 + $0x4] sm:$0xff]
        %v3306 = vld [vmem:[%s1100 + $0xc] sm:$0xff]
        %v3307 = vld [vmem:[%s1100 + $0x14] sm:$0xff]
        %v3308 = vld [vmem:[%s1100 + $0x1c] sm:$0xff]
        %v3309 = vld [vmem:[%s1100 + $0x2c] sm:$0xff]
        %v3310 = vld [vmem:[%s1100 + $0x34] sm:$0xff]
        %v3311 = vld [vmem:[%s1100 + $0x3c] sm:$0xff]
        %v3312 = vld [vmem:[%s1100 + $0x44] sm:$0xff]
        %v3313 = vld [vmem:[%s1100 + $0x54] sm:$0xff]
        %v3314 = vld [vmem:[%s1100 + $0x5c] sm:$0xff]
        %v3315 = vld [vmem:[%s1100 + $0x64] sm:$0xff]
        %v3316 = vld [vmem:[%s1100 + $0x6c] sm:$0xff]
        %v3317 = vld [vmem:[%s1100 + $0x7c] sm:$0xff]
        %v3318 = vld [vmem:[%s1100 + $0x84] sm:$0xff]
        %v3319 = vld [vmem:[%s1100 + $0x8c] sm:$0xff]
        %v3320 = vld [vmem:[%s1100 + $0x94] sm:$0xff]
        %v3321 = vld [vmem:[%s1100 + $0xa4] sm:$0xff]
        %v3322 = vld [vmem:[%s1100 + $0xac] sm:$0xff]
        %v3323 = vld [vmem:[%s1100 + $0xb4] sm:$0xff]
        %v3324 = vld [vmem:[%s1100 + $0xbc] sm:$0xff]
        %v3325 = vld [vmem:[%s1100 + $0xcc] sm:$0xff]
        %v3326 = vld [vmem:[%s1100 + $0xd4] sm:$0xff]
        %v3327 = vld [vmem:[%s1100 + $0xdc] sm:$0xff]
        %v3328 = vld [vmem:[%s1100 + $0xe4] sm:$0xff]
        %v3329 = vld [vmem:[%s1100 + $0xf4] sm:$0xff]
        %v3330 = vld [vmem:[%s1100 + $0xfc] sm:$0xff]
        %v3331 = vld [vmem:[%s1100 + $0x104] sm:$0xff]
        %v3332 = vld [vmem:[%s1100 + $0x10c] sm:$0xff]
        %v3333 = vld [vmem:[%s1100 + $0x11c] sm:$0xff]
        %v3334 = vld [vmem:[%s1100 + $0x124] sm:$0xff]
        %v3335 = vld [vmem:[%s1100 + $0x12c] sm:$0xff]
        %v3336 = vld [vmem:[%s1100 + $0x134] sm:$0xff]
        %v3337 = vlaneseq
        %v3338 = vshrl.u32 %v3337, 7
        %v3339 = vsub.s32 0, %v3338
        %v3340 = vrot.slane %v3304, %v3339
        %v3341 = vmul.f32 %v3340, %v3305
        %v3342 = vmul.f32 %v3340, %v3306
        %v3343 = vmul.f32 %v3340, %v3307
        %v3344 = vmul.f32 %v3340, %v3308
        %v3345 = vmul.f32 %v3340, %v3309
        %v3346 = vmul.f32 %v3340, %v3310
        %v3347 = vmul.f32 %v3340, %v3311
        %v3348 = vmul.f32 %v3340, %v3312
        %v3349 = vmul.f32 %v3340, %v3313
        %v3350 = vmul.f32 %v3340, %v3314
        %v3351 = vmul.f32 %v3340, %v3315
        %v3352 = vmul.f32 %v3340, %v3316
        %v3353 = vmul.f32 %v3340, %v3317
        %v3354 = vmul.f32 %v3340, %v3318
        %v3355 = vmul.f32 %v3340, %v3319
        %v3356 = vmul.f32 %v3340, %v3320
        %v3357 = vmul.f32 %v3340, %v3321
        %v3358 = vmul.f32 %v3340, %v3322
        %v3359 = vmul.f32 %v3340, %v3323
        %v3360 = vmul.f32 %v3340, %v3324
        %v3361 = vmul.f32 %v3340, %v3325
        %v3362 = vmul.f32 %v3340, %v3326
        %v3363 = vmul.f32 %v3340, %v3327
        %v3364 = vmul.f32 %v3340, %v3328
        %v3365 = vmul.f32 %v3340, %v3329
        %v3366 = vmul.f32 %v3340, %v3330
        %v3367 = vmul.f32 %v3340, %v3331
        %v3368 = vmul.f32 %v3340, %v3332
        %v3369 = vmul.f32 %v3340, %v3333
        %v3370 = vmul.f32 %v3340, %v3334
        %v3371 = vmul.f32 %v3340, %v3335
        %v3372 = vmul.f32 %v3340, %v3336
        %v3373 = vadd.f32 %v3272, %v3341
        %v3374 = vadd.f32 %v3273, %v3342
        %v3375 = vadd.f32 %v3274, %v3343
        %v3376 = vadd.f32 %v3275, %v3344
        %v3377 = vadd.f32 %v3276, %v3345
        %v3378 = vadd.f32 %v3277, %v3346
        %v3379 = vadd.f32 %v3278, %v3347
        %v3380 = vadd.f32 %v3279, %v3348
        %v3381 = vadd.f32 %v3280, %v3349
        %v3382 = vadd.f32 %v3281, %v3350
        %v3383 = vadd.f32 %v3282, %v3351
        %v3384 = vadd.f32 %v3283, %v3352
        %v3385 = vadd.f32 %v3284, %v3353
        %v3386 = vadd.f32 %v3285, %v3354
        %v3387 = vadd.f32 %v3286, %v3355
        %v3388 = vadd.f32 %v3287, %v3356
        %v3389 = vadd.f32 %v3288, %v3357
        %v3390 = vadd.f32 %v3289, %v3358
        %v3391 = vadd.f32 %v3290, %v3359
        %v3392 = vadd.f32 %v3291, %v3360
        %v3393 = vadd.f32 %v3292, %v3361
        %v3394 = vadd.f32 %v3293, %v3362
        %v3395 = vadd.f32 %v3294, %v3363
        %v3396 = vadd.f32 %v3295, %v3364
        %v3397 = vadd.f32 %v3296, %v3365
        %v3398 = vadd.f32 %v3297, %v3366
        %v3399 = vadd.f32 %v3298, %v3367
        %v3400 = vadd.f32 %v3299, %v3368
        %v3401 = vadd.f32 %v3300, %v3369
        %v3402 = vadd.f32 %v3301, %v3370
        %v3403 = vadd.f32 %v3302, %v3371
        %v3404 = vadd.f32 %v3303, %v3372
        %v3405 = vld [vmem:[#allocation17 + $0x14] sm:$0x1]
        %v3406 = vld [vmem:[%s1138] sm:$0xff]
        %v3407 = vld [vmem:[%s1138 + $0x8] sm:$0xff]
        %v3408 = vld [vmem:[%s1138 + $0x10] sm:$0xff]
        %v3409 = vld [vmem:[%s1138 + $0x18] sm:$0xff]
        %v3410 = vld [vmem:[%s1138 + $0x28] sm:$0xff]
        %v3411 = vld [vmem:[%s1138 + $0x30] sm:$0xff]
        %v3412 = vld [vmem:[%s1138 + $0x38] sm:$0xff]
        %v3413 = vld [vmem:[%s1138 + $0x40] sm:$0xff]
        %v3414 = vld [vmem:[%s1138 + $0x50] sm:$0xff]
        %v3415 = vld [vmem:[%s1138 + $0x58] sm:$0xff]
        %v3416 = vld [vmem:[%s1138 + $0x60] sm:$0xff]
        %v3417 = vld [vmem:[%s1138 + $0x68] sm:$0xff]
        %v3418 = vld [vmem:[%s1138 + $0x78] sm:$0xff]
        %v3419 = vld [vmem:[%s1138 + $0x80] sm:$0xff]
        %v3420 = vld [vmem:[%s1138 + $0x88] sm:$0xff]
        %v3421 = vld [vmem:[%s1138 + $0x90] sm:$0xff]
        %v3422 = vld [vmem:[%s1138 + $0xa0] sm:$0xff]
        %v3423 = vld [vmem:[%s1138 + $0xa8] sm:$0xff]
        %v3424 = vld [vmem:[%s1138 + $0xb0] sm:$0xff]
        %v3425 = vld [vmem:[%s1138 + $0xb8] sm:$0xff]
        %v3426 = vld [vmem:[%s1138 + $0xc8] sm:$0xff]
        %v3427 = vld [vmem:[%s1138 + $0xd0] sm:$0xff]
        %v3428 = vld [vmem:[%s1138 + $0xd8] sm:$0xff]
        %v3429 = vld [vmem:[%s1138 + $0xe0] sm:$0xff]
        %v3430 = vld [vmem:[%s1138 + $0xf0] sm:$0xff]
        %v3431 = vld [vmem:[%s1138 + $0xf8] sm:$0xff]
        %v3432 = vld [vmem:[%s1138 + $0x100] sm:$0xff]
        %v3433 = vld [vmem:[%s1138 + $0x108] sm:$0xff]
        %v3434 = vld [vmem:[%s1138 + $0x118] sm:$0xff]
        %v3435 = vld [vmem:[%s1138 + $0x120] sm:$0xff]
        %v3436 = vld [vmem:[%s1138 + $0x128] sm:$0xff]
        %v3437 = vld [vmem:[%s1138 + $0x130] sm:$0xff]
        %v3438 = vlaneseq
        %v3439 = vshrl.u32 %v3438, 7
        %v3440 = vsub.s32 0, %v3439
        %v3441 = vrot.slane %v3405, %v3440
        %v3442 = vmul.f32 %v3441, %v3406
        %v3443 = vmul.f32 %v3441, %v3407
        %v3444 = vmul.f32 %v3441, %v3408
        %v3445 = vmul.f32 %v3441, %v3409
        %v3446 = vmul.f32 %v3441, %v3410
        %v3447 = vmul.f32 %v3441, %v3411
        %v3448 = vmul.f32 %v3441, %v3412
        %v3449 = vmul.f32 %v3441, %v3413
        %v3450 = vmul.f32 %v3441, %v3414
        %v3451 = vmul.f32 %v3441, %v3415
        %v3452 = vmul.f32 %v3441, %v3416
        %v3453 = vmul.f32 %v3441, %v3417
        %v3454 = vmul.f32 %v3441, %v3418
        %v3455 = vmul.f32 %v3441, %v3419
        %v3456 = vmul.f32 %v3441, %v3420
        %v3457 = vmul.f32 %v3441, %v3421
        %v3458 = vmul.f32 %v3441, %v3422
        %v3459 = vmul.f32 %v3441, %v3423
        %v3460 = vmul.f32 %v3441, %v3424
        %v3461 = vmul.f32 %v3441, %v3425
        %v3462 = vmul.f32 %v3441, %v3426
        %v3463 = vmul.f32 %v3441, %v3427
        %v3464 = vmul.f32 %v3441, %v3428
        %v3465 = vmul.f32 %v3441, %v3429
        %v3466 = vmul.f32 %v3441, %v3430
        %v3467 = vmul.f32 %v3441, %v3431
        %v3468 = vmul.f32 %v3441, %v3432
        %v3469 = vmul.f32 %v3441, %v3433
        %v3470 = vmul.f32 %v3441, %v3434
        %v3471 = vmul.f32 %v3441, %v3435
        %v3472 = vmul.f32 %v3441, %v3436
        %v3473 = vmul.f32 %v3441, %v3437
        %v3474 = vadd.f32 %v3373, %v3442
        %v3475 = vadd.f32 %v3374, %v3443
        %v3476 = vadd.f32 %v3375, %v3444
        %v3477 = vadd.f32 %v3376, %v3445
        %v3478 = vadd.f32 %v3377, %v3446
        %v3479 = vadd.f32 %v3378, %v3447
        %v3480 = vadd.f32 %v3379, %v3448
        %v3481 = vadd.f32 %v3380, %v3449
        %v3482 = vadd.f32 %v3381, %v3450
        %v3483 = vadd.f32 %v3382, %v3451
        %v3484 = vadd.f32 %v3383, %v3452
        %v3485 = vadd.f32 %v3384, %v3453
        %v3486 = vadd.f32 %v3385, %v3454
        %v3487 = vadd.f32 %v3386, %v3455
        %v3488 = vadd.f32 %v3387, %v3456
        %v3489 = vadd.f32 %v3388, %v3457
        %v3490 = vadd.f32 %v3389, %v3458
        %v3491 = vadd.f32 %v3390, %v3459
        %v3492 = vadd.f32 %v3391, %v3460
        %v3493 = vadd.f32 %v3392, %v3461
        %v3494 = vadd.f32 %v3393, %v3462
        %v3495 = vadd.f32 %v3394, %v3463
        %v3496 = vadd.f32 %v3395, %v3464
        %v3497 = vadd.f32 %v3396, %v3465
        %v3498 = vadd.f32 %v3397, %v3466
        %v3499 = vadd.f32 %v3398, %v3467
        %v3500 = vadd.f32 %v3399, %v3468
        %v3501 = vadd.f32 %v3400, %v3469
        %v3502 = vadd.f32 %v3401, %v3470
        %v3503 = vadd.f32 %v3402, %v3471
        %v3504 = vadd.f32 %v3403, %v3472
        %v3505 = vadd.f32 %v3404, %v3473
        %v3506 = vld [vmem:[#allocation17 + $0x15] sm:$0x1]
        %v3507 = vld [vmem:[%s1138 + $0x1] sm:$0xff]
        %v3508 = vld [vmem:[%s1138 + $0x9] sm:$0xff]
        %v3509 = vld [vmem:[%s1138 + $0x11] sm:$0xff]
        %v3510 = vld [vmem:[%s1138 + $0x19] sm:$0xff]
        %v3511 = vld [vmem:[%s1138 + $0x29] sm:$0xff]
        %v3512 = vld [vmem:[%s1138 + $0x31] sm:$0xff]
        %v3513 = vld [vmem:[%s1138 + $0x39] sm:$0xff]
        %v3514 = vld [vmem:[%s1138 + $0x41] sm:$0xff]
        %v3515 = vld [vmem:[%s1138 + $0x51] sm:$0xff]
        %v3516 = vld [vmem:[%s1138 + $0x59] sm:$0xff]
        %v3517 = vld [vmem:[%s1138 + $0x61] sm:$0xff]
        %v3518 = vld [vmem:[%s1138 + $0x69] sm:$0xff]
        %v3519 = vld [vmem:[%s1138 + $0x79] sm:$0xff]
        %v3520 = vld [vmem:[%s1138 + $0x81] sm:$0xff]
        %v3521 = vld [vmem:[%s1138 + $0x89] sm:$0xff]
        %v3522 = vld [vmem:[%s1138 + $0x91] sm:$0xff]
        %v3523 = vld [vmem:[%s1138 + $0xa1] sm:$0xff]
        %v3524 = vld [vmem:[%s1138 + $0xa9] sm:$0xff]
        %v3525 = vld [vmem:[%s1138 + $0xb1] sm:$0xff]
        %v3526 = vld [vmem:[%s1138 + $0xb9] sm:$0xff]
        %v3527 = vld [vmem:[%s1138 + $0xc9] sm:$0xff]
        %v3528 = vld [vmem:[%s1138 + $0xd1] sm:$0xff]
        %v3529 = vld [vmem:[%s1138 + $0xd9] sm:$0xff]
        %v3530 = vld [vmem:[%s1138 + $0xe1] sm:$0xff]
        %v3531 = vld [vmem:[%s1138 + $0xf1] sm:$0xff]
        %v3532 = vld [vmem:[%s1138 + $0xf9] sm:$0xff]
        %v3533 = vld [vmem:[%s1138 + $0x101] sm:$0xff]
        %v3534 = vld [vmem:[%s1138 + $0x109] sm:$0xff]
        %v3535 = vld [vmem:[%s1138 + $0x119] sm:$0xff]
        %v3536 = vld [vmem:[%s1138 + $0x121] sm:$0xff]
        %v3537 = vld [vmem:[%s1138 + $0x129] sm:$0xff]
        %v3538 = vld [vmem:[%s1138 + $0x131] sm:$0xff]
        %v3539 = vlaneseq
        %v3540 = vshrl.u32 %v3539, 7
        %v3541 = vsub.s32 0, %v3540
        %v3542 = vrot.slane %v3506, %v3541
        %v3543 = vmul.f32 %v3542, %v3507
        %v3544 = vmul.f32 %v3542, %v3508
        %v3545 = vmul.f32 %v3542, %v3509
        %v3546 = vmul.f32 %v3542, %v3510
        %v3547 = vmul.f32 %v3542, %v3511
        %v3548 = vmul.f32 %v3542, %v3512
        %v3549 = vmul.f32 %v3542, %v3513
        %v3550 = vmul.f32 %v3542, %v3514
        %v3551 = vmul.f32 %v3542, %v3515
        %v3552 = vmul.f32 %v3542, %v3516
        %v3553 = vmul.f32 %v3542, %v3517
        %v3554 = vmul.f32 %v3542, %v3518
        %v3555 = vmul.f32 %v3542, %v3519
        %v3556 = vmul.f32 %v3542, %v3520
        %v3557 = vmul.f32 %v3542, %v3521
        %v3558 = vmul.f32 %v3542, %v3522
        %v3559 = vmul.f32 %v3542, %v3523
        %v3560 = vmul.f32 %v3542, %v3524
        %v3561 = vmul.f32 %v3542, %v3525
        %v3562 = vmul.f32 %v3542, %v3526
        %v3563 = vmul.f32 %v3542, %v3527
        %v3564 = vmul.f32 %v3542, %v3528
        %v3565 = vmul.f32 %v3542, %v3529
        %v3566 = vmul.f32 %v3542, %v3530
        %v3567 = vmul.f32 %v3542, %v3531
        %v3568 = vmul.f32 %v3542, %v3532
        %v3569 = vmul.f32 %v3542, %v3533
        %v3570 = vmul.f32 %v3542, %v3534
        %v3571 = vmul.f32 %v3542, %v3535
        %v3572 = vmul.f32 %v3542, %v3536
        %v3573 = vmul.f32 %v3542, %v3537
        %v3574 = vmul.f32 %v3542, %v3538
        %v3575 = vadd.f32 %v3474, %v3543
        %v3576 = vadd.f32 %v3475, %v3544
        %v3577 = vadd.f32 %v3476, %v3545
        %v3578 = vadd.f32 %v3477, %v3546
        %v3579 = vadd.f32 %v3478, %v3547
        %v3580 = vadd.f32 %v3479, %v3548
        %v3581 = vadd.f32 %v3480, %v3549
        %v3582 = vadd.f32 %v3481, %v3550
        %v3583 = vadd.f32 %v3482, %v3551
        %v3584 = vadd.f32 %v3483, %v3552
        %v3585 = vadd.f32 %v3484, %v3553
        %v3586 = vadd.f32 %v3485, %v3554
        %v3587 = vadd.f32 %v3486, %v3555
        %v3588 = vadd.f32 %v3487, %v3556
        %v3589 = vadd.f32 %v3488, %v3557
        %v3590 = vadd.f32 %v3489, %v3558
        %v3591 = vadd.f32 %v3490, %v3559
        %v3592 = vadd.f32 %v3491, %v3560
        %v3593 = vadd.f32 %v3492, %v3561
        %v3594 = vadd.f32 %v3493, %v3562
        %v3595 = vadd.f32 %v3494, %v3563
        %v3596 = vadd.f32 %v3495, %v3564
        %v3597 = vadd.f32 %v3496, %v3565
        %v3598 = vadd.f32 %v3497, %v3566
        %v3599 = vadd.f32 %v3498, %v3567
        %v3600 = vadd.f32 %v3499, %v3568
        %v3601 = vadd.f32 %v3500, %v3569
        %v3602 = vadd.f32 %v3501, %v3570
        %v3603 = vadd.f32 %v3502, %v3571
        %v3604 = vadd.f32 %v3503, %v3572
        %v3605 = vadd.f32 %v3504, %v3573
        %v3606 = vadd.f32 %v3505, %v3574
        %v3607 = vld [vmem:[#allocation17 + $0x16] sm:$0x1]
        %v3608 = vld [vmem:[%s1138 + $0x2] sm:$0xff]
        %v3609 = vld [vmem:[%s1138 + $0xa] sm:$0xff]
        %v3610 = vld [vmem:[%s1138 + $0x12] sm:$0xff]
        %v3611 = vld [vmem:[%s1138 + $0x1a] sm:$0xff]
        %v3612 = vld [vmem:[%s1138 + $0x2a] sm:$0xff]
        %v3613 = vld [vmem:[%s1138 + $0x32] sm:$0xff]
        %v3614 = vld [vmem:[%s1138 + $0x3a] sm:$0xff]
        %v3615 = vld [vmem:[%s1138 + $0x42] sm:$0xff]
        %v3616 = vld [vmem:[%s1138 + $0x52] sm:$0xff]
        %v3617 = vld [vmem:[%s1138 + $0x5a] sm:$0xff]
        %v3618 = vld [vmem:[%s1138 + $0x62] sm:$0xff]
        %v3619 = vld [vmem:[%s1138 + $0x6a] sm:$0xff]
        %v3620 = vld [vmem:[%s1138 + $0x7a] sm:$0xff]
        %v3621 = vld [vmem:[%s1138 + $0x82] sm:$0xff]
        %v3622 = vld [vmem:[%s1138 + $0x8a] sm:$0xff]
        %v3623 = vld [vmem:[%s1138 + $0x92] sm:$0xff]
        %v3624 = vld [vmem:[%s1138 + $0xa2] sm:$0xff]
        %v3625 = vld [vmem:[%s1138 + $0xaa] sm:$0xff]
        %v3626 = vld [vmem:[%s1138 + $0xb2] sm:$0xff]
        %v3627 = vld [vmem:[%s1138 + $0xba] sm:$0xff]
        %v3628 = vld [vmem:[%s1138 + $0xca] sm:$0xff]
        %v3629 = vld [vmem:[%s1138 + $0xd2] sm:$0xff]
        %v3630 = vld [vmem:[%s1138 + $0xda] sm:$0xff]
        %v3631 = vld [vmem:[%s1138 + $0xe2] sm:$0xff]
        %v3632 = vld [vmem:[%s1138 + $0xf2] sm:$0xff]
        %v3633 = vld [vmem:[%s1138 + $0xfa] sm:$0xff]
        %v3634 = vld [vmem:[%s1138 + $0x102] sm:$0xff]
        %v3635 = vld [vmem:[%s1138 + $0x10a] sm:$0xff]
        %v3636 = vld [vmem:[%s1138 + $0x11a] sm:$0xff]
        %v3637 = vld [vmem:[%s1138 + $0x122] sm:$0xff]
        %v3638 = vld [vmem:[%s1138 + $0x12a] sm:$0xff]
        %v3639 = vld [vmem:[%s1138 + $0x132] sm:$0xff]
        %v3640 = vlaneseq
        %v3641 = vshrl.u32 %v3640, 7
        %v3642 = vsub.s32 0, %v3641
        %v3643 = vrot.slane %v3607, %v3642
        %v3644 = vmul.f32 %v3643, %v3608
        %v3645 = vmul.f32 %v3643, %v3609
        %v3646 = vmul.f32 %v3643, %v3610
        %v3647 = vmul.f32 %v3643, %v3611
        %v3648 = vmul.f32 %v3643, %v3612
        %v3649 = vmul.f32 %v3643, %v3613
        %v3650 = vmul.f32 %v3643, %v3614
        %v3651 = vmul.f32 %v3643, %v3615
        %v3652 = vmul.f32 %v3643, %v3616
        %v3653 = vmul.f32 %v3643, %v3617
        %v3654 = vmul.f32 %v3643, %v3618
        %v3655 = vmul.f32 %v3643, %v3619
        %v3656 = vmul.f32 %v3643, %v3620
        %v3657 = vmul.f32 %v3643, %v3621
        %v3658 = vmul.f32 %v3643, %v3622
        %v3659 = vmul.f32 %v3643, %v3623
        %v3660 = vmul.f32 %v3643, %v3624
        %v3661 = vmul.f32 %v3643, %v3625
        %v3662 = vmul.f32 %v3643, %v3626
        %v3663 = vmul.f32 %v3643, %v3627
        %v3664 = vmul.f32 %v3643, %v3628
        %v3665 = vmul.f32 %v3643, %v3629
        %v3666 = vmul.f32 %v3643, %v3630
        %v3667 = vmul.f32 %v3643, %v3631
        %v3668 = vmul.f32 %v3643, %v3632
        %v3669 = vmul.f32 %v3643, %v3633
        %v3670 = vmul.f32 %v3643, %v3634
        %v3671 = vmul.f32 %v3643, %v3635
        %v3672 = vmul.f32 %v3643, %v3636
        %v3673 = vmul.f32 %v3643, %v3637
        %v3674 = vmul.f32 %v3643, %v3638
        %v3675 = vmul.f32 %v3643, %v3639
        %v3676 = vadd.f32 %v3575, %v3644
        %v3677 = vadd.f32 %v3576, %v3645
        %v3678 = vadd.f32 %v3577, %v3646
        %v3679 = vadd.f32 %v3578, %v3647
        %v3680 = vadd.f32 %v3579, %v3648
        %v3681 = vadd.f32 %v3580, %v3649
        %v3682 = vadd.f32 %v3581, %v3650
        %v3683 = vadd.f32 %v3582, %v3651
        %v3684 = vadd.f32 %v3583, %v3652
        %v3685 = vadd.f32 %v3584, %v3653
        %v3686 = vadd.f32 %v3585, %v3654
        %v3687 = vadd.f32 %v3586, %v3655
        %v3688 = vadd.f32 %v3587, %v3656
        %v3689 = vadd.f32 %v3588, %v3657
        %v3690 = vadd.f32 %v3589, %v3658
        %v3691 = vadd.f32 %v3590, %v3659
        %v3692 = vadd.f32 %v3591, %v3660
        %v3693 = vadd.f32 %v3592, %v3661
        %v3694 = vadd.f32 %v3593, %v3662
        %v3695 = vadd.f32 %v3594, %v3663
        %v3696 = vadd.f32 %v3595, %v3664
        %v3697 = vadd.f32 %v3596, %v3665
        %v3698 = vadd.f32 %v3597, %v3666
        %v3699 = vadd.f32 %v3598, %v3667
        %v3700 = vadd.f32 %v3599, %v3668
        %v3701 = vadd.f32 %v3600, %v3669
        %v3702 = vadd.f32 %v3601, %v3670
        %v3703 = vadd.f32 %v3602, %v3671
        %v3704 = vadd.f32 %v3603, %v3672
        %v3705 = vadd.f32 %v3604, %v3673
        %v3706 = vadd.f32 %v3605, %v3674
        %v3707 = vadd.f32 %v3606, %v3675
        %v3708 = vld [vmem:[#allocation17 + $0x17] sm:$0x1]
        %v3709 = vld [vmem:[%s1138 + $0x3] sm:$0xff]
        %v3710 = vld [vmem:[%s1138 + $0xb] sm:$0xff]
        %v3711 = vld [vmem:[%s1138 + $0x13] sm:$0xff]
        %v3712 = vld [vmem:[%s1138 + $0x1b] sm:$0xff]
        %v3713 = vld [vmem:[%s1138 + $0x2b] sm:$0xff]
        %v3714 = vld [vmem:[%s1138 + $0x33] sm:$0xff]
        %v3715 = vld [vmem:[%s1138 + $0x3b] sm:$0xff]
        %v3716 = vld [vmem:[%s1138 + $0x43] sm:$0xff]
        %v3717 = vld [vmem:[%s1138 + $0x53] sm:$0xff]
        %v3718 = vld [vmem:[%s1138 + $0x5b] sm:$0xff]
        %v3719 = vld [vmem:[%s1138 + $0x63] sm:$0xff]
        %v3720 = vld [vmem:[%s1138 + $0x6b] sm:$0xff]
        %v3721 = vld [vmem:[%s1138 + $0x7b] sm:$0xff]
        %v3722 = vld [vmem:[%s1138 + $0x83] sm:$0xff]
        %v3723 = vld [vmem:[%s1138 + $0x8b] sm:$0xff]
        %v3724 = vld [vmem:[%s1138 + $0x93] sm:$0xff]
        %v3725 = vld [vmem:[%s1138 + $0xa3] sm:$0xff]
        %v3726 = vld [vmem:[%s1138 + $0xab] sm:$0xff]
        %v3727 = vld [vmem:[%s1138 + $0xb3] sm:$0xff]
        %v3728 = vld [vmem:[%s1138 + $0xbb] sm:$0xff]
        %v3729 = vld [vmem:[%s1138 + $0xcb] sm:$0xff]
        %v3730 = vld [vmem:[%s1138 + $0xd3] sm:$0xff]
        %v3731 = vld [vmem:[%s1138 + $0xdb] sm:$0xff]
        %v3732 = vld [vmem:[%s1138 + $0xe3] sm:$0xff]
        %v3733 = vld [vmem:[%s1138 + $0xf3] sm:$0xff]
        %v3734 = vld [vmem:[%s1138 + $0xfb] sm:$0xff]
        %v3735 = vld [vmem:[%s1138 + $0x103] sm:$0xff]
        %v3736 = vld [vmem:[%s1138 + $0x10b] sm:$0xff]
        %v3737 = vld [vmem:[%s1138 + $0x11b] sm:$0xff]
        %v3738 = vld [vmem:[%s1138 + $0x123] sm:$0xff]
        %v3739 = vld [vmem:[%s1138 + $0x12b] sm:$0xff]
        %v3740 = vld [vmem:[%s1138 + $0x133] sm:$0xff]
        %v3741 = vlaneseq
        %v3742 = vshrl.u32 %v3741, 7
        %v3743 = vsub.s32 0, %v3742
        %v3744 = vrot.slane %v3708, %v3743
        %v3745 = vmul.f32 %v3744, %v3709
        %v3746 = vmul.f32 %v3744, %v3710
        %v3747 = vmul.f32 %v3744, %v3711
        %v3748 = vmul.f32 %v3744, %v3712
        %v3749 = vmul.f32 %v3744, %v3713
        %v3750 = vmul.f32 %v3744, %v3714
        %v3751 = vmul.f32 %v3744, %v3715
        %v3752 = vmul.f32 %v3744, %v3716
        %v3753 = vmul.f32 %v3744, %v3717
        %v3754 = vmul.f32 %v3744, %v3718
        %v3755 = vmul.f32 %v3744, %v3719
        %v3756 = vmul.f32 %v3744, %v3720
        %v3757 = vmul.f32 %v3744, %v3721
        %v3758 = vmul.f32 %v3744, %v3722
        %v3759 = vmul.f32 %v3744, %v3723
        %v3760 = vmul.f32 %v3744, %v3724
        %v3761 = vmul.f32 %v3744, %v3725
        %v3762 = vmul.f32 %v3744, %v3726
        %v3763 = vmul.f32 %v3744, %v3727
        %v3764 = vmul.f32 %v3744, %v3728
        %v3765 = vmul.f32 %v3744, %v3729
        %v3766 = vmul.f32 %v3744, %v3730
        %v3767 = vmul.f32 %v3744, %v3731
        %v3768 = vmul.f32 %v3744, %v3732
        %v3769 = vmul.f32 %v3744, %v3733
        %v3770 = vmul.f32 %v3744, %v3734
        %v3771 = vmul.f32 %v3744, %v3735
        %v3772 = vmul.f32 %v3744, %v3736
        %v3773 = vmul.f32 %v3744, %v3737
        %v3774 = vmul.f32 %v3744, %v3738
        %v3775 = vmul.f32 %v3744, %v3739
        %v3776 = vmul.f32 %v3744, %v3740
        %v3777 = vadd.f32 %v3676, %v3745
        %v3778 = vadd.f32 %v3677, %v3746
        %v3779 = vadd.f32 %v3678, %v3747
        %v3780 = vadd.f32 %v3679, %v3748
        %v3781 = vadd.f32 %v3680, %v3749
        %v3782 = vadd.f32 %v3681, %v3750
        %v3783 = vadd.f32 %v3682, %v3751
        %v3784 = vadd.f32 %v3683, %v3752
        %v3785 = vadd.f32 %v3684, %v3753
        %v3786 = vadd.f32 %v3685, %v3754
        %v3787 = vadd.f32 %v3686, %v3755
        %v3788 = vadd.f32 %v3687, %v3756
        %v3789 = vadd.f32 %v3688, %v3757
        %v3790 = vadd.f32 %v3689, %v3758
        %v3791 = vadd.f32 %v3690, %v3759
        %v3792 = vadd.f32 %v3691, %v3760
        %v3793 = vadd.f32 %v3692, %v3761
        %v3794 = vadd.f32 %v3693, %v3762
        %v3795 = vadd.f32 %v3694, %v3763
        %v3796 = vadd.f32 %v3695, %v3764
        %v3797 = vadd.f32 %v3696, %v3765
        %v3798 = vadd.f32 %v3697, %v3766
        %v3799 = vadd.f32 %v3698, %v3767
        %v3800 = vadd.f32 %v3699, %v3768
        %v3801 = vadd.f32 %v3700, %v3769
        %v3802 = vadd.f32 %v3701, %v3770
        %v3803 = vadd.f32 %v3702, %v3771
        %v3804 = vadd.f32 %v3703, %v3772
        %v3805 = vadd.f32 %v3704, %v3773
        %v3806 = vadd.f32 %v3705, %v3774
        %v3807 = vadd.f32 %v3706, %v3775
        %v3808 = vadd.f32 %v3707, %v3776
        %v3809 = vld [vmem:[#allocation17 + $0x18] sm:$0x1]
        %v3810 = vld [vmem:[%s1138 + $0x4] sm:$0xff]
        %v3811 = vld [vmem:[%s1138 + $0xc] sm:$0xff]
        %v3812 = vld [vmem:[%s1138 + $0x14] sm:$0xff]
        %v3813 = vld [vmem:[%s1138 + $0x1c] sm:$0xff]
        %v3814 = vld [vmem:[%s1138 + $0x2c] sm:$0xff]
        %v3815 = vld [vmem:[%s1138 + $0x34] sm:$0xff]
        %v3816 = vld [vmem:[%s1138 + $0x3c] sm:$0xff]
        %v3817 = vld [vmem:[%s1138 + $0x44] sm:$0xff]
        %v3818 = vld [vmem:[%s1138 + $0x54] sm:$0xff]
        %v3819 = vld [vmem:[%s1138 + $0x5c] sm:$0xff]
        %v3820 = vld [vmem:[%s1138 + $0x64] sm:$0xff]
        %v3821 = vld [vmem:[%s1138 + $0x6c] sm:$0xff]
        %v3822 = vld [vmem:[%s1138 + $0x7c] sm:$0xff]
        %v3823 = vld [vmem:[%s1138 + $0x84] sm:$0xff]
        %v3824 = vld [vmem:[%s1138 + $0x8c] sm:$0xff]
        %v3825 = vld [vmem:[%s1138 + $0x94] sm:$0xff]
        %v3826 = vld [vmem:[%s1138 + $0xa4] sm:$0xff]
        %v3827 = vld [vmem:[%s1138 + $0xac] sm:$0xff]
        %v3828 = vld [vmem:[%s1138 + $0xb4] sm:$0xff]
        %v3829 = vld [vmem:[%s1138 + $0xbc] sm:$0xff]
        %v3830 = vld [vmem:[%s1138 + $0xcc] sm:$0xff]
        %v3831 = vld [vmem:[%s1138 + $0xd4] sm:$0xff]
        %v3832 = vld [vmem:[%s1138 + $0xdc] sm:$0xff]
        %v3833 = vld [vmem:[%s1138 + $0xe4] sm:$0xff]
        %v3834 = vld [vmem:[%s1138 + $0xf4] sm:$0xff]
        %v3835 = vld [vmem:[%s1138 + $0xfc] sm:$0xff]
        %v3836 = vld [vmem:[%s1138 + $0x104] sm:$0xff]
        %v3837 = vld [vmem:[%s1138 + $0x10c] sm:$0xff]
        %v3838 = vld [vmem:[%s1138 + $0x11c] sm:$0xff]
        %v3839 = vld [vmem:[%s1138 + $0x124] sm:$0xff]
        %v3840 = vld [vmem:[%s1138 + $0x12c] sm:$0xff]
        %v3841 = vld [vmem:[%s1138 + $0x134] sm:$0xff]
        %v3842 = vlaneseq
        %v3843 = vshrl.u32 %v3842, 7
        %v3844 = vsub.s32 0, %v3843
        %v3845 = vrot.slane %v3809, %v3844
        %v3846 = vmul.f32 %v3845, %v3810
        %v3847 = vmul.f32 %v3845, %v3811
        %v3848 = vmul.f32 %v3845, %v3812
        %v3849 = vmul.f32 %v3845, %v3813
        %v3850 = vmul.f32 %v3845, %v3814
        %v3851 = vmul.f32 %v3845, %v3815
        %v3852 = vmul.f32 %v3845, %v3816
        %v3853 = vmul.f32 %v3845, %v3817
        %v3854 = vmul.f32 %v3845, %v3818
        %v3855 = vmul.f32 %v3845, %v3819
        %v3856 = vmul.f32 %v3845, %v3820
        %v3857 = vmul.f32 %v3845, %v3821
        %v3858 = vmul.f32 %v3845, %v3822
        %v3859 = vmul.f32 %v3845, %v3823
        %v3860 = vmul.f32 %v3845, %v3824
        %v3861 = vmul.f32 %v3845, %v3825
        %v3862 = vmul.f32 %v3845, %v3826
        %v3863 = vmul.f32 %v3845, %v3827
        %v3864 = vmul.f32 %v3845, %v3828
        %v3865 = vmul.f32 %v3845, %v3829
        %v3866 = vmul.f32 %v3845, %v3830
        %v3867 = vmul.f32 %v3845, %v3831
        %v3868 = vmul.f32 %v3845, %v3832
        %v3869 = vmul.f32 %v3845, %v3833
        %v3870 = vmul.f32 %v3845, %v3834
        %v3871 = vmul.f32 %v3845, %v3835
        %v3872 = vmul.f32 %v3845, %v3836
        %v3873 = vmul.f32 %v3845, %v3837
        %v3874 = vmul.f32 %v3845, %v3838
        %v3875 = vmul.f32 %v3845, %v3839
        %v3876 = vmul.f32 %v3845, %v3840
        %v3877 = vmul.f32 %v3845, %v3841
        %v3878 = vadd.f32 %v3777, %v3846
        %v3879 = vadd.f32 %v3778, %v3847
        %v3880 = vadd.f32 %v3779, %v3848
        %v3881 = vadd.f32 %v3780, %v3849
        %v3882 = vadd.f32 %v3781, %v3850
        %v3883 = vadd.f32 %v3782, %v3851
        %v3884 = vadd.f32 %v3783, %v3852
        %v3885 = vadd.f32 %v3784, %v3853
        %v3886 = vadd.f32 %v3785, %v3854
        %v3887 = vadd.f32 %v3786, %v3855
        %v3888 = vadd.f32 %v3787, %v3856
        %v3889 = vadd.f32 %v3788, %v3857
        %v3890 = vadd.f32 %v3789, %v3858
        %v3891 = vadd.f32 %v3790, %v3859
        %v3892 = vadd.f32 %v3791, %v3860
        %v3893 = vadd.f32 %v3792, %v3861
        %v3894 = vadd.f32 %v3793, %v3862
        %v3895 = vadd.f32 %v3794, %v3863
        %v3896 = vadd.f32 %v3795, %v3864
        %v3897 = vadd.f32 %v3796, %v3865
        %v3898 = vadd.f32 %v3797, %v3866
        %v3899 = vadd.f32 %v3798, %v3867
        %v3900 = vadd.f32 %v3799, %v3868
        %v3901 = vadd.f32 %v3800, %v3869
        %v3902 = vadd.f32 %v3801, %v3870
        %v3903 = vadd.f32 %v3802, %v3871
        %v3904 = vadd.f32 %v3803, %v3872
        %v3905 = vadd.f32 %v3804, %v3873
        %v3906 = vadd.f32 %v3805, %v3874
        %v3907 = vadd.f32 %v3806, %v3875
        %v3908 = vadd.f32 %v3807, %v3876
        %v3909 = vadd.f32 %v3808, %v3877
        %v3910 = vld [vmem:[#allocation18] sm:$0xff]
        %v3911 = vld [vmem:[#allocation18 + $0x8] sm:$0xff]
        %v3912 = vld [vmem:[#allocation18 + $0x10] sm:$0xff]
        %v3913 = vld [vmem:[#allocation18 + $0x18] sm:$0xff]
        %v3914 = vld [vmem:[#allocation18 + $0x20] sm:$0xff]
        %v3915 = vld [vmem:[#allocation18 + $0x28] sm:$0xff]
        %v3916 = vld [vmem:[#allocation18 + $0x30] sm:$0xff]
        %v3917 = vld [vmem:[#allocation18 + $0x38] sm:$0xff]
        %v3918 = vld [vmem:[#allocation18 + $0x40] sm:$0xff]
        %v3919 = vld [vmem:[#allocation18 + $0x48] sm:$0xff]
        %v3920 = vld [vmem:[#allocation18 + $0x50] sm:$0xff]
        %v3921 = vld [vmem:[#allocation18 + $0x58] sm:$0xff]
        %v3922 = vld [vmem:[#allocation18 + $0x60] sm:$0xff]
        %v3923 = vld [vmem:[#allocation18 + $0x68] sm:$0xff]
        %v3924 = vld [vmem:[#allocation18 + $0x70] sm:$0xff]
        %v3925 = vld [vmem:[#allocation18 + $0x78] sm:$0xff]
        %v3926 = vld [vmem:[#allocation20] sm:$0x1]
        %v3928 = vlaneseq
        %v3929 = vshrl.u32 %v3928, 7
        %v3930 = vsub.s32 0, %v3929
        %v3931 = vrot.slane %v3926, %v3930
        %3933 = vmatprep.subr.mxu0 0.0
        %3934 = vmatpush1.msra.mxu0 %v3910
        %3935 = vmatprep.subr.mxu0 0.0
        %3936 = vmatpush1.msra.mxu0 %v3911
        %3937 = vmatprep.subr.mxu0 0.0
        %3938 = vmatpush1.msra.mxu0 %v3912
        %3939 = vmatprep.subr.mxu0 0.0
        %3940 = vmatpush1.msra.mxu0 %v3913
        %3941 = vmatprep.subr.mxu0 0.0
        %3942 = vmatpush1.msra.mxu0 %v3914
        %3943 = vmatprep.subr.mxu0 0.0
        %3944 = vmatpush1.msra.mxu0 %v3915
        %3945 = vmatprep.subr.mxu0 0.0
        %3946 = vmatpush1.msra.mxu0 %v3916
        %3947 = vmatprep.subr.mxu0 0.0
        %3948 = vmatpush1.msra.mxu0 %v3917
        %3949 = vmatprep.subr.mxu0 0.0
        %3950 = vmatpush1.msra.mxu0 %v3918
        %3951 = vmatprep.subr.mxu0 0.0
        %3952 = vmatpush1.msra.mxu0 %v3919
        %3953 = vmatprep.subr.mxu0 0.0
        %3954 = vmatpush1.msra.mxu0 %v3920
        %3955 = vmatprep.subr.mxu0 0.0
        %3956 = vmatpush1.msra.mxu0 %v3921
        %3957 = vmatprep.subr.mxu0 0.0
        %3958 = vmatpush1.msra.mxu0 %v3922
        %3959 = vmatprep.subr.mxu0 0.0
        %3960 = vmatpush1.msra.mxu0 %v3923
        %3961 = vmatprep.subr.mxu0 0.0
        %3962 = vmatpush1.msra.mxu0 %v3924
        %3963 = vmatprep.subr.mxu0 0.0
        %3964 = vmatpush1.msra.mxu0 %v3925
        %3965 = vmatprep.subr.mxu0 0.0
        %3966 = vmatpush1.msra.mxu0 0.0
        %3967 = vmatprep.subr.mxu0 0.0
        %3968 = vmatpush1.msra.mxu0 0.0
        %3969 = vmatprep.subr.mxu0 0.0
        %3970 = vmatpush1.msra.mxu0 0.0
        %3971 = vmatprep.subr.mxu0 0.0
        %3972 = vmatpush1.msra.mxu0 0.0
        %3973 = vmatprep.subr.mxu0 0.0
        %3974 = vmatpush1.msra.mxu0 0.0
        %3975 = vmatprep.subr.mxu0 0.0
        %3976 = vmatpush1.msra.mxu0 0.0
        %3977 = vmatprep.subr.mxu0 0.0
        %3978 = vmatpush1.msra.mxu0 0.0
        %3979 = vmatprep.subr.mxu0 0.0
        %3980 = vmatpush1.msra.mxu0 0.0
        %3981 = vmatprep.subr.mxu0 0.0
        %3982 = vmatpush1.msra.mxu0 0.0
        %3983 = vmatprep.subr.mxu0 0.0
        %3984 = vmatpush1.msra.mxu0 0.0
        %3985 = vmatprep.subr.mxu0 0.0
        %3986 = vmatpush1.msra.mxu0 0.0
        %3987 = vmatprep.subr.mxu0 0.0
        %3988 = vmatpush1.msra.mxu0 0.0
        %3989 = vmatprep.subr.mxu0 0.0
        %3990 = vmatpush1.msra.mxu0 0.0
        %3991 = vmatprep.subr.mxu0 0.0
        %3992 = vmatpush1.msra.mxu0 0.0
        %3993 = vmatprep.subr.mxu0 0.0
        %3994 = vmatpush1.msra.mxu0 0.0
        %3995 = vmatprep.subr.mxu0 0.0
        %3996 = vmatpush1.msra.mxu0 0.0
        %3997 = vmatprep.mubr.f32.mxu0 0.0
        %3998 = vmatmul.mubr.f32.gmra.mrb[0].mxu0 %v3878
        %v3999 = vpop.f32.mrb[0].mxu0
        %v4000 = vadd.f32 %v3931, %v3999
        %v4001 = vpop.f32.mrb[0].mxu0
        %4002 = vmatprep.mubr.f32.mxu0 0.0
        %4003 = vmatmul.mubr.f32.gmra.mrb[0].mxu0 %v3879
        %v4004 = vpop.f32.mrb[0].mxu0
        %v4005 = vadd.f32 %v3931, %v4004
        %v4006 = vpop.f32.mrb[0].mxu0
        %4007 = vmatprep.mubr.f32.mxu0 0.0
        %4008 = vmatmul.mubr.f32.gmra.mrb[0].mxu0 %v3880
        %v4009 = vpop.f32.mrb[0].mxu0
        %v4010 = vadd.f32 %v3931, %v4009
        %v4011 = vpop.f32.mrb[0].mxu0
        %4012 = vmatprep.mubr.f32.mxu0 0.0
        %4013 = vmatmul.mubr.f32.gmra.mrb[0].mxu0 %v3881
        %v4014 = vpop.f32.mrb[0].mxu0
        %v4015 = vadd.f32 %v3931, %v4014
        %v4016 = vpop.f32.mrb[0].mxu0
        %4017 = vmatprep.mubr.f32.mxu0 0.0
        %4018 = vmatmul.mubr.f32.gmra.mrb[0].mxu0 %v3882
        %v4019 = vpop.f32.mrb[0].mxu0
        %v4020 = vadd.f32 %v3931, %v4019
        %v4021 = vpop.f32.mrb[0].mxu0
        %4022 = vmatprep.mubr.f32.mxu0 0.0
        %4023 = vmatmul.mubr.f32.gmra.mrb[0].mxu0 %v3883
        %v4024 = vpop.f32.mrb[0].mxu0
        %v4025 = vadd.f32 %v3931, %v4024
        %v4026 = vpop.f32.mrb[0].mxu0
        %4027 = vmatprep.mubr.f32.mxu0 0.0
        %4028 = vmatmul.mubr.f32.gmra.mrb[0].mxu0 %v3884
        %v4029 = vpop.f32.mrb[0].mxu0
        %v4030 = vadd.f32 %v3931, %v4029
        %v4031 = vpop.f32.mrb[0].mxu0
        %4032 = vmatprep.mubr.f32.mxu0 0.0
        %4033 = vmatmul.mubr.f32.gmra.mrb[0].mxu0 %v3885
        %v4034 = vpop.f32.mrb[0].mxu0
        %v4035 = vadd.f32 %v3931, %v4034
        %v4036 = vpop.f32.mrb[0].mxu0
        %4037 = vmatprep.mubr.f32.mxu0 0.0
        %4038 = vmatmul.mubr.f32.gmra.mrb[0].mxu0 %v3886
        %v4039 = vpop.f32.mrb[0].mxu0
        %v4040 = vadd.f32 %v3931, %v4039
        %v4041 = vpop.f32.mrb[0].mxu0
        %4042 = vmatprep.mubr.f32.mxu0 0.0
        %4043 = vmatmul.mubr.f32.gmra.mrb[0].mxu0 %v3887
        %v4044 = vpop.f32.mrb[0].mxu0
        %v4045 = vadd.f32 %v3931, %v4044
        %v4046 = vpop.f32.mrb[0].mxu0
        %4047 = vmatprep.mubr.f32.mxu0 0.0
        %4048 = vmatmul.mubr.f32.gmra.mrb[0].mxu0 %v3888
        %v4049 = vpop.f32.mrb[0].mxu0
        %v4050 = vadd.f32 %v3931, %v4049
        %v4051 = vpop.f32.mrb[0].mxu0
        %4052 = vmatprep.mubr.f32.mxu0 0.0
        %4053 = vmatmul.mubr.f32.gmra.mrb[0].mxu0 %v3889
        %v4054 = vpop.f32.mrb[0].mxu0
        %v4055 = vadd.f32 %v3931, %v4054
        %v4056 = vpop.f32.mrb[0].mxu0
        %4057 = vmatprep.mubr.f32.mxu0 0.0
        %4058 = vmatmul.mubr.f32.gmra.mrb[0].mxu0 %v3890
        %v4059 = vpop.f32.mrb[0].mxu0
        %v4060 = vadd.f32 %v3931, %v4059
        %v4061 = vpop.f32.mrb[0].mxu0
        %4062 = vmatprep.mubr.f32.mxu0 0.0
        %4063 = vmatmul.mubr.f32.gmra.mrb[0].mxu0 %v3891
        %v4064 = vpop.f32.mrb[0].mxu0
        %v4065 = vadd.f32 %v3931, %v4064
        %v4066 = vpop.f32.mrb[0].mxu0
        %4067 = vmatprep.mubr.f32.mxu0 0.0
        %4068 = vmatmul.mubr.f32.gmra.mrb[0].mxu0 %v3892
        %v4069 = vpop.f32.mrb[0].mxu0
        %v4070 = vadd.f32 %v3931, %v4069
        %v4071 = vpop.f32.mrb[0].mxu0
        %4072 = vmatprep.mubr.f32.mxu0 0.0
        %4073 = vmatmul.mubr.f32.gmra.mrb[0].mxu0 %v3893
        %v4074 = vpop.f32.mrb[0].mxu0
        %v4075 = vadd.f32 %v3931, %v4074
        %v4076 = vpop.f32.mrb[0].mxu0
        %4077 = vmatprep.mubr.f32.mxu0 0.0
        %4078 = vmatmul.mubr.f32.gmra.mrb[0].mxu0 %v3894
        %v4079 = vpop.f32.mrb[0].mxu0
        %v4080 = vadd.f32 %v3931, %v4079
        %v4081 = vpop.f32.mrb[0].mxu0
        %4082 = vmatprep.mubr.f32.mxu0 0.0
        %4083 = vmatmul.mubr.f32.gmra.mrb[0].mxu0 %v3895
        %v4084 = vpop.f32.mrb[0].mxu0
        %v4085 = vadd.f32 %v3931, %v4084
        %v4086 = vpop.f32.mrb[0].mxu0
        %4087 = vmatprep.mubr.f32.mxu0 0.0
        %4088 = vmatmul.mubr.f32.gmra.mrb[0].mxu0 %v3896
        %v4089 = vpop.f32.mrb[0].mxu0
        %v4090 = vadd.f32 %v3931, %v4089
        %v4091 = vpop.f32.mrb[0].mxu0
        %4092 = vmatprep.mubr.f32.mxu0 0.0
        %4093 = vmatmul.mubr.f32.gmra.mrb[0].mxu0 %v3897
        %v4094 = vpop.f32.mrb[0].mxu0
        %v4095 = vadd.f32 %v3931, %v4094
        %v4096 = vpop.f32.mrb[0].mxu0
        %4097 = vmatprep.mubr.f32.mxu0 0.0
        %4098 = vmatmul.mubr.f32.gmra.mrb[0].mxu0 %v3898
        %v4099 = vpop.f32.mrb[0].mxu0
        %v4100 = vadd.f32 %v3931, %v4099
        %v4101 = vpop.f32.mrb[0].mxu0
        %4102 = vmatprep.mubr.f32.mxu0 0.0
        %4103 = vmatmul.mubr.f32.gmra.mrb[0].mxu0 %v3899
        %v4104 = vpop.f32.mrb[0].mxu0
        %v4105 = vadd.f32 %v3931, %v4104
        %v4106 = vpop.f32.mrb[0].mxu0
        %4107 = vmatprep.mubr.f32.mxu0 0.0
        %4108 = vmatmul.mubr.f32.gmra.mrb[0].mxu0 %v3900
        %v4109 = vpop.f32.mrb[0].mxu0
        %v4110 = vadd.f32 %v3931, %v4109
        %v4111 = vpop.f32.mrb[0].mxu0
        %4112 = vmatprep.mubr.f32.mxu0 0.0
        %4113 = vmatmul.mubr.f32.gmra.mrb[0].mxu0 %v3901
        %v4114 = vpop.f32.mrb[0].mxu0
        %v4115 = vadd.f32 %v3931, %v4114
        %v4116 = vpop.f32.mrb[0].mxu0
        %4117 = vmatprep.mubr.f32.mxu0 0.0
        %4118 = vmatmul.mubr.f32.gmra.mrb[0].mxu0 %v3902
        %v4119 = vpop.f32.mrb[0].mxu0
        %v4120 = vadd.f32 %v3931, %v4119
        %v4121 = vpop.f32.mrb[0].mxu0
        %4122 = vmatprep.mubr.f32.mxu0 0.0
        %4123 = vmatmul.mubr.f32.gmra.mrb[0].mxu0 %v3903
        %v4124 = vpop.f32.mrb[0].mxu0
        %v4125 = vadd.f32 %v3931, %v4124
        %v4126 = vpop.f32.mrb[0].mxu0
        %4127 = vmatprep.mubr.f32.mxu0 0.0
        %4128 = vmatmul.mubr.f32.gmra.mrb[0].mxu0 %v3904
        %v4129 = vpop.f32.mrb[0].mxu0
        %v4130 = vadd.f32 %v3931, %v4129
        %v4131 = vpop.f32.mrb[0].mxu0
        %4132 = vmatprep.mubr.f32.mxu0 0.0
        %4133 = vmatmul.mubr.f32.gmra.mrb[0].mxu0 %v3905
        %v4134 = vpop.f32.mrb[0].mxu0
        %v4135 = vadd.f32 %v3931, %v4134
        %v4136 = vpop.f32.mrb[0].mxu0
        %4137 = vmatprep.mubr.f32.mxu0 0.0
        %4138 = vmatmul.mubr.f32.gmra.mrb[0].mxu0 %v3906
        %v4139 = vpop.f32.mrb[0].mxu0
        %v4140 = vadd.f32 %v3931, %v4139
        %v4141 = vpop.f32.mrb[0].mxu0
        %4142 = vmatprep.mubr.f32.mxu0 0.0
        %4143 = vmatmul.mubr.f32.gmra.mrb[0].mxu0 %v3907
        %v4144 = vpop.f32.mrb[0].mxu0
        %v4145 = vadd.f32 %v3931, %v4144
        %v4146 = vpop.f32.mrb[0].mxu0
        %4147 = vmatprep.mubr.f32.mxu0 0.0
        %4148 = vmatmul.mubr.f32.gmra.mrb[0].mxu0 %v3908
        %v4149 = vpop.f32.mrb[0].mxu0
        %v4150 = vadd.f32 %v3931, %v4149
        %v4151 = vpop.f32.mrb[0].mxu0
        %4152 = vmatprep.mubr.f32.mxu0 0.0
        %4153 = vmatmul.mubr.f32.gmra.mrb[0].mxu0 %v3909
        %v4154 = vpop.f32.mrb[0].mxu0
        %v4155 = vadd.f32 %v3931, %v4154
        %v4156 = vpop.f32.mrb[0].mxu0
        %4157 = vdwg.mxu0
        %v4158 = vmax.f32 %v4000, 0.0
        %v4159 = vmax.f32 %v4005, 0.0
        %v4160 = vmax.f32 %v4010, 0.0
        %v4161 = vmax.f32 %v4015, 0.0
        %v4162 = vmax.f32 %v4020, 0.0
        %v4163 = vmax.f32 %v4025, 0.0
        %v4164 = vmax.f32 %v4030, 0.0
        %v4165 = vmax.f32 %v4035, 0.0
        %v4166 = vmax.f32 %v4040, 0.0
        %v4167 = vmax.f32 %v4045, 0.0
        %v4168 = vmax.f32 %v4050, 0.0
        %v4169 = vmax.f32 %v4055, 0.0
        %v4170 = vmax.f32 %v4060, 0.0
        %v4171 = vmax.f32 %v4065, 0.0
        %v4172 = vmax.f32 %v4070, 0.0
        %v4173 = vmax.f32 %v4075, 0.0
        %v4174 = vmax.f32 %v4080, 0.0
        %v4175 = vmax.f32 %v4085, 0.0
        %v4176 = vmax.f32 %v4090, 0.0
        %v4177 = vmax.f32 %v4095, 0.0
        %v4178 = vmax.f32 %v4100, 0.0
        %v4179 = vmax.f32 %v4105, 0.0
        %v4180 = vmax.f32 %v4110, 0.0
        %v4181 = vmax.f32 %v4115, 0.0
        %v4182 = vmax.f32 %v4120, 0.0
        %v4183 = vmax.f32 %v4125, 0.0
        %v4184 = vmax.f32 %v4130, 0.0
        %v4185 = vmax.f32 %v4135, 0.0
        %v4186 = vmax.f32 %v4140, 0.0
        %v4187 = vmax.f32 %v4145, 0.0
        %v4188 = vmax.f32 %v4150, 0.0
        %v4189 = vmax.f32 %v4155, 0.0
        %v4190 = vmin.f32 %v4158, 6.0
        %v4191 = vmin.f32 %v4159, 6.0
        %v4192 = vmin.f32 %v4160, 6.0
        %v4193 = vmin.f32 %v4161, 6.0
        %v4194 = vmin.f32 %v4162, 6.0
        %v4195 = vmin.f32 %v4163, 6.0
        %v4196 = vmin.f32 %v4164, 6.0
        %v4197 = vmin.f32 %v4165, 6.0
        %v4198 = vmin.f32 %v4166, 6.0
        %v4199 = vmin.f32 %v4167, 6.0
        %v4200 = vmin.f32 %v4168, 6.0
        %v4201 = vmin.f32 %v4169, 6.0
        %v4202 = vmin.f32 %v4170, 6.0
        %v4203 = vmin.f32 %v4171, 6.0
        %v4204 = vmin.f32 %v4172, 6.0
        %v4205 = vmin.f32 %v4173, 6.0
        %v4206 = vmin.f32 %v4174, 6.0
        %v4207 = vmin.f32 %v4175, 6.0
        %v4208 = vmin.f32 %v4176, 6.0
        %v4209 = vmin.f32 %v4177, 6.0
        %v4210 = vmin.f32 %v4178, 6.0
        %v4211 = vmin.f32 %v4179, 6.0
        %v4212 = vmin.f32 %v4180, 6.0
        %v4213 = vmin.f32 %v4181, 6.0
        %v4214 = vmin.f32 %v4182, 6.0
        %v4215 = vmin.f32 %v4183, 6.0
        %v4216 = vmin.f32 %v4184, 6.0
        %v4217 = vmin.f32 %v4185, 6.0
        %v4218 = vmin.f32 %v4186, 6.0
        %v4219 = vmin.f32 %v4187, 6.0
        %v4220 = vmin.f32 %v4188, 6.0
        %v4221 = vmin.f32 %v4189, 6.0
        %4222 = vst [vmem:[%s716] sm:$0xff] %v4190
        %4223 = vst [vmem:[%s716 + $0x8] sm:$0xff] %v4191
        %4224 = vst [vmem:[%s716 + $0x10] sm:$0xff] %v4192
        %4225 = vst [vmem:[%s716 + $0x18] sm:$0xff] %v4193
        %4226 = vst [vmem:[%s716 + $0x20] sm:$0xff] %v4194
        %4227 = vst [vmem:[%s716 + $0x28] sm:$0xff] %v4195
        %4228 = vst [vmem:[%s716 + $0x30] sm:$0xff] %v4196
        %4229 = vst [vmem:[%s716 + $0x38] sm:$0xff] %v4197
        %4230 = vst [vmem:[%s716 + $0x40] sm:$0xff] %v4198
        %4231 = vst [vmem:[%s716 + $0x48] sm:$0xff] %v4199
        %4232 = vst [vmem:[%s716 + $0x50] sm:$0xff] %v4200
        %4233 = vst [vmem:[%s716 + $0x58] sm:$0xff] %v4201
        %4234 = vst [vmem:[%s716 + $0x60] sm:$0xff] %v4202
        %4235 = vst [vmem:[%s716 + $0x68] sm:$0xff] %v4203
        %4236 = vst [vmem:[%s716 + $0x70] sm:$0xff] %v4204
        %4237 = vst [vmem:[%s716 + $0x78] sm:$0xff] %v4205
        %4238 = vst [vmem:[%s716 + $0x80] sm:$0xff] %v4206
        %4239 = vst [vmem:[%s716 + $0x88] sm:$0xff] %v4207
        %4240 = vst [vmem:[%s716 + $0x90] sm:$0xff] %v4208
        %4241 = vst [vmem:[%s716 + $0x98] sm:$0xff] %v4209
        %4242 = vst [vmem:[%s716 + $0xa0] sm:$0xff] %v4210
        %4243 = vst [vmem:[%s716 + $0xa8] sm:$0xff] %v4211
        %4244 = vst [vmem:[%s716 + $0xb0] sm:$0xff] %v4212
        %4245 = vst [vmem:[%s716 + $0xb8] sm:$0xff] %v4213
        %4246 = vst [vmem:[%s716 + $0xc0] sm:$0xff] %v4214
        %4247 = vst [vmem:[%s716 + $0xc8] sm:$0xff] %v4215
        %4248 = vst [vmem:[%s716 + $0xd0] sm:$0xff] %v4216
        %4249 = vst [vmem:[%s716 + $0xd8] sm:$0xff] %v4217
        %4250 = vst [vmem:[%s716 + $0xe0] sm:$0xff] %v4218
        %4251 = vst [vmem:[%s716 + $0xe8] sm:$0xff] %v4219
        %4252 = vst [vmem:[%s716 + $0xf0] sm:$0xff] %v4220
        %4253 = vst [vmem:[%s716 + $0xf8] sm:$0xff] %v4221
        %s4254 = sand.u32 %s344, 1
        %s4255 = scalar_lea.sflag [#allocation6], %s4254
        %s4256 = sand.u32 %s344, 1
        %s4257 = smul.addr %s4256, 256
        %s4258 = scalar_lea.vmem [#allocation21], %s4257
        // Predicated region
        $region117: #{_lambda_.1} parent=59 // pred_check
          %p4259 = pneg %p354
        $region118: #{_lambda_.1} parent=59 // pred_check_branch
          %4261 = sbr.rel (%p4259) target = $region120
        $region119: #{_lambda_.1} parent=59 // pred_region
          %s4262 = smul.u32 8, %s43
          %s4264 = ssub.s32 4096, 4096
          %4265 = vsyncadd %s4255, %s4264
          %s4266 = smul.addr %s4262, 4
          %s4267 = smul.addr %s42, 128
          %s4268 = sadd.s32 %s4266, %s4267
          %s4269 = smul.addr %s4268, 128
          %s4270 = scalar_lea.hbm %s10, %s4269
          %s4271 = sshll.u32 %s4258, 4
          %s4272 = int_to_ptr.vmem [resolvable:$true] %s4271
          %4277 = dma.vmem_to_hbm [thread:$0]  %s4272, 4096, %s4270, %s4255, 128, 128, 8
        $region120: #{_lambda_.1} parent=59 // pred_fallthru
          _
      $region60: #{_lambda_.1} parent=5 // pred_fallthru
        _
      %p4278 = scmp.le.s32.totalorder 2, %s33
      // Predicated region
      $region121: #{_lambda_.1} parent=5 // pred_check
        %p4279 = pneg %p4278
      $region122: #{_lambda_.1} parent=5 // pred_check_branch
        %4281 = sbr.rel (%p4279) target = $region124
      $region123: #{_lambda_.1} parent=5 // pred_region
        %s4282 = ssub.s32 %s33, 2
        // Predicated region
        $region125: #{_lambda_.1} parent=123 // pred_check
          %p4283 = pneg %p360
        $region126: #{_lambda_.1} parent=123 // pred_check_branch
          %4285 = sbr.rel (%p4283) target = $region128
        $region127: #{_lambda_.1} parent=123 // pred_region
          %s4286 = sand.u32 %s345, 1
          %s4287 = scalar_lea.sflag [#allocation6], %s4286
          %s4288 = sand.u32 %s345, 1
          %s4289 = smul.addr %s4288, 256
          %s4290 = scalar_lea.vmem [#allocation21], %s4289
          %4291 = dma.done %s4287, 4096
        $region128: #{_lambda_.1} parent=123 // pred_fallthru
          _
      $region124: #{_lambda_.1} parent=5 // pred_fallthru
        _
    $region6: #{_lambda_.1} parent=1 // loop_footer
      %s37 = sadd.s32 1, %s33
    $region7: #{_lambda_.1} parent=1 // loop_footer_branch
      %32 = sbr.rel target = $region3
    $region8: #{_lambda_.1} parent=1 // loop_exit
      _
    %4292 = vsyncpa [#allocation5], 1
    %s4293 = scalar_lea.sflag [#allocation5], 1
    %4294 = vsyncpa %s4293, 1
    %4295 = vsyncpa [#allocation10], 1
    %s4296 = scalar_lea.sflag [#allocation10], 1
    %4297 = vsyncpa %s4296, 1
    %4298 = vsyncpa [#allocation13], 1
    %s4299 = scalar_lea.sflag [#allocation13], 1
    %4300 = vsyncpa %s4299, 1
    %4301 = vsyncpa [#allocation16], 1
    %s4302 = scalar_lea.sflag [#allocation16], 1
    %4303 = vsyncpa %s4302, 1
    %4304 = vsyncpa [#allocation19], 1
    %4305 = vsyncpa [#allocation6], 1
    %s4306 = scalar_lea.sflag [#allocation6], 1
    %4307 = vsyncpa %s4306, 1
    %4308 = vsyncpa [#allocation7], 1
    %s4309 = scalar_lea.sflag [#allocation7], 1
    %4310 = vsyncpa %s4309, 1

</llo_original>
